<compile_context>
chip_gen: v6e
topology: v6e:2x2x1
jax: 0.10.0
libtpu: 0.0.40
codegen_flags: <defaults>
</compile_context>

<pallas_src>
import functools

import jax
import jax.numpy as jnp
from jax.experimental import pallas as pl
from jax.experimental.pallas import tpu as pltpu


# ----------------------------------------------------------------------------
# Pallas kernels
# ----------------------------------------------------------------------------
def _conv1_pool_kernel(cols_ref, w_ref, b_ref, o_ref):
    """conv1 matmul + bias + ReLU + 2x2 maxpool, fused.

    cols: (4, 128, M1) bf16  -- im2col patches, axis0 = pool offset (pdi,pdj)
    w:    (6, 128)     bf16  -- conv1 weight (Cout, Cin*k*k) zero-padded in K
    b:    (6, 1)       f32
    o:    (6, M1)      f32   -- lane-dense pooled activation,
                                column index = (i2*14 + j2)*N + n
    """
    m = None
    for p in range(4):
        t = jnp.dot(w_ref[...], cols_ref[p],
                    preferred_element_type=jnp.float32)          # (6, M1)
        m = t if m is None else jnp.maximum(m, t)
    # bias is identical for the 4 pool members and ReLU is monotone, so
    # pool(relu(conv + b)) == relu(max_p(conv_p) + b)
    o_ref[...] = jnp.maximum(m + b_ref[...], 0.0)


def _conv2_pool_fc_kernel(cols_ref, w2_ref, b2_ref, w1r_ref, b1_ref,
                          wf2_ref, bf2_ref, wf3_ref, bf3_ref, o_ref,
                          *, n_batch: int):
    """conv2 + bias + ReLU + 2x2 maxpool + fc1 + fc2 + fc3, fully fused.

    cols: (4, 25*N, 256) bf16  -- conv2 im2col, axis0 = pool offset,
                                  row index = (i2*5 + j2)*N + n
    w2:   (256, 16) bf16,  b2: (1, 16) f32
    w1r:  (25, 16, 120) bf16   -- fc1 weight regrouped per pooled position
    b1:   (1, 120) f32
    wf2:  (120, 84) bf16, bf2: (1, 84) f32
    wf3:  (84, 10)  bf16, bf3: (1, 10) f32
    o:    (N, 10) f32
    """
    # ---- conv2 (matmul) + maxpool + bias + ReLU -----------------------------
    m = None
    for p in range(4):
        t = jnp.dot(cols_ref[p], w2_ref[...],
                    preferred_element_type=jnp.float32)          # (25*N, 16)
        m = t if m is None else jnp.maximum(m, t)
    a2 = jnp.maximum(m + b2_ref[...], 0.0).astype(jnp.bfloat16)  # (25*N, 16)

    # ---- fc1: accumulate over the 25 pooled spatial positions ---------------
    # a2 rows are ordered s*N + n (s = i2*5 + j2); slices are at even offsets
    # so they align with bf16 sublane packing.
    acc = jnp.zeros((n_batch, 120), jnp.float32)
    for s in range(25):
        blk = a2[s * n_batch:(s + 1) * n_batch, :]               # (N, 16)
        acc = acc + jnp.dot(blk, w1r_ref[s],
                            preferred_element_type=jnp.float32)
    h1 = jnp.maximum(acc + b1_ref[...], 0.0).astype(jnp.bfloat16)  # (N, 120)

    # ---- fc2 / fc3 ----------------------------------------------------------
    h2 = jnp.maximum(
        jnp.dot(h1, wf2_ref[...], preferred_element_type=jnp.float32)
        + bf2_ref[...], 0.0).astype(jnp.bfloat16)                 # (N, 84)
    o_ref[...] = (jnp.dot(h2, wf3_ref[...], preferred_element_type=jnp.float32)
                  + bf3_ref[...])                                 # (N, 10)


def _whole(shape):
    nd = len(shape)
    return pl.BlockSpec(tuple(shape), lambda i, _nd=nd: (0,) * _nd)


def conv1_pool(cols1, w1p, b1):
    _, k1p, m1p = cols1.shape
    return pl.pallas_call(
        _conv1_pool_kernel,
        out_shape=jax.ShapeDtypeStruct((w1p.shape[0], m1p), jnp.float32),
        grid=(1,),
        in_specs=[_whole(cols1.shape), _whole(w1p.shape), _whole(b1.shape)],
        out_specs=_whole((w1p.shape[0], m1p)),
        compiler_params=pltpu.CompilerParams(
            dimension_semantics=("arbitrary",)),
    )(cols1, w1p, b1)


def conv2_pool_fc(cols2, w2p, b2, w1r, b1f, wf2, bf2, wf3, bf3, *, n_batch):
    kernel = functools.partial(_conv2_pool_fc_kernel, n_batch=n_batch)
    in_arrays = (cols2, w2p, b2, w1r, b1f, wf2, bf2, wf3, bf3)
    return pl.pallas_call(
        kernel,
        out_shape=jax.ShapeDtypeStruct((n_batch, 10), jnp.float32),
        grid=(1,),
        in_specs=[_whole(a.shape) for a in in_arrays],
        out_specs=_whole((n_batch, 10)),
        compiler_params=pltpu.CompilerParams(
            dimension_semantics=("arbitrary",)),
    )(*in_arrays)


# ----------------------------------------------------------------------------
# XLA-side layout glue (im2col with pool-offset-major ordering)
# ----------------------------------------------------------------------------
def _im2col_conv1(x):
    """x: (N, 3, 32, 32) -> cols (4, 128, 196*N) bf16."""
    n = x.shape[0]
    patches = [x[:, :, di:di + 28, dj:dj + 28]
               for di in range(5) for dj in range(5)]
    p = jnp.stack(patches, axis=0).reshape(5, 5, n, 3, 28, 28)
    p = p.reshape(5, 5, n, 3, 14, 2, 14, 2)    # (di,dj,n,ci,i2,pdi,j2,pdj)
    p = p.transpose(5, 7, 3, 0, 1, 4, 6, 2)    # (pdi,pdj,ci,di,dj,i2,j2,n)
    cols = p.reshape(4, 75, 14 * 14 * n)
    cols = jnp.pad(cols, ((0, 0), (0, 128 - 75), (0, 0)))
    return cols.astype(jnp.bfloat16)


def _im2col_conv2(act):
    """act: (6, 14, 14, N) -> cols (4, 25*N, 256) bf16."""
    n = act.shape[-1]
    patches = [act[:, di:di + 10, dj:dj + 10, :]
               for di in range(5) for dj in range(5)]
    q = jnp.stack(patches, axis=0).reshape(5, 5, 6, 10, 10, n)
    q = q.reshape(5, 5, 6, 5, 2, 5, 2, n)      # (di,dj,ci,i2,pdi,j2,pdj,n)
    q = q.transpose(4, 6, 3, 5, 7, 2, 0, 1)    # (pdi,pdj,i2,j2,n,ci,di,dj)
    cols = q.reshape(4, 25 * n, 150)
    cols = jnp.pad(cols, ((0, 0), (0, 0), (0, 256 - 150)))
    return cols.astype(jnp.bfloat16)


# ----------------------------------------------------------------------------
# Parameters (PyTorch-style init) and one-time kernel-layout preparation
# ----------------------------------------------------------------------------
def init_params(key):
    def uniform(key, shape, fan_in):
        bound = 1.0 / jnp.sqrt(jnp.asarray(fan_in, jnp.float32))
        return jax.random.uniform(key, shape, jnp.float32, -bound, bound)

    keys = jax.random.split(key, 10)
    return {
        "conv1_w": uniform(keys[0], (6, 3, 5, 5), 3 * 5 * 5),
        "conv1_b": uniform(keys[1], (6,), 3 * 5 * 5),
        "conv2_w": uniform(keys[2], (16, 6, 5, 5), 6 * 5 * 5),
        "conv2_b": uniform(keys[3], (16,), 6 * 5 * 5),
        "fc1_w": uniform(keys[4], (120, 16 * 5 * 5), 16 * 5 * 5),
        "fc1_b": uniform(keys[5], (120,), 16 * 5 * 5),
        "fc2_w": uniform(keys[6], (84, 120), 120),
        "fc2_b": uniform(keys[7], (84,), 120),
        "fc3_w": uniform(keys[8], (10, 84), 84),
        "fc3_b": uniform(keys[9], (10,), 84),
    }


def prepare_params(p):
    """Reshape / pad / cast weights into kernel-ready layouts (run once)."""
    bf16 = jnp.bfloat16
    w1p = jnp.pad(p["conv1_w"].reshape(6, 75),
                  ((0, 0), (0, 128 - 75))).astype(bf16)            # (6, 128)
    w2p = jnp.pad(p["conv2_w"].reshape(16, 150),
                  ((0, 0), (0, 256 - 150))).T.astype(bf16)         # (256, 16)
    # fc1 weight regrouped so feature index (c*25 + s) becomes [s][c, f]
    w1r = p["fc1_w"].reshape(120, 16, 25).transpose(2, 1, 0).astype(bf16)
    return {
        "w1p": w1p,
        "b1": p["conv1_b"].reshape(6, 1).astype(jnp.float32),
        "w2p": w2p,
        "b2": p["conv2_b"].reshape(1, 16).astype(jnp.float32),
        "w1r": w1r,                                                # (25,16,120)
        "b1f": p["fc1_b"].reshape(1, 120).astype(jnp.float32),
        "wf2": p["fc2_w"].T.astype(bf16),                          # (120, 84)
        "bf2": p["fc2_b"].reshape(1, 84).astype(jnp.float32),
        "wf3": p["fc3_w"].T.astype(bf16),                          # (84, 10)
        "bf3": p["fc3_b"].reshape(1, 10).astype(jnp.float32),
    }


# ----------------------------------------------------------------------------
# Forward pass
# ----------------------------------------------------------------------------
@jax.jit
def net_forward(prepped, x):
    n = x.shape[0]
    cols1 = _im2col_conv1(x)                                        # (4,128,196n)
    act1 = conv1_pool(cols1, prepped["w1p"], prepped["b1"])         # (6, 196n)
    act1 = act1.reshape(6, 14, 14, n)
    cols2 = _im2col_conv2(act1)                                     # (4,25n,256)
    out = conv2_pool_fc(cols2, prepped["w2p"], prepped["b2"],
                        prepped["w1r"], prepped["b1f"],
                        prepped["wf2"], prepped["bf2"],
                        prepped["wf3"], prepped["bf3"],
                        n_batch=n)                                  # (n, 10)
    return out


if __name__ == "__main__":
    # Spatial size 32 is forced by fc1's 16*5*5 input; small batch of 2.
    x = jax.random.normal(jax.random.PRNGKey(0), (2, 3, 32, 32), jnp.float32)
    params = init_params(jax.random.PRNGKey(42))
    prepped = prepare_params(params)

    out = jax.block_until_ready(net_forward(prepped, x))
    assert out.shape == (2, 10)
    print("KERNEL_OK")
</pallas_src>

<mosaic_0001>
module attributes {stable_mosaic.version = 11 : i64} {
  func.func @_conv1_pool_kernel(%arg0: i32, %arg1: memref<4x128x392xbf16, #tpu.memory_space<vmem>>, %arg2: memref<6x128xbf16, #tpu.memory_space<vmem>>, %arg3: memref<6x1xf32, #tpu.memory_space<vmem>>, %arg4: memref<6x392xf32, #tpu.memory_space<vmem>>) attributes {dimension_semantics = [#tpu.dimension_semantics<arbitrary>], iteration_bounds = array<i64: 1>, scalar_prefetch = 0 : i64, scratch_operands = 0 : i64, tpu.core_type = #tpu.core_type<tc>, window_params = [{pipeline_mode = #tpu.pipeline_mode<synchronous>, transform_indices = @transform_0, window_bounds = array<i64: 4, 128, 392>}, {pipeline_mode = #tpu.pipeline_mode<synchronous>, transform_indices = @transform_1, window_bounds = array<i64: 6, 128>}, {pipeline_mode = #tpu.pipeline_mode<synchronous>, transform_indices = @transform_2, window_bounds = array<i64: 6, 1>}, {pipeline_mode = #tpu.pipeline_mode<synchronous>, transform_indices = @transform_3, window_bounds = array<i64: 6, 392>}]} {
    %c0 = arith.constant 0 : index
    %c0_0 = arith.constant 0 : index
    %0 = vector.load %arg2[%c0, %c0_0] : memref<6x128xbf16, #tpu.memory_space<vmem>>, vector<6x128xbf16>
    %c0_1 = arith.constant 0 : index
    %c0_2 = arith.constant 0 : index
    %c0_3 = arith.constant 0 : index
    %1 = vector.load %arg1[%c0_1, %c0_2, %c0_3] : memref<4x128x392xbf16, #tpu.memory_space<vmem>>, vector<1x128x392xbf16>
    %2 = vector.shape_cast %1 : vector<1x128x392xbf16> to vector<128x392xbf16>
    %cst = arith.constant dense<0.000000e+00> : vector<6x392xf32>
    %3 = tpu.matmul %0, %2, %cst {dimension_numbers = #tpu.dot_dimension_numbers<[1], [0], [0], [1], [0, 0, 1, 1], [], []>} : vector<6x128xbf16>, vector<128x392xbf16>, vector<6x392xf32> -> vector<6x392xf32>
    %c0_4 = arith.constant 0 : index
    %c0_5 = arith.constant 0 : index
    %4 = vector.load %arg2[%c0_4, %c0_5] : memref<6x128xbf16, #tpu.memory_space<vmem>>, vector<6x128xbf16>
    %c1 = arith.constant 1 : index
    %c0_6 = arith.constant 0 : index
    %c0_7 = arith.constant 0 : index
    %5 = vector.load %arg1[%c1, %c0_6, %c0_7] : memref<4x128x392xbf16, #tpu.memory_space<vmem>>, vector<1x128x392xbf16>
    %6 = vector.shape_cast %5 : vector<1x128x392xbf16> to vector<128x392xbf16>
    %cst_8 = arith.constant dense<0.000000e+00> : vector<6x392xf32>
    %7 = tpu.matmul %4, %6, %cst_8 {dimension_numbers = #tpu.dot_dimension_numbers<[1], [0], [0], [1], [0, 0, 1, 1], [], []>} : vector<6x128xbf16>, vector<128x392xbf16>, vector<6x392xf32> -> vector<6x392xf32>
    %8 = arith.maximumf %3, %7 : vector<6x392xf32>
    %c0_9 = arith.constant 0 : index
    %c0_10 = arith.constant 0 : index
    %9 = vector.load %arg2[%c0_9, %c0_10] : memref<6x128xbf16, #tpu.memory_space<vmem>>, vector<6x128xbf16>
    %c2 = arith.constant 2 : index
    %c0_11 = arith.constant 0 : index
    %c0_12 = arith.constant 0 : index
    %10 = vector.load %arg1[%c2, %c0_11, %c0_12] : memref<4x128x392xbf16, #tpu.memory_space<vmem>>, vector<1x128x392xbf16>
    %11 = vector.shape_cast %10 : vector<1x128x392xbf16> to vector<128x392xbf16>
    %cst_13 = arith.constant dense<0.000000e+00> : vector<6x392xf32>
    %12 = tpu.matmul %9, %11, %cst_13 {dimension_numbers = #tpu.dot_dimension_numbers<[1], [0], [0], [1], [0, 0, 1, 1], [], []>} : vector<6x128xbf16>, vector<128x392xbf16>, vector<6x392xf32> -> vector<6x392xf32>
    %13 = arith.maximumf %8, %12 : vector<6x392xf32>
    %c0_14 = arith.constant 0 : index
    %c0_15 = arith.constant 0 : index
    %14 = vector.load %arg2[%c0_14, %c0_15] : memref<6x128xbf16, #tpu.memory_space<vmem>>, vector<6x128xbf16>
    %c3 = arith.constant 3 : index
    %c0_16 = arith.constant 0 : index
    %c0_17 = arith.constant 0 : index
    %15 = vector.load %arg1[%c3, %c0_16, %c0_17] : memref<4x128x392xbf16, #tpu.memory_space<vmem>>, vector<1x128x392xbf16>
    %16 = vector.shape_cast %15 : vector<1x128x392xbf16> to vector<128x392xbf16>
    %cst_18 = arith.constant dense<0.000000e+00> : vector<6x392xf32>
    %17 = tpu.matmul %14, %16, %cst_18 {dimension_numbers = #tpu.dot_dimension_numbers<[1], [0], [0], [1], [0, 0, 1, 1], [], []>} : vector<6x128xbf16>, vector<128x392xbf16>, vector<6x392xf32> -> vector<6x392xf32>
    %18 = arith.maximumf %13, %17 : vector<6x392xf32>
    %c0_19 = arith.constant 0 : index
    %c0_20 = arith.constant 0 : index
    %19 = vector.load %arg3[%c0_19, %c0_20] : memref<6x1xf32, #tpu.memory_space<vmem>>, vector<6x1xf32>
    %20 = vector.broadcast %19 : vector<6x1xf32> to vector<6x392xf32>
    %21 = arith.addf %18, %20 : vector<6x392xf32>
    %cst_21 = arith.constant 0.000000e+00 : f32
    %22 = vector.broadcast %cst_21 : f32 to vector<6x392xf32>
    %23 = arith.maximumf %21, %22 : vector<6x392xf32>
    %c0_22 = arith.constant 0 : index
    %c0_23 = arith.constant 0 : index
    %24 = vector.load %arg4[%c0_22, %c0_23] : memref<6x392xf32, #tpu.memory_space<vmem>>, vector<6x392xf32>
    tpu.vector_store %arg4[%c0_22, %c0_23], %23 {strides = array<i32>} : memref<6x392xf32, #tpu.memory_space<vmem>>, vector<6x392xf32>,
    return
  }
  func.func @transform_0(%arg0: i32) -> (i32, i32, i32) {
    %c0_i32 = arith.constant 0 : i32
    %c0_i32_0 = arith.constant 0 : i32
    %c0_i32_1 = arith.constant 0 : i32
    %c0_i32_2 = arith.constant 0 : i32
    return %c0_i32, %c0_i32_0, %c0_i32_1 : i32, i32, i32
  }
  func.func @transform_1(%arg0: i32) -> (i32, i32) {
    %c0_i32 = arith.constant 0 : i32
    %c0_i32_0 = arith.constant 0 : i32
    %c0_i32_1 = arith.constant 0 : i32
    return %c0_i32, %c0_i32_0 : i32, i32
  }
  func.func @transform_2(%arg0: i32) -> (i32, i32) {
    %c0_i32 = arith.constant 0 : i32
    %c0_i32_0 = arith.constant 0 : i32
    %c0_i32_1 = arith.constant 0 : i32
    return %c0_i32, %c0_i32_0 : i32, i32
  }
  func.func @transform_3(%arg0: i32) -> (i32, i32) {
    %c0_i32 = arith.constant 0 : i32
    %c0_i32_0 = arith.constant 0 : i32
    %c0_i32_1 = arith.constant 0 : i32
    return %c0_i32, %c0_i32_0 : i32, i32
  }
}

module attributes {stable_mosaic.version = 11 : i64} {
  func.func @_conv2_pool_fc_kernel(%arg0: i32, %arg1: memref<4x50x256xbf16, #tpu.memory_space<vmem>>, %arg2: memref<256x16xbf16, #tpu.memory_space<vmem>>, %arg3: memref<1x16xf32, #tpu.memory_space<vmem>>, %arg4: memref<25x16x120xbf16, #tpu.memory_space<vmem>>, %arg5: memref<1x120xf32, #tpu.memory_space<vmem>>, %arg6: memref<120x84xbf16, #tpu.memory_space<vmem>>, %arg7: memref<1x84xf32, #tpu.memory_space<vmem>>, %arg8: memref<84x10xbf16, #tpu.memory_space<vmem>>, %arg9: memref<1x10xf32, #tpu.memory_space<vmem>>, %arg10: memref<2x10xf32, #tpu.memory_space<vmem>>) attributes {dimension_semantics = [#tpu.dimension_semantics<arbitrary>], iteration_bounds = array<i64: 1>, scalar_prefetch = 0 : i64, scratch_operands = 0 : i64, tpu.core_type = #tpu.core_type<tc>, window_params = [{pipeline_mode = #tpu.pipeline_mode<synchronous>, transform_indices = @transform_0, window_bounds = array<i64: 4, 50, 256>}, {pipeline_mode = #tpu.pipeline_mode<synchronous>, transform_indices = @transform_1, window_bounds = array<i64: 256, 16>}, {pipeline_mode = #tpu.pipeline_mode<synchronous>, transform_indices = @transform_2, window_bounds = array<i64: 1, 16>}, {pipeline_mode = #tpu.pipeline_mode<synchronous>, transform_indices = @transform_3, window_bounds = array<i64: 25, 16, 120>}, {pipeline_mode = #tpu.pipeline_mode<synchronous>, transform_indices = @transform_4, window_bounds = array<i64: 1, 120>}, {pipeline_mode = #tpu.pipeline_mode<synchronous>, transform_indices = @transform_5, window_bounds = array<i64: 120, 84>}, {pipeline_mode = #tpu.pipeline_mode<synchronous>, transform_indices = @transform_6, window_bounds = array<i64: 1, 84>}, {pipeline_mode = #tpu.pipeline_mode<synchronous>, transform_indices = @transform_7, window_bounds = array<i64: 84, 10>}, {pipeline_mode = #tpu.pipeline_mode<synchronous>, transform_indices = @transform_8, window_bounds = array<i64: 1, 10>}, {pipeline_mode = #tpu.pipeline_mode<synchronous>, transform_indices = @transform_9, window_bounds = array<i64: 2, 10>}]} {
    %c0 = arith.constant 0 : index
    %c0_0 = arith.constant 0 : index
    %c0_1 = arith.constant 0 : index
    %0 = vector.load %arg1[%c0, %c0_0, %c0_1] : memref<4x50x256xbf16, #tpu.memory_space<vmem>>, vector<1x50x256xbf16>
    %1 = vector.shape_cast %0 : vector<1x50x256xbf16> to vector<50x256xbf16>
    %c0_2 = arith.constant 0 : index
    %c0_3 = arith.constant 0 : index
    %2 = vector.load %arg2[%c0_2, %c0_3] : memref<256x16xbf16, #tpu.memory_space<vmem>>, vector<256x16xbf16>
    %cst = arith.constant dense<0.000000e+00> : vector<50x16xf32>
    %3 = tpu.matmul %1, %2, %cst {dimension_numbers = #tpu.dot_dimension_numbers<[1], [0], [0], [1], [0, 0, 1, 1], [], []>} : vector<50x256xbf16>, vector<256x16xbf16>, vector<50x16xf32> -> vector<50x16xf32>
    %c1 = arith.constant 1 : index
    %c0_4 = arith.constant 0 : index
    %c0_5 = arith.constant 0 : index
    %4 = vector.load %arg1[%c1, %c0_4, %c0_5] : memref<4x50x256xbf16, #tpu.memory_space<vmem>>, vector<1x50x256xbf16>
    %5 = vector.shape_cast %4 : vector<1x50x256xbf16> to vector<50x256xbf16>
    %c0_6 = arith.constant 0 : index
    %c0_7 = arith.constant 0 : index
    %6 = vector.load %arg2[%c0_6, %c0_7] : memref<256x16xbf16, #tpu.memory_space<vmem>>, vector<256x16xbf16>
    %cst_8 = arith.constant dense<0.000000e+00> : vector<50x16xf32>
    %7 = tpu.matmul %5, %6, %cst_8 {dimension_numbers = #tpu.dot_dimension_numbers<[1], [0], [0], [1], [0, 0, 1, 1], [], []>} : vector<50x256xbf16>, vector<256x16xbf16>, vector<50x16xf32> -> vector<50x16xf32>
    %8 = arith.maximumf %3, %7 : vector<50x16xf32>
    %c2 = arith.constant 2 : index
    %c0_9 = arith.constant 0 : index
    %c0_10 = arith.constant 0 : index
    %9 = vector.load %arg1[%c2, %c0_9, %c0_10] : memref<4x50x256xbf16, #tpu.memory_space<vmem>>, vector<1x50x256xbf16>
    %10 = vector.shape_cast %9 : vector<1x50x256xbf16> to vector<50x256xbf16>
    %c0_11 = arith.constant 0 : index
    %c0_12 = arith.constant 0 : index
    %11 = vector.load %arg2[%c0_11, %c0_12] : memref<256x16xbf16, #tpu.memory_space<vmem>>, vector<256x16xbf16>
    %cst_13 = arith.constant dense<0.000000e+00> : vector<50x16xf32>
    %12 = tpu.matmul %10, %11, %cst_13 {dimension_numbers = #tpu.dot_dimension_numbers<[1], [0], [0], [1], [0, 0, 1, 1], [], []>} : vector<50x256xbf16>, vector<256x16xbf16>, vector<50x16xf32> -> vector<50x16xf32>
    %13 = arith.maximumf %8, %12 : vector<50x16xf32>
    %c3 = arith.constant 3 : index
    %c0_14 = arith.constant 0 : index
    %c0_15 = arith.constant 0 : index
    %14 = vector.load %arg1[%c3, %c0_14, %c0_15] : memref<4x50x256xbf16, #tpu.memory_space<vmem>>, vector<1x50x256xbf16>
    %15 = vector.shape_cast %14 : vector<1x50x256xbf16> to vector<50x256xbf16>
    %c0_16 = arith.constant 0 : index
    %c0_17 = arith.constant 0 : index
    %16 = vector.load %arg2[%c0_16, %c0_17] : memref<256x16xbf16, #tpu.memory_space<vmem>>, vector<256x16xbf16>
    %cst_18 = arith.constant dense<0.000000e+00> : vector<50x16xf32>
    %17 = tpu.matmul %15, %16, %cst_18 {dimension_numbers = #tpu.dot_dimension_numbers<[1], [0], [0], [1], [0, 0, 1, 1], [], []>} : vector<50x256xbf16>, vector<256x16xbf16>, vector<50x16xf32> -> vector<50x16xf32>
    %18 = arith.maximumf %13, %17 : vector<50x16xf32>
    %c0_19 = arith.constant 0 : index
    %c0_20 = arith.constant 0 : index
    %19 = vector.load %arg3[%c0_19, %c0_20] : memref<1x16xf32, #tpu.memory_space<vmem>>, vector<1x16xf32>
    %20 = vector.broadcast %19 : vector<1x16xf32> to vector<50x16xf32>
    %21 = arith.addf %18, %20 : vector<50x16xf32>
    %cst_21 = arith.constant 0.000000e+00 : f32
    %22 = vector.broadcast %cst_21 : f32 to vector<50x16xf32>
    %23 = arith.maximumf %21, %22 : vector<50x16xf32>
    %24 = arith.truncf %23 : vector<50x16xf32> to vector<50x16xbf16>
    %cst_22 = arith.constant 0.000000e+00 : f32
    %25 = vector.broadcast %cst_22 : f32 to vector<2x120xf32>
    %26 = vector.extract_strided_slice %24 {offsets = [0, 0], sizes = [2, 16], strides = [1, 1]} : vector<50x16xbf16> to vector<2x16xbf16>
    %c0_23 = arith.constant 0 : index
    %c0_24 = arith.constant 0 : index
    %c0_25 = arith.constant 0 : index
    %27 = vector.load %arg4[%c0_23, %c0_24, %c0_25] : memref<25x16x120xbf16, #tpu.memory_space<vmem>>, vector<1x16x120xbf16>
    %28 = vector.shape_cast %27 : vector<1x16x120xbf16> to vector<16x120xbf16>
    %cst_26 = arith.constant dense<0.000000e+00> : vector<2x120xf32>
    %29 = tpu.matmul %26, %28, %cst_26 {dimension_numbers = #tpu.dot_dimension_numbers<[1], [0], [0], [1], [0, 0, 1, 1], [], []>} : vector<2x16xbf16>, vector<16x120xbf16>, vector<2x120xf32> -> vector<2x120xf32>
    %30 = arith.addf %25, %29 : vector<2x120xf32>
    %31 = vector.extract_strided_slice %24 {offsets = [2, 0], sizes = [2, 16], strides = [1, 1]} : vector<50x16xbf16> to vector<2x16xbf16>
    %c1_27 = arith.constant 1 : index
    %c0_28 = arith.constant 0 : index
    %c0_29 = arith.constant 0 : index
    %32 = vector.load %arg4[%c1_27, %c0_28, %c0_29] : memref<25x16x120xbf16, #tpu.memory_space<vmem>>, vector<1x16x120xbf16>
    %33 = vector.shape_cast %32 : vector<1x16x120xbf16> to vector<16x120xbf16>
    %cst_30 = arith.constant dense<0.000000e+00> : vector<2x120xf32>
    %34 = tpu.matmul %31, %33, %cst_30 {dimension_numbers = #tpu.dot_dimension_numbers<[1], [0], [0], [1], [0, 0, 1, 1], [], []>} : vector<2x16xbf16>, vector<16x120xbf16>, vector<2x120xf32> -> vector<2x120xf32>
    %35 = arith.addf %30, %34 : vector<2x120xf32>
    %36 = vector.extract_strided_slice %24 {offsets = [4, 0], sizes = [2, 16], strides = [1, 1]} : vector<50x16xbf16> to vector<2x16xbf16>
    %c2_31 = arith.constant 2 : index
    %c0_32 = arith.constant 0 : index
    %c0_33 = arith.constant 0 : index
    %37 = vector.load %arg4[%c2_31, %c0_32, %c0_33] : memref<25x16x120xbf16, #tpu.memory_space<vmem>>, vector<1x16x120xbf16>
    %38 = vector.shape_cast %37 : vector<1x16x120xbf16> to vector<16x120xbf16>
    %cst_34 = arith.constant dense<0.000000e+00> : vector<2x120xf32>
    %39 = tpu.matmul %36, %38, %cst_34 {dimension_numbers = #tpu.dot_dimension_numbers<[1], [0], [0], [1], [0, 0, 1, 1], [], []>} : vector<2x16xbf16>, vector<16x120xbf16>, vector<2x120xf32> -> vector<2x120xf32>
    %40 = arith.addf %35, %39 : vector<2x120xf32>
    %41 = vector.extract_strided_slice %24 {offsets = [6, 0], sizes = [2, 16], strides = [1, 1]} : vector<50x16xbf16> to vector<2x16xbf16>
    %c3_35 = arith.constant 3 : index
    %c0_36 = arith.constant 0 : index
    %c0_37 = arith.constant 0 : index
    %42 = vector.load %arg4[%c3_35, %c0_36, %c0_37] : memref<25x16x120xbf16, #tpu.memory_space<vmem>>, vector<1x16x120xbf16>
    %43 = vector.shape_cast %42 : vector<1x16x120xbf16> to vector<16x120xbf16>
    %cst_38 = arith.constant dense<0.000000e+00> : vector<2x120xf32>
    %44 = tpu.matmul %41, %43, %cst_38 {dimension_numbers = #tpu.dot_dimension_numbers<[1], [0], [0], [1], [0, 0, 1, 1], [], []>} : vector<2x16xbf16>, vector<16x120xbf16>, vector<2x120xf32> -> vector<2x120xf32>
    %45 = arith.addf %40, %44 : vector<2x120xf32>
    %46 = vector.extract_strided_slice %24 {offsets = [8, 0], sizes = [2, 16], strides = [1, 1]} : vector<50x16xbf16> to vector<2x16xbf16>
    %c4 = arith.constant 4 : index
    %c0_39 = arith.constant 0 : index
    %c0_40 = arith.constant 0 : index
    %47 = vector.load %arg4[%c4, %c0_39, %c0_40] : memref<25x16x120xbf16, #tpu.memory_space<vmem>>, vector<1x16x120xbf16>
    %48 = vector.shape_cast %47 : vector<1x16x120xbf16> to vector<16x120xbf16>
    %cst_41 = arith.constant dense<0.000000e+00> : vector<2x120xf32>
    %49 = tpu.matmul %46, %48, %cst_41 {dimension_numbers = #tpu.dot_dimension_numbers<[1], [0], [0], [1], [0, 0, 1, 1], [], []>} : vector<2x16xbf16>, vector<16x120xbf16>, vector<2x120xf32> -> vector<2x120xf32>
    %50 = arith.addf %45, %49 : vector<2x120xf32>
    %51 = vector.extract_strided_slice %24 {offsets = [10, 0], sizes = [2, 16], strides = [1, 1]} : vector<50x16xbf16> to vector<2x16xbf16>
    %c5 = arith.constant 5 : index
    %c0_42 = arith.constant 0 : index
    %c0_43 = arith.constant 0 : index
    %52 = vector.load %arg4[%c5, %c0_42, %c0_43] : memref<25x16x120xbf16, #tpu.memory_space<vmem>>, vector<1x16x120xbf16>
    %53 = vector.shape_cast %52 : vector<1x16x120xbf16> to vector<16x120xbf16>
    %cst_44 = arith.constant dense<0.000000e+00> : vector<2x120xf32>
    %54 = tpu.matmul %51, %53, %cst_44 {dimension_numbers = #tpu.dot_dimension_numbers<[1], [0], [0], [1], [0, 0, 1, 1], [], []>} : vector<2x16xbf16>, vector<16x120xbf16>, vector<2x120xf32> -> vector<2x120xf32>
    %55 = arith.addf %50, %54 : vector<2x120xf32>
    %56 = vector.extract_strided_slice %24 {offsets = [12, 0], sizes = [2, 16], strides = [1, 1]} : vector<50x16xbf16> to vector<2x16xbf16>
    %c6 = arith.constant 6 : index
    %c0_45 = arith.constant 0 : index
    %c0_46 = arith.constant 0 : index
    %57 = vector.load %arg4[%c6, %c0_45, %c0_46] : memref<25x16x120xbf16, #tpu.memory_space<vmem>>, vector<1x16x120xbf16>
    %58 = vector.shape_cast %57 : vector<1x16x120xbf16> to vector<16x120xbf16>
    %cst_47 = arith.constant dense<0.000000e+00> : vector<2x120xf32>
    %59 = tpu.matmul %56, %58, %cst_47 {dimension_numbers = #tpu.dot_dimension_numbers<[1], [0], [0], [1], [0, 0, 1, 1], [], []>} : vector<2x16xbf16>, vector<16x120xbf16>, vector<2x120xf32> -> vector<2x120xf32>
    %60 = arith.addf %55, %59 : vector<2x120xf32>
    %61 = vector.extract_strided_slice %24 {offsets = [14, 0], sizes = [2, 16], strides = [1, 1]} : vector<50x16xbf16> to vector<2x16xbf16>
    %c7 = arith.constant 7 : index
    %c0_48 = arith.constant 0 : index
    %c0_49 = arith.constant 0 : index
    %62 = vector.load %arg4[%c7, %c0_48, %c0_49] : memref<25x16x120xbf16, #tpu.memory_space<vmem>>, vector<1x16x120xbf16>
    %63 = vector.shape_cast %62 : vector<1x16x120xbf16> to vector<16x120xbf16>
    %cst_50 = arith.constant dense<0.000000e+00> : vector<2x120xf32>
    %64 = tpu.matmul %61, %63, %cst_50 {dimension_numbers = #tpu.dot_dimension_numbers<[1], [0], [0], [1], [0, 0, 1, 1], [], []>} : vector<2x16xbf16>, vector<16x120xbf16>, vector<2x120xf32> -> vector<2x120xf32>
    %65 = arith.addf %60, %64 : vector<2x120xf32>
    %66 = vector.extract_strided_slice %24 {offsets = [16, 0], sizes = [2, 16], strides = [1, 1]} : vector<50x16xbf16> to vector<2x16xbf16>
    %c8 = arith.constant 8 : index
    %c0_51 = arith.constant 0 : index
    %c0_52 = arith.constant 0 : index
    %67 = vector.load %arg4[%c8, %c0_51, %c0_52] : memref<25x16x120xbf16, #tpu.memory_space<vmem>>, vector<1x16x120xbf16>
    %68 = vector.shape_cast %67 : vector<1x16x120xbf16> to vector<16x120xbf16>
    %cst_53 = arith.constant dense<0.000000e+00> : vector<2x120xf32>
    %69 = tpu.matmul %66, %68, %cst_53 {dimension_numbers = #tpu.dot_dimension_numbers<[1], [0], [0], [1], [0, 0, 1, 1], [], []>} : vector<2x16xbf16>, vector<16x120xbf16>, vector<2x120xf32> -> vector<2x120xf32>
    %70 = arith.addf %65, %69 : vector<2x120xf32>
    %71 = vector.extract_strided_slice %24 {offsets = [18, 0], sizes = [2, 16], strides = [1, 1]} : vector<50x16xbf16> to vector<2x16xbf16>
    %c9 = arith.constant 9 : index
    %c0_54 = arith.constant 0 : index
    %c0_55 = arith.constant 0 : index
    %72 = vector.load %arg4[%c9, %c0_54, %c0_55] : memref<25x16x120xbf16, #tpu.memory_space<vmem>>, vector<1x16x120xbf16>
    %73 = vector.shape_cast %72 : vector<1x16x120xbf16> to vector<16x120xbf16>
    %cst_56 = arith.constant dense<0.000000e+00> : vector<2x120xf32>
    %74 = tpu.matmul %71, %73, %cst_56 {dimension_numbers = #tpu.dot_dimension_numbers<[1], [0], [0], [1], [0, 0, 1, 1], [], []>} : vector<2x16xbf16>, vector<16x120xbf16>, vector<2x120xf32> -> vector<2x120xf32>
    %75 = arith.addf %70, %74 : vector<2x120xf32>
    %76 = vector.extract_strided_slice %24 {offsets = [20, 0], sizes = [2, 16], strides = [1, 1]} : vector<50x16xbf16> to vector<2x16xbf16>
    %c10 = arith.constant 10 : index
    %c0_57 = arith.constant 0 : index
    %c0_58 = arith.constant 0 : index
    %77 = vector.load %arg4[%c10, %c0_57, %c0_58] : memref<25x16x120xbf16, #tpu.memory_space<vmem>>, vector<1x16x120xbf16>
    %78 = vector.shape_cast %77 : vector<1x16x120xbf16> to vector<16x120xbf16>
    %cst_59 = arith.constant dense<0.000000e+00> : vector<2x120xf32>
    %79 = tpu.matmul %76, %78, %cst_59 {dimension_numbers = #tpu.dot_dimension_numbers<[1], [0], [0], [1], [0, 0, 1, 1], [], []>} : vector<2x16xbf16>, vector<16x120xbf16>, vector<2x120xf32> -> vector<2x120xf32>
    %80 = arith.addf %75, %79 : vector<2x120xf32>
    %81 = vector.extract_strided_slice %24 {offsets = [22, 0], sizes = [2, 16], strides = [1, 1]} : vector<50x16xbf16> to vector<2x16xbf16>
    %c11 = arith.constant 11 : index
    %c0_60 = arith.constant 0 : index
    %c0_61 = arith.constant 0 : index
    %82 = vector.load %arg4[%c11, %c0_60, %c0_61] : memref<25x16x120xbf16, #tpu.memory_space<vmem>>, vector<1x16x120xbf16>
    %83 = vector.shape_cast %82 : vector<1x16x120xbf16> to vector<16x120xbf16>
    %cst_62 = arith.constant dense<0.000000e+00> : vector<2x120xf32>
    %84 = tpu.matmul %81, %83, %cst_62 {dimension_numbers = #tpu.dot_dimension_numbers<[1], [0], [0], [1], [0, 0, 1, 1], [], []>} : vector<2x16xbf16>, vector<16x120xbf16>, vector<2x120xf32> -> vector<2x120xf32>
    %85 = arith.addf %80, %84 : vector<2x120xf32>
    %86 = vector.extract_strided_slice %24 {offsets = [24, 0], sizes = [2, 16], strides = [1, 1]} : vector<50x16xbf16> to vector<2x16xbf16>
    %c12 = arith.constant 12 : index
    %c0_63 = arith.constant 0 : index
    %c0_64 = arith.constant 0 : index
    %87 = vector.load %arg4[%c12, %c0_63, %c0_64] : memref<25x16x120xbf16, #tpu.memory_space<vmem>>, vector<1x16x120xbf16>
    %88 = vector.shape_cast %87 : vector<1x16x120xbf16> to vector<16x120xbf16>
    %cst_65 = arith.constant dense<0.000000e+00> : vector<2x120xf32>
    %89 = tpu.matmul %86, %88, %cst_65 {dimension_numbers = #tpu.dot_dimension_numbers<[1], [0], [0], [1], [0, 0, 1, 1], [], []>} : vector<2x16xbf16>, vector<16x120xbf16>, vector<2x120xf32> -> vector<2x120xf32>
    %90 = arith.addf %85, %89 : vector<2x120xf32>
    %91 = vector.extract_strided_slice %24 {offsets = [26, 0], sizes = [2, 16], strides = [1, 1]} : vector<50x16xbf16> to vector<2x16xbf16>
    %c13 = arith.constant 13 : index
    %c0_66 = arith.constant 0 : index
    %c0_67 = arith.constant 0 : index
    %92 = vector.load %arg4[%c13, %c0_66, %c0_67] : memref<25x16x120xbf16, #tpu.memory_space<vmem>>, vector<1x16x120xbf16>
    %93 = vector.shape_cast %92 : vector<1x16x120xbf16> to vector<16x120xbf16>
    %cst_68 = arith.constant dense<0.000000e+00> : vector<2x120xf32>
    %94 = tpu.matmul %91, %93, %cst_68 {dimension_numbers = #tpu.dot_dimension_numbers<[1], [0], [0], [1], [0, 0, 1, 1], [], []>} : vector<2x16xbf16>, vector<16x120xbf16>, vector<2x120xf32> -> vector<2x120xf32>
    %95 = arith.addf %90, %94 : vector<2x120xf32>
    %96 = vector.extract_strided_slice %24 {offsets = [28, 0], sizes = [2, 16], strides = [1, 1]} : vector<50x16xbf16> to vector<2x16xbf16>
    %c14 = arith.constant 14 : index
    %c0_69 = arith.constant 0 : index
    %c0_70 = arith.constant 0 : index
    %97 = vector.load %arg4[%c14, %c0_69, %c0_70] : memref<25x16x120xbf16, #tpu.memory_space<vmem>>, vector<1x16x120xbf16>
    %98 = vector.shape_cast %97 : vector<1x16x120xbf16> to vector<16x120xbf16>
    %cst_71 = arith.constant dense<0.000000e+00> : vector<2x120xf32>
    %99 = tpu.matmul %96, %98, %cst_71 {dimension_numbers = #tpu.dot_dimension_numbers<[1], [0], [0], [1], [0, 0, 1, 1], [], []>} : vector<2x16xbf16>, vector<16x120xbf16>, vector<2x120xf32> -> vector<2x120xf32>
    %100 = arith.addf %95, %99 : vector<2x120xf32>
    %101 = vector.extract_strided_slice %24 {offsets = [30, 0], sizes = [2, 16], strides = [1, 1]} : vector<50x16xbf16> to vector<2x16xbf16>
    %c15 = arith.constant 15 : index
    %c0_72 = arith.constant 0 : index
    %c0_73 = arith.constant 0 : index
    %102 = vector.load %arg4[%c15, %c0_72, %c0_73] : memref<25x16x120xbf16, #tpu.memory_space<vmem>>, vector<1x16x120xbf16>
    %103 = vector.shape_cast %102 : vector<1x16x120xbf16> to vector<16x120xbf16>
    %cst_74 = arith.constant dense<0.000000e+00> : vector<2x120xf32>
    %104 = tpu.matmul %101, %103, %cst_74 {dimension_numbers = #tpu.dot_dimension_numbers<[1], [0], [0], [1], [0, 0, 1, 1], [], []>} : vector<2x16xbf16>, vector<16x120xbf16>, vector<2x120xf32> -> vector<2x120xf32>
    %105 = arith.addf %100, %104 : vector<2x120xf32>
    %106 = vector.extract_strided_slice %24 {offsets = [32, 0], sizes = [2, 16], strides = [1, 1]} : vector<50x16xbf16> to vector<2x16xbf16>
    %c16 = arith.constant 16 : index
    %c0_75 = arith.constant 0 : index
    %c0_76 = arith.constant 0 : index
    %107 = vector.load %arg4[%c16, %c0_75, %c0_76] : memref<25x16x120xbf16, #tpu.memory_space<vmem>>, vector<1x16x120xbf16>
    %108 = vector.shape_cast %107 : vector<1x16x120xbf16> to vector<16x120xbf16>
    %cst_77 = arith.constant dense<0.000000e+00> : vector<2x120xf32>
    %109 = tpu.matmul %106, %108, %cst_77 {dimension_numbers = #tpu.dot_dimension_numbers<[1], [0], [0], [1], [0, 0, 1, 1], [], []>} : vector<2x16xbf16>, vector<16x120xbf16>, vector<2x120xf32> -> vector<2x120xf32>
    %110 = arith.addf %105, %109 : vector<2x120xf32>
    %111 = vector.extract_strided_slice %24 {offsets = [34, 0], sizes = [2, 16], strides = [1, 1]} : vector<50x16xbf16> to vector<2x16xbf16>
    %c17 = arith.constant 17 : index
    %c0_78 = arith.constant 0 : index
    %c0_79 = arith.constant 0 : index
    %112 = vector.load %arg4[%c17, %c0_78, %c0_79] : memref<25x16x120xbf16, #tpu.memory_space<vmem>>, vector<1x16x120xbf16>
    %113 = vector.shape_cast %112 : vector<1x16x120xbf16> to vector<16x120xbf16>
    %cst_80 = arith.constant dense<0.000000e+00> : vector<2x120xf32>
    %114 = tpu.matmul %111, %113, %cst_80 {dimension_numbers = #tpu.dot_dimension_numbers<[1], [0], [0], [1], [0, 0, 1, 1], [], []>} : vector<2x16xbf16>, vector<16x120xbf16>, vector<2x120xf32> -> vector<2x120xf32>
    %115 = arith.addf %110, %114 : vector<2x120xf32>
    %116 = vector.extract_strided_slice %24 {offsets = [36, 0], sizes = [2, 16], strides = [1, 1]} : vector<50x16xbf16> to vector<2x16xbf16>
    %c18 = arith.constant 18 : index
    %c0_81 = arith.constant 0 : index
    %c0_82 = arith.constant 0 : index
    %117 = vector.load %arg4[%c18, %c0_81, %c0_82] : memref<25x16x120xbf16, #tpu.memory_space<vmem>>, vector<1x16x120xbf16>
    %118 = vector.shape_cast %117 : vector<1x16x120xbf16> to vector<16x120xbf16>
    %cst_83 = arith.constant dense<0.000000e+00> : vector<2x120xf32>
    %119 = tpu.matmul %116, %118, %cst_83 {dimension_numbers = #tpu.dot_dimension_numbers<[1], [0], [0], [1], [0, 0, 1, 1], [], []>} : vector<2x16xbf16>, vector<16x120xbf16>, vector<2x120xf32> -> vector<2x120xf32>
    %120 = arith.addf %115, %119 : vector<2x120xf32>
    %121 = vector.extract_strided_slice %24 {offsets = [38, 0], sizes = [2, 16], strides = [1, 1]} : vector<50x16xbf16> to vector<2x16xbf16>
    %c19 = arith.constant 19 : index
    %c0_84 = arith.constant 0 : index
    %c0_85 = arith.constant 0 : index
    %122 = vector.load %arg4[%c19, %c0_84, %c0_85] : memref<25x16x120xbf16, #tpu.memory_space<vmem>>, vector<1x16x120xbf16>
    %123 = vector.shape_cast %122 : vector<1x16x120xbf16> to vector<16x120xbf16>
    %cst_86 = arith.constant dense<0.000000e+00> : vector<2x120xf32>
    %124 = tpu.matmul %121, %123, %cst_86 {dimension_numbers = #tpu.dot_dimension_numbers<[1], [0], [0], [1], [0, 0, 1, 1], [], []>} : vector<2x16xbf16>, vector<16x120xbf16>, vector<2x120xf32> -> vector<2x120xf32>
    %125 = arith.addf %120, %124 : vector<2x120xf32>
    %126 = vector.extract_strided_slice %24 {offsets = [40, 0], sizes = [2, 16], strides = [1, 1]} : vector<50x16xbf16> to vector<2x16xbf16>
    %c20 = arith.constant 20 : index
    %c0_87 = arith.constant 0 : index
    %c0_88 = arith.constant 0 : index
    %127 = vector.load %arg4[%c20, %c0_87, %c0_88] : memref<25x16x120xbf16, #tpu.memory_space<vmem>>, vector<1x16x120xbf16>
    %128 = vector.shape_cast %127 : vector<1x16x120xbf16> to vector<16x120xbf16>
    %cst_89 = arith.constant dense<0.000000e+00> : vector<2x120xf32>
    %129 = tpu.matmul %126, %128, %cst_89 {dimension_numbers = #tpu.dot_dimension_numbers<[1], [0], [0], [1], [0, 0, 1, 1], [], []>} : vector<2x16xbf16>, vector<16x120xbf16>, vector<2x120xf32> -> vector<2x120xf32>
    %130 = arith.addf %125, %129 : vector<2x120xf32>
    %131 = vector.extract_strided_slice %24 {offsets = [42, 0], sizes = [2, 16], strides = [1, 1]} : vector<50x16xbf16> to vector<2x16xbf16>
    %c21 = arith.constant 21 : index
    %c0_90 = arith.constant 0 : index
    %c0_91 = arith.constant 0 : index
    %132 = vector.load %arg4[%c21, %c0_90, %c0_91] : memref<25x16x120xbf16, #tpu.memory_space<vmem>>, vector<1x16x120xbf16>
    %133 = vector.shape_cast %132 : vector<1x16x120xbf16> to vector<16x120xbf16>
    %cst_92 = arith.constant dense<0.000000e+00> : vector<2x120xf32>
    %134 = tpu.matmul %131, %133, %cst_92 {dimension_numbers = #tpu.dot_dimension_numbers<[1], [0], [0], [1], [0, 0, 1, 1], [], []>} : vector<2x16xbf16>, vector<16x120xbf16>, vector<2x120xf32> -> vector<2x120xf32>
    %135 = arith.addf %130, %134 : vector<2x120xf32>
    %136 = vector.extract_strided_slice %24 {offsets = [44, 0], sizes = [2, 16], strides = [1, 1]} : vector<50x16xbf16> to vector<2x16xbf16>
    %c22 = arith.constant 22 : index
    %c0_93 = arith.constant 0 : index
    %c0_94 = arith.constant 0 : index
    %137 = vector.load %arg4[%c22, %c0_93, %c0_94] : memref<25x16x120xbf16, #tpu.memory_space<vmem>>, vector<1x16x120xbf16>
    %138 = vector.shape_cast %137 : vector<1x16x120xbf16> to vector<16x120xbf16>
    %cst_95 = arith.constant dense<0.000000e+00> : vector<2x120xf32>
    %139 = tpu.matmul %136, %138, %cst_95 {dimension_numbers = #tpu.dot_dimension_numbers<[1], [0], [0], [1], [0, 0, 1, 1], [], []>} : vector<2x16xbf16>, vector<16x120xbf16>, vector<2x120xf32> -> vector<2x120xf32>
    %140 = arith.addf %135, %139 : vector<2x120xf32>
    %141 = vector.extract_strided_slice %24 {offsets = [46, 0], sizes = [2, 16], strides = [1, 1]} : vector<50x16xbf16> to vector<2x16xbf16>
    %c23 = arith.constant 23 : index
    %c0_96 = arith.constant 0 : index
    %c0_97 = arith.constant 0 : index
    %142 = vector.load %arg4[%c23, %c0_96, %c0_97] : memref<25x16x120xbf16, #tpu.memory_space<vmem>>, vector<1x16x120xbf16>
    %143 = vector.shape_cast %142 : vector<1x16x120xbf16> to vector<16x120xbf16>
    %cst_98 = arith.constant dense<0.000000e+00> : vector<2x120xf32>
    %144 = tpu.matmul %141, %143, %cst_98 {dimension_numbers = #tpu.dot_dimension_numbers<[1], [0], [0], [1], [0, 0, 1, 1], [], []>} : vector<2x16xbf16>, vector<16x120xbf16>, vector<2x120xf32> -> vector<2x120xf32>
    %145 = arith.addf %140, %144 : vector<2x120xf32>
    %146 = vector.extract_strided_slice %24 {offsets = [48, 0], sizes = [2, 16], strides = [1, 1]} : vector<50x16xbf16> to vector<2x16xbf16>
    %c24 = arith.constant 24 : index
    %c0_99 = arith.constant 0 : index
    %c0_100 = arith.constant 0 : index
    %147 = vector.load %arg4[%c24, %c0_99, %c0_100] : memref<25x16x120xbf16, #tpu.memory_space<vmem>>, vector<1x16x120xbf16>
    %148 = vector.shape_cast %147 : vector<1x16x120xbf16> to vector<16x120xbf16>
    %cst_101 = arith.constant dense<0.000000e+00> : vector<2x120xf32>
    %149 = tpu.matmul %146, %148, %cst_101 {dimension_numbers = #tpu.dot_dimension_numbers<[1], [0], [0], [1], [0, 0, 1, 1], [], []>} : vector<2x16xbf16>, vector<16x120xbf16>, vector<2x120xf32> -> vector<2x120xf32>
    %150 = arith.addf %145, %149 : vector<2x120xf32>
    %c0_102 = arith.constant 0 : index
    %c0_103 = arith.constant 0 : index
    %151 = vector.load %arg5[%c0_102, %c0_103] : memref<1x120xf32, #tpu.memory_space<vmem>>, vector<1x120xf32>
    %152 = vector.broadcast %151 : vector<1x120xf32> to vector<2x120xf32>
    %153 = arith.addf %150, %152 : vector<2x120xf32>
    %cst_104 = arith.constant 0.000000e+00 : f32
    %154 = vector.broadcast %cst_104 : f32 to vector<2x120xf32>
    %155 = arith.maximumf %153, %154 : vector<2x120xf32>
    %156 = arith.truncf %155 : vector<2x120xf32> to vector<2x120xbf16>
    %c0_105 = arith.constant 0 : index
    %c0_106 = arith.constant 0 : index
    %157 = vector.load %arg6[%c0_105, %c0_106] : memref<120x84xbf16, #tpu.memory_space<vmem>>, vector<120x84xbf16>
    %cst_107 = arith.constant dense<0.000000e+00> : vector<2x84xf32>
    %158 = tpu.matmul %156, %157, %cst_107 {dimension_numbers = #tpu.dot_dimension_numbers<[1], [0], [0], [1], [0, 0, 1, 1], [], []>} : vector<2x120xbf16>, vector<120x84xbf16>, vector<2x84xf32> -> vector<2x84xf32>
    %c0_108 = arith.constant 0 : index
    %c0_109 = arith.constant 0 : index
    %159 = vector.load %arg7[%c0_108, %c0_109] : memref<1x84xf32, #tpu.memory_space<vmem>>, vector<1x84xf32>
    %160 = vector.broadcast %159 : vector<1x84xf32> to vector<2x84xf32>
    %161 = arith.addf %158, %160 : vector<2x84xf32>
    %cst_110 = arith.constant 0.000000e+00 : f32
    %162 = vector.broadcast %cst_110 : f32 to vector<2x84xf32>
    %163 = arith.maximumf %161, %162 : vector<2x84xf32>
    %164 = arith.truncf %163 : vector<2x84xf32> to vector<2x84xbf16>
    %c0_111 = arith.constant 0 : index
    %c0_112 = arith.constant 0 : index
    %165 = vector.load %arg8[%c0_111, %c0_112] : memref<84x10xbf16, #tpu.memory_space<vmem>>, vector<84x10xbf16>
    %cst_113 = arith.constant dense<0.000000e+00> : vector<2x10xf32>
    %166 = tpu.matmul %164, %165, %cst_113 {dimension_numbers = #tpu.dot_dimension_numbers<[1], [0], [0], [1], [0, 0, 1, 1], [], []>} : vector<2x84xbf16>, vector<84x10xbf16>, vector<2x10xf32> -> vector<2x10xf32>
    %c0_114 = arith.constant 0 : index
    %c0_115 = arith.constant 0 : index
    %167 = vector.load %arg9[%c0_114, %c0_115] : memref<1x10xf32, #tpu.memory_space<vmem>>, vector<1x10xf32>
    %168 = vector.broadcast %167 : vector<1x10xf32> to vector<2x10xf32>
    %169 = arith.addf %166, %168 : vector<2x10xf32>
    %c0_116 = arith.constant 0 : index
    %c0_117 = arith.constant 0 : index
    %170 = vector.load %arg10[%c0_116, %c0_117] : memref<2x10xf32, #tpu.memory_space<vmem>>, vector<2x10xf32>
    tpu.vector_store %arg10[%c0_116, %c0_117], %169 {strides = array<i32>} : memref<2x10xf32, #tpu.memory_space<vmem>>, vector<2x10xf32>,
    return
  }
  func.func @transform_0(%arg0: i32) -> (i32, i32, i32) {
    %c0_i32 = arith.constant 0 : i32
    %c0_i32_0 = arith.constant 0 : i32
    %c0_i32_1 = arith.constant 0 : i32
    %c0_i32_2 = arith.constant 0 : i32
    return %c0_i32, %c0_i32_0, %c0_i32_1 : i32, i32, i32
  }
  func.func @transform_1(%arg0: i32) -> (i32, i32) {
    %c0_i32 = arith.constant 0 : i32
    %c0_i32_0 = arith.constant 0 : i32
    %c0_i32_1 = arith.constant 0 : i32
    return %c0_i32, %c0_i32_0 : i32, i32
  }
  func.func @transform_2(%arg0: i32) -> (i32, i32) {
    %c0_i32 = arith.constant 0 : i32
    %c0_i32_0 = arith.constant 0 : i32
    %c0_i32_1 = arith.constant 0 : i32
    return %c0_i32, %c0_i32_0 : i32, i32
  }
  func.func @transform_3(%arg0: i32) -> (i32, i32, i32) {
    %c0_i32 = arith.constant 0 : i32
    %c0_i32_0 = arith.constant 0 : i32
    %c0_i32_1 = arith.constant 0 : i32
    %c0_i32_2 = arith.constant 0 : i32
    return %c0_i32, %c0_i32_0, %c0_i32_1 : i32, i32, i32
  }
  func.func @transform_4(%arg0: i32) -> (i32, i32) {
    %c0_i32 = arith.constant 0 : i32
    %c0_i32_0 = arith.constant 0 : i32
    %c0_i32_1 = arith.constant 0 : i32
    return %c0_i32, %c0_i32_0 : i32, i32
  }
  func.func @transform_5(%arg0: i32) -> (i32, i32) {
    %c0_i32 = arith.constant 0 : i32
    %c0_i32_0 = arith.constant 0 : i32
    %c0_i32_1 = arith.constant 0 : i32
    return %c0_i32, %c0_i32_0 : i32, i32
  }
  func.func @transform_6(%arg0: i32) -> (i32, i32) {
    %c0_i32 = arith.constant 0 : i32
    %c0_i32_0 = arith.constant 0 : i32
    %c0_i32_1 = arith.constant 0 : i32
    return %c0_i32, %c0_i32_0 : i32, i32
  }
  func.func @transform_7(%arg0: i32) -> (i32, i32) {
    %c0_i32 = arith.constant 0 : i32
    %c0_i32_0 = arith.constant 0 : i32
    %c0_i32_1 = arith.constant 0 : i32
    return %c0_i32, %c0_i32_0 : i32, i32
  }
  func.func @transform_8(%arg0: i32) -> (i32, i32) {
    %c0_i32 = arith.constant 0 : i32
    %c0_i32_0 = arith.constant 0 : i32
    %c0_i32_1 = arith.constant 0 : i32
    return %c0_i32, %c0_i32_0 : i32, i32
  }
  func.func @transform_9(%arg0: i32) -> (i32, i32) {
    %c0_i32 = arith.constant 0 : i32
    %c0_i32_0 = arith.constant 0 : i32
    %c0_i32_1 = arith.constant 0 : i32
    return %c0_i32, %c0_i32_0 : i32, i32
  }
}

</mosaic_0001>

<llo_original>
// kernel: net_forward.2
$region0: #{net_forward.2}
  #allocation0 [shape = 'u32[]', space=smem, size = 0x4, offset = 0x4, fixed_abs, tag = 'smem constant byte address 0x4 - core index']
  #allocation1 [shape = 'u32[144,128]{1,0:T(1,128)}', space=vmem, size = 0x12000, scoped, tag = 'internal scratch']
  %s0 = inlined_call_operand.vmem [shape: bf16[4,128,392], index: 0, kind: input, shape index: {}]
  %s1 = inlined_call_operand.vmem [shape: bf16[6,128], index: 1, kind: input, shape index: {}]
  %s2 = inlined_call_operand.vmem [shape: f32[6,1], index: 2, kind: input, shape index: {}]
  %s3 = inlined_call_operand.vmem [shape: f32[6,392], index: 3, kind: output, shape index: {}]
  %s4 = sld [smem:[#allocation0]]
  $region22: #{net_forward.2} parent=0
    _
  %s6 = ssub.s32 1, %s4
  %s7 = scalar_select 0, %s6, %s4
  // Predicated region
  $region2: #{net_forward.2} parent=0 // pred_check
    _
  $region3: #{net_forward.2} parent=0 // pred_check_branch
    %9 = sbr.rel (0) target = $region5
  $region4: #{net_forward.2} parent=0 // pred_region
    _
  $region5: #{net_forward.2} parent=0 // pred_fallthru
    _
  // Predicated region
  $region6: #{net_forward.2} parent=0 // pred_check
    _
  $region7: #{net_forward.2} parent=0 // pred_check_branch
    %11 = sbr.rel (0) target = $region9
  $region8: #{net_forward.2} parent=0 // pred_region
    _
  $region9: #{net_forward.2} parent=0 // pred_fallthru
    _
  // Predicated region
  $region10: #{net_forward.2} parent=0 // pred_check
    _
  $region11: #{net_forward.2} parent=0 // pred_check_branch
    %13 = sbr.rel (0) target = $region13
  $region12: #{net_forward.2} parent=0 // pred_region
    _
  $region13: #{net_forward.2} parent=0 // pred_fallthru
    _
  %v15 = vld [vmem:[%s1] sm:$0x7]
  %v16 = vld [vmem:[%s0] sm:$0xff]
  %v17 = vld [vmem:[%s0 + $0x8] sm:$0xff]
  %v18 = vld [vmem:[%s0 + $0x10] sm:$0xff]
  %v19 = vld [vmem:[%s0 + $0x18] sm:$0xff]
  %v20 = vld [vmem:[%s0 + $0x20] sm:$0xff]
  %v21 = vld [vmem:[%s0 + $0x28] sm:$0xff]
  %v22 = vld [vmem:[%s0 + $0x30] sm:$0xff]
  %v23 = vld [vmem:[%s0 + $0x38] sm:$0xff]
  %v24 = vld [vmem:[%s0 + $0x40] sm:$0xff]
  %v25 = vld [vmem:[%s0 + $0x48] sm:$0xff]
  %v26 = vld [vmem:[%s0 + $0x50] sm:$0xff]
  %v27 = vld [vmem:[%s0 + $0x58] sm:$0xff]
  %v28 = vld [vmem:[%s0 + $0x60] sm:$0xff]
  %v29 = vld [vmem:[%s0 + $0x68] sm:$0xff]
  %v30 = vld [vmem:[%s0 + $0x70] sm:$0xff]
  %v31 = vld [vmem:[%s0 + $0x78] sm:$0xff]
  %v32 = vld [vmem:[%s0 + $0x80] sm:$0xff]
  %v33 = vld [vmem:[%s0 + $0x88] sm:$0xff]
  %v34 = vld [vmem:[%s0 + $0x90] sm:$0xff]
  %v35 = vld [vmem:[%s0 + $0x98] sm:$0xff]
  %v36 = vld [vmem:[%s0 + $0xa0] sm:$0xff]
  %v37 = vld [vmem:[%s0 + $0xa8] sm:$0xff]
  %v38 = vld [vmem:[%s0 + $0xb0] sm:$0xff]
  %v39 = vld [vmem:[%s0 + $0xb8] sm:$0xff]
  %v40 = vld [vmem:[%s0 + $0xc0] sm:$0xff]
  %v41 = vld [vmem:[%s0 + $0xc8] sm:$0xff]
  %v42 = vld [vmem:[%s0 + $0xd0] sm:$0xff]
  %v43 = vld [vmem:[%s0 + $0xd8] sm:$0xff]
  %v44 = vld [vmem:[%s0 + $0xe0] sm:$0xff]
  %v45 = vld [vmem:[%s0 + $0xe8] sm:$0xff]
  %v46 = vld [vmem:[%s0 + $0xf0] sm:$0xff]
  %v47 = vld [vmem:[%s0 + $0xf8] sm:$0xff]
  %v80 = vunpack.c.l.b16 %v16
  %v81 = vunpack.c.h.b16 %v16
  %v82 = vunpack.c.l.b16 %v17
  %v83 = vunpack.c.h.b16 %v17
  %v84 = vunpack.c.l.b16 %v18
  %v85 = vunpack.c.h.b16 %v18
  %v86 = vunpack.c.l.b16 %v19
  %v87 = vunpack.c.h.b16 %v19
  %v88 = vunpack.c.l.b16 %v20
  %v89 = vunpack.c.h.b16 %v20
  %v90 = vunpack.c.l.b16 %v21
  %v91 = vunpack.c.h.b16 %v21
  %v92 = vunpack.c.l.b16 %v22
  %v93 = vunpack.c.h.b16 %v22
  %v94 = vunpack.c.l.b16 %v23
  %v95 = vunpack.c.h.b16 %v23
  %v96 = vunpack.c.l.b16 %v24
  %v97 = vunpack.c.h.b16 %v24
  %v98 = vunpack.c.l.b16 %v25
  %v99 = vunpack.c.h.b16 %v25
  %v100 = vunpack.c.l.b16 %v26
  %v101 = vunpack.c.h.b16 %v26
  %v102 = vunpack.c.l.b16 %v27
  %v103 = vunpack.c.h.b16 %v27
  %v104 = vunpack.c.l.b16 %v28
  %v105 = vunpack.c.h.b16 %v28
  %v106 = vunpack.c.l.b16 %v29
  %v107 = vunpack.c.h.b16 %v29
  %v108 = vunpack.c.l.b16 %v30
  %v109 = vunpack.c.h.b16 %v30
  %v110 = vunpack.c.l.b16 %v31
  %v111 = vunpack.c.h.b16 %v31
  %v112 = vunpack.c.l.b16 %v32
  %v113 = vunpack.c.h.b16 %v32
  %v114 = vunpack.c.l.b16 %v33
  %v115 = vunpack.c.h.b16 %v33
  %v116 = vunpack.c.l.b16 %v34
  %v117 = vunpack.c.h.b16 %v34
  %v118 = vunpack.c.l.b16 %v35
  %v119 = vunpack.c.h.b16 %v35
  %v120 = vunpack.c.l.b16 %v36
  %v121 = vunpack.c.h.b16 %v36
  %v122 = vunpack.c.l.b16 %v37
  %v123 = vunpack.c.h.b16 %v37
  %v124 = vunpack.c.l.b16 %v38
  %v125 = vunpack.c.h.b16 %v38
  %v126 = vunpack.c.l.b16 %v39
  %v127 = vunpack.c.h.b16 %v39
  %v128 = vunpack.c.l.b16 %v40
  %v129 = vunpack.c.h.b16 %v40
  %v130 = vunpack.c.l.b16 %v41
  %v131 = vunpack.c.h.b16 %v41
  %v132 = vunpack.c.l.b16 %v42
  %v133 = vunpack.c.h.b16 %v42
  %v134 = vunpack.c.l.b16 %v43
  %v135 = vunpack.c.h.b16 %v43
  %v136 = vunpack.c.l.b16 %v44
  %v137 = vunpack.c.h.b16 %v44
  %v138 = vunpack.c.l.b16 %v45
  %v139 = vunpack.c.h.b16 %v45
  %v140 = vunpack.c.l.b16 %v46
  %v141 = vunpack.c.h.b16 %v46
  %v142 = vunpack.c.l.b16 %v47
  %v143 = vunpack.c.h.b16 %v47
  %v144 = vpack.c.b16 %v84, %v80
  %v145 = vpack.c.b16 %v85, %v81
  %v146 = vpack.c.b16 %v86, %v82
  %v147 = vpack.c.b16 %v87, %v83
  %v148 = vpack.c.b16 %v92, %v88
  %v149 = vpack.c.b16 %v93, %v89
  %v150 = vpack.c.b16 %v94, %v90
  %v151 = vpack.c.b16 %v95, %v91
  %v152 = vpack.c.b16 %v100, %v96
  %v153 = vpack.c.b16 %v101, %v97
  %v154 = vpack.c.b16 %v102, %v98
  %v155 = vpack.c.b16 %v103, %v99
  %v156 = vpack.c.b16 %v108, %v104
  %v157 = vpack.c.b16 %v109, %v105
  %v158 = vpack.c.b16 %v110, %v106
  %v159 = vpack.c.b16 %v111, %v107
  %v160 = vpack.c.b16 %v116, %v112
  %v161 = vpack.c.b16 %v117, %v113
  %v162 = vpack.c.b16 %v118, %v114
  %v163 = vpack.c.b16 %v119, %v115
  %v164 = vpack.c.b16 %v124, %v120
  %v165 = vpack.c.b16 %v125, %v121
  %v166 = vpack.c.b16 %v126, %v122
  %v167 = vpack.c.b16 %v127, %v123
  %v168 = vpack.c.b16 %v132, %v128
  %v169 = vpack.c.b16 %v133, %v129
  %v170 = vpack.c.b16 %v134, %v130
  %v171 = vpack.c.b16 %v135, %v131
  %v172 = vpack.c.b16 %v140, %v136
  %v173 = vpack.c.b16 %v141, %v137
  %v174 = vpack.c.b16 %v142, %v138
  %v175 = vpack.c.b16 %v143, %v139
  %208 = vmatprep.subr.bf16.mxu0 %v173
  %209 = vmatpush1.bf16.msra.mxu0 %v172
  %210 = vmatprep.subr.bf16.mxu0 %v169
  %211 = vmatpush1.bf16.msra.mxu0 %v168
  %212 = vmatprep.subr.bf16.mxu0 %v165
  %213 = vmatpush1.bf16.msra.mxu0 %v164
  %214 = vmatprep.subr.bf16.mxu0 %v161
  %215 = vmatpush1.bf16.msra.mxu0 %v160
  %216 = vmatprep.subr.bf16.mxu0 %v157
  %217 = vmatpush1.bf16.msra.mxu0 %v156
  %218 = vmatprep.subr.bf16.mxu0 %v153
  %219 = vmatpush1.bf16.msra.mxu0 %v152
  %220 = vmatprep.subr.bf16.mxu0 %v149
  %221 = vmatpush1.bf16.msra.mxu0 %v148
  %222 = vmatprep.subr.bf16.mxu0 %v145
  %223 = vmatpush1.bf16.msra.mxu0 %v144
  %224 = vmatprep.subr.bf16.mxu0 0
  %225 = vmatpush2.bf16.msra.mxu0 0
  %226 = vmatprep.subr.bf16.mxu0 0
  %227 = vmatpush2.bf16.msra.mxu0 0
  %228 = vmatprep.subr.bf16.mxu0 0
  %229 = vmatpush2.bf16.msra.mxu0 0
  %230 = vmatprep.subr.bf16.mxu0 0
  %231 = vmatpush2.bf16.msra.mxu0 0
  %232 = vmatprep.subr.bf16.mxu0 0
  %233 = vmatpush2.bf16.msra.mxu0 0
  %234 = vmatprep.subr.bf16.mxu0 0
  %235 = vmatpush2.bf16.msra.mxu0 0
  %236 = vmatprep.subr.bf16.mxu0 0
  %237 = vmatpush2.bf16.msra.mxu0 0
  %238 = vmatprep.subr.bf16.mxu0 0
  %239 = vmatpush2.bf16.msra.mxu0 0
  %240 = vmatprep.mubr.bf16.mxu0 0
  %241 = vmatmul.mubr.bf16.gmra.mxu0 %v15
  %v242 = vpop.f32.mrf.mxu0
  %v243 = vadd.f32 0.0, %v242
  %v244 = vpop.f32.mrf.mxu0
  %v245 = vadd.f32 0.0, %v244
  %v246 = vpop.f32.mrf.mxu0
  %v247 = vpop.f32.mrf.mxu0
  %248 = vdwg.mxu0
  %249 = vmatprep.subr.bf16.mxu0 %v175
  %250 = vmatpush1.bf16.msra.mxu0 %v174
  %251 = vmatprep.subr.bf16.mxu0 %v171
  %252 = vmatpush1.bf16.msra.mxu0 %v170
  %253 = vmatprep.subr.bf16.mxu0 %v167
  %254 = vmatpush1.bf16.msra.mxu0 %v166
  %255 = vmatprep.subr.bf16.mxu0 %v163
  %256 = vmatpush1.bf16.msra.mxu0 %v162
  %257 = vmatprep.subr.bf16.mxu0 %v159
  %258 = vmatpush1.bf16.msra.mxu0 %v158
  %259 = vmatprep.subr.bf16.mxu0 %v155
  %260 = vmatpush1.bf16.msra.mxu0 %v154
  %261 = vmatprep.subr.bf16.mxu0 %v151
  %262 = vmatpush1.bf16.msra.mxu0 %v150
  %263 = vmatprep.subr.bf16.mxu0 %v147
  %264 = vmatpush1.bf16.msra.mxu0 %v146
  %265 = vmatprep.subr.bf16.mxu0 0
  %266 = vmatpush2.bf16.msra.mxu0 0
  %267 = vmatprep.subr.bf16.mxu0 0
  %268 = vmatpush2.bf16.msra.mxu0 0
  %269 = vmatprep.subr.bf16.mxu0 0
  %270 = vmatpush2.bf16.msra.mxu0 0
  %271 = vmatprep.subr.bf16.mxu0 0
  %272 = vmatpush2.bf16.msra.mxu0 0
  %273 = vmatprep.subr.bf16.mxu0 0
  %274 = vmatpush2.bf16.msra.mxu0 0
  %275 = vmatprep.subr.bf16.mxu0 0
  %276 = vmatpush2.bf16.msra.mxu0 0
  %277 = vmatprep.subr.bf16.mxu0 0
  %278 = vmatpush2.bf16.msra.mxu0 0
  %279 = vmatprep.subr.bf16.mxu0 0
  %280 = vmatpush2.bf16.msra.mxu0 0
  %281 = vmatprep.mubr.bf16.mxu0 0
  %282 = vmatmul.mubr.bf16.gmra.mxu0 %v15
  %v283 = vpop.f32.mrf.mxu0
  %v284 = vadd.f32 0.0, %v283
  %v285 = vpop.f32.mrf.mxu0
  %v286 = vadd.f32 0.0, %v285
  %v287 = vpop.f32.mrf.mxu0
  %v288 = vpop.f32.mrf.mxu0
  %289 = vdwg.mxu0
  %s290 = scalar_lea.vmem %s0, 256
  %v291 = vld [vmem:[%s290] sm:$0xff]
  %v292 = vld [vmem:[%s290 + $0x8] sm:$0xff]
  %v293 = vld [vmem:[%s290 + $0x10] sm:$0xff]
  %v294 = vld [vmem:[%s290 + $0x18] sm:$0xff]
  %v295 = vld [vmem:[%s290 + $0x20] sm:$0xff]
  %v296 = vld [vmem:[%s290 + $0x28] sm:$0xff]
  %v297 = vld [vmem:[%s290 + $0x30] sm:$0xff]
  %v298 = vld [vmem:[%s290 + $0x38] sm:$0xff]
  %v299 = vld [vmem:[%s290 + $0x40] sm:$0xff]
  %v300 = vld [vmem:[%s290 + $0x48] sm:$0xff]
  %v301 = vld [vmem:[%s290 + $0x50] sm:$0xff]
  %v302 = vld [vmem:[%s290 + $0x58] sm:$0xff]
  %v303 = vld [vmem:[%s290 + $0x60] sm:$0xff]
  %v304 = vld [vmem:[%s290 + $0x68] sm:$0xff]
  %v305 = vld [vmem:[%s290 + $0x70] sm:$0xff]
  %v306 = vld [vmem:[%s290 + $0x78] sm:$0xff]
  %v307 = vld [vmem:[%s290 + $0x80] sm:$0xff]
  %v308 = vld [vmem:[%s290 + $0x88] sm:$0xff]
  %v309 = vld [vmem:[%s290 + $0x90] sm:$0xff]
  %v310 = vld [vmem:[%s290 + $0x98] sm:$0xff]
  %v311 = vld [vmem:[%s290 + $0xa0] sm:$0xff]
  %v312 = vld [vmem:[%s290 + $0xa8] sm:$0xff]
  %v313 = vld [vmem:[%s290 + $0xb0] sm:$0xff]
  %v314 = vld [vmem:[%s290 + $0xb8] sm:$0xff]
  %v315 = vld [vmem:[%s290 + $0xc0] sm:$0xff]
  %v316 = vld [vmem:[%s290 + $0xc8] sm:$0xff]
  %v317 = vld [vmem:[%s290 + $0xd0] sm:$0xff]
  %v318 = vld [vmem:[%s290 + $0xd8] sm:$0xff]
  %v319 = vld [vmem:[%s290 + $0xe0] sm:$0xff]
  %v320 = vld [vmem:[%s290 + $0xe8] sm:$0xff]
  %v321 = vld [vmem:[%s290 + $0xf0] sm:$0xff]
  %v322 = vld [vmem:[%s290 + $0xf8] sm:$0xff]
  %v355 = vunpack.c.l.b16 %v291
  %v356 = vunpack.c.h.b16 %v291
  %v357 = vunpack.c.l.b16 %v292
  %v358 = vunpack.c.h.b16 %v292
  %v359 = vunpack.c.l.b16 %v293
  %v360 = vunpack.c.h.b16 %v293
  %v361 = vunpack.c.l.b16 %v294
  %v362 = vunpack.c.h.b16 %v294
  %v363 = vunpack.c.l.b16 %v295
  %v364 = vunpack.c.h.b16 %v295
  %v365 = vunpack.c.l.b16 %v296
  %v366 = vunpack.c.h.b16 %v296
  %v367 = vunpack.c.l.b16 %v297
  %v368 = vunpack.c.h.b16 %v297
  %v369 = vunpack.c.l.b16 %v298
  %v370 = vunpack.c.h.b16 %v298
  %v371 = vunpack.c.l.b16 %v299
  %v372 = vunpack.c.h.b16 %v299
  %v373 = vunpack.c.l.b16 %v300
  %v374 = vunpack.c.h.b16 %v300
  %v375 = vunpack.c.l.b16 %v301
  %v376 = vunpack.c.h.b16 %v301
  %v377 = vunpack.c.l.b16 %v302
  %v378 = vunpack.c.h.b16 %v302
  %v379 = vunpack.c.l.b16 %v303
  %v380 = vunpack.c.h.b16 %v303
  %v381 = vunpack.c.l.b16 %v304
  %v382 = vunpack.c.h.b16 %v304
  %v383 = vunpack.c.l.b16 %v305
  %v384 = vunpack.c.h.b16 %v305
  %v385 = vunpack.c.l.b16 %v306
  %v386 = vunpack.c.h.b16 %v306
  %v387 = vunpack.c.l.b16 %v307
  %v388 = vunpack.c.h.b16 %v307
  %v389 = vunpack.c.l.b16 %v308
  %v390 = vunpack.c.h.b16 %v308
  %v391 = vunpack.c.l.b16 %v309
  %v392 = vunpack.c.h.b16 %v309
  %v393 = vunpack.c.l.b16 %v310
  %v394 = vunpack.c.h.b16 %v310
  %v395 = vunpack.c.l.b16 %v311
  %v396 = vunpack.c.h.b16 %v311
  %v397 = vunpack.c.l.b16 %v312
  %v398 = vunpack.c.h.b16 %v312
  %v399 = vunpack.c.l.b16 %v313
  %v400 = vunpack.c.h.b16 %v313
  %v401 = vunpack.c.l.b16 %v314
  %v402 = vunpack.c.h.b16 %v314
  %v403 = vunpack.c.l.b16 %v315
  %v404 = vunpack.c.h.b16 %v315
  %v405 = vunpack.c.l.b16 %v316
  %v406 = vunpack.c.h.b16 %v316
  %v407 = vunpack.c.l.b16 %v317
  %v408 = vunpack.c.h.b16 %v317
  %v409 = vunpack.c.l.b16 %v318
  %v410 = vunpack.c.h.b16 %v318
  %v411 = vunpack.c.l.b16 %v319
  %v412 = vunpack.c.h.b16 %v319
  %v413 = vunpack.c.l.b16 %v320
  %v414 = vunpack.c.h.b16 %v320
  %v415 = vunpack.c.l.b16 %v321
  %v416 = vunpack.c.h.b16 %v321
  %v417 = vunpack.c.l.b16 %v322
  %v418 = vunpack.c.h.b16 %v322
  %v419 = vpack.c.b16 %v359, %v355
  %v420 = vpack.c.b16 %v360, %v356
  %v421 = vpack.c.b16 %v361, %v357
  %v422 = vpack.c.b16 %v362, %v358
  %v423 = vpack.c.b16 %v367, %v363
  %v424 = vpack.c.b16 %v368, %v364
  %v425 = vpack.c.b16 %v369, %v365
  %v426 = vpack.c.b16 %v370, %v366
  %v427 = vpack.c.b16 %v375, %v371
  %v428 = vpack.c.b16 %v376, %v372
  %v429 = vpack.c.b16 %v377, %v373
  %v430 = vpack.c.b16 %v378, %v374
  %v431 = vpack.c.b16 %v383, %v379
  %v432 = vpack.c.b16 %v384, %v380
  %v433 = vpack.c.b16 %v385, %v381
  %v434 = vpack.c.b16 %v386, %v382
  %v435 = vpack.c.b16 %v391, %v387
  %v436 = vpack.c.b16 %v392, %v388
  %v437 = vpack.c.b16 %v393, %v389
  %v438 = vpack.c.b16 %v394, %v390
  %v439 = vpack.c.b16 %v399, %v395
  %v440 = vpack.c.b16 %v400, %v396
  %v441 = vpack.c.b16 %v401, %v397
  %v442 = vpack.c.b16 %v402, %v398
  %v443 = vpack.c.b16 %v407, %v403
  %v444 = vpack.c.b16 %v408, %v404
  %v445 = vpack.c.b16 %v409, %v405
  %v446 = vpack.c.b16 %v410, %v406
  %v447 = vpack.c.b16 %v415, %v411
  %v448 = vpack.c.b16 %v416, %v412
  %v449 = vpack.c.b16 %v417, %v413
  %v450 = vpack.c.b16 %v418, %v414
  %483 = vmatprep.subr.bf16.mxu0 %v448
  %484 = vmatpush1.bf16.msra.mxu0 %v447
  %485 = vmatprep.subr.bf16.mxu0 %v444
  %486 = vmatpush1.bf16.msra.mxu0 %v443
  %487 = vmatprep.subr.bf16.mxu0 %v440
  %488 = vmatpush1.bf16.msra.mxu0 %v439
  %489 = vmatprep.subr.bf16.mxu0 %v436
  %490 = vmatpush1.bf16.msra.mxu0 %v435
  %491 = vmatprep.subr.bf16.mxu0 %v432
  %492 = vmatpush1.bf16.msra.mxu0 %v431
  %493 = vmatprep.subr.bf16.mxu0 %v428
  %494 = vmatpush1.bf16.msra.mxu0 %v427
  %495 = vmatprep.subr.bf16.mxu0 %v424
  %496 = vmatpush1.bf16.msra.mxu0 %v423
  %497 = vmatprep.subr.bf16.mxu0 %v420
  %498 = vmatpush1.bf16.msra.mxu0 %v419
  %499 = vmatprep.subr.bf16.mxu0 0
  %500 = vmatpush2.bf16.msra.mxu0 0
  %501 = vmatprep.subr.bf16.mxu0 0
  %502 = vmatpush2.bf16.msra.mxu0 0
  %503 = vmatprep.subr.bf16.mxu0 0
  %504 = vmatpush2.bf16.msra.mxu0 0
  %505 = vmatprep.subr.bf16.mxu0 0
  %506 = vmatpush2.bf16.msra.mxu0 0
  %507 = vmatprep.subr.bf16.mxu0 0
  %508 = vmatpush2.bf16.msra.mxu0 0
  %509 = vmatprep.subr.bf16.mxu0 0
  %510 = vmatpush2.bf16.msra.mxu0 0
  %511 = vmatprep.subr.bf16.mxu0 0
  %512 = vmatpush2.bf16.msra.mxu0 0
  %513 = vmatprep.subr.bf16.mxu0 0
  %514 = vmatpush2.bf16.msra.mxu0 0
  %515 = vmatprep.mubr.bf16.mxu0 0
  %516 = vmatmul.mubr.bf16.gmra.mxu0 %v15
  %v517 = vpop.f32.mrf.mxu0
  %v518 = vadd.f32 0.0, %v517
  %v519 = vpop.f32.mrf.mxu0
  %v520 = vadd.f32 0.0, %v519
  %v521 = vpop.f32.mrf.mxu0
  %v522 = vpop.f32.mrf.mxu0
  %523 = vdwg.mxu0
  %524 = vmatprep.subr.bf16.mxu0 %v450
  %525 = vmatpush1.bf16.msra.mxu0 %v449
  %526 = vmatprep.subr.bf16.mxu0 %v446
  %527 = vmatpush1.bf16.msra.mxu0 %v445
  %528 = vmatprep.subr.bf16.mxu0 %v442
  %529 = vmatpush1.bf16.msra.mxu0 %v441
  %530 = vmatprep.subr.bf16.mxu0 %v438
  %531 = vmatpush1.bf16.msra.mxu0 %v437
  %532 = vmatprep.subr.bf16.mxu0 %v434
  %533 = vmatpush1.bf16.msra.mxu0 %v433
  %534 = vmatprep.subr.bf16.mxu0 %v430
  %535 = vmatpush1.bf16.msra.mxu0 %v429
  %536 = vmatprep.subr.bf16.mxu0 %v426
  %537 = vmatpush1.bf16.msra.mxu0 %v425
  %538 = vmatprep.subr.bf16.mxu0 %v422
  %539 = vmatpush1.bf16.msra.mxu0 %v421
  %540 = vmatprep.subr.bf16.mxu0 0
  %541 = vmatpush2.bf16.msra.mxu0 0
  %542 = vmatprep.subr.bf16.mxu0 0
  %543 = vmatpush2.bf16.msra.mxu0 0
  %544 = vmatprep.subr.bf16.mxu0 0
  %545 = vmatpush2.bf16.msra.mxu0 0
  %546 = vmatprep.subr.bf16.mxu0 0
  %547 = vmatpush2.bf16.msra.mxu0 0
  %548 = vmatprep.subr.bf16.mxu0 0
  %549 = vmatpush2.bf16.msra.mxu0 0
  %550 = vmatprep.subr.bf16.mxu0 0
  %551 = vmatpush2.bf16.msra.mxu0 0
  %552 = vmatprep.subr.bf16.mxu0 0
  %553 = vmatpush2.bf16.msra.mxu0 0
  %554 = vmatprep.subr.bf16.mxu0 0
  %555 = vmatpush2.bf16.msra.mxu0 0
  %556 = vmatprep.mubr.bf16.mxu0 0
  %557 = vmatmul.mubr.bf16.gmra.mxu0 %v15
  %v558 = vpop.f32.mrf.mxu0
  %v559 = vadd.f32 0.0, %v558
  %v560 = vpop.f32.mrf.mxu0
  %v561 = vadd.f32 0.0, %v560
  %v562 = vpop.f32.mrf.mxu0
  %v563 = vpop.f32.mrf.mxu0
  %564 = vdwg.mxu0
  %v565 = vmax.f32 %v243, %v518
  %v566 = vmax.f32 %v245, %v520
  %v567 = vmax.f32 %v284, %v559
  %v568 = vmax.f32 %v286, %v561
  %s569 = scalar_lea.vmem %s0, 512
  %v570 = vld [vmem:[%s569] sm:$0xff]
  %v571 = vld [vmem:[%s569 + $0x8] sm:$0xff]
  %v572 = vld [vmem:[%s569 + $0x10] sm:$0xff]
  %v573 = vld [vmem:[%s569 + $0x18] sm:$0xff]
  %v574 = vld [vmem:[%s569 + $0x20] sm:$0xff]
  %v575 = vld [vmem:[%s569 + $0x28] sm:$0xff]
  %v576 = vld [vmem:[%s569 + $0x30] sm:$0xff]
  %v577 = vld [vmem:[%s569 + $0x38] sm:$0xff]
  %v578 = vld [vmem:[%s569 + $0x40] sm:$0xff]
  %v579 = vld [vmem:[%s569 + $0x48] sm:$0xff]
  %v580 = vld [vmem:[%s569 + $0x50] sm:$0xff]
  %v581 = vld [vmem:[%s569 + $0x58] sm:$0xff]
  %v582 = vld [vmem:[%s569 + $0x60] sm:$0xff]
  %v583 = vld [vmem:[%s569 + $0x68] sm:$0xff]
  %v584 = vld [vmem:[%s569 + $0x70] sm:$0xff]
  %v585 = vld [vmem:[%s569 + $0x78] sm:$0xff]
  %v586 = vld [vmem:[%s569 + $0x80] sm:$0xff]
  %v587 = vld [vmem:[%s569 + $0x88] sm:$0xff]
  %v588 = vld [vmem:[%s569 + $0x90] sm:$0xff]
  %v589 = vld [vmem:[%s569 + $0x98] sm:$0xff]
  %v590 = vld [vmem:[%s569 + $0xa0] sm:$0xff]
  %v591 = vld [vmem:[%s569 + $0xa8] sm:$0xff]
  %v592 = vld [vmem:[%s569 + $0xb0] sm:$0xff]
  %v593 = vld [vmem:[%s569 + $0xb8] sm:$0xff]
  %v594 = vld [vmem:[%s569 + $0xc0] sm:$0xff]
  %v595 = vld [vmem:[%s569 + $0xc8] sm:$0xff]
  %v596 = vld [vmem:[%s569 + $0xd0] sm:$0xff]
  %v597 = vld [vmem:[%s569 + $0xd8] sm:$0xff]
  %v598 = vld [vmem:[%s569 + $0xe0] sm:$0xff]
  %v599 = vld [vmem:[%s569 + $0xe8] sm:$0xff]
  %v600 = vld [vmem:[%s569 + $0xf0] sm:$0xff]
  %v601 = vld [vmem:[%s569 + $0xf8] sm:$0xff]
  %v634 = vunpack.c.l.b16 %v570
  %v635 = vunpack.c.h.b16 %v570
  %v636 = vunpack.c.l.b16 %v571
  %v637 = vunpack.c.h.b16 %v571
  %v638 = vunpack.c.l.b16 %v572
  %v639 = vunpack.c.h.b16 %v572
  %v640 = vunpack.c.l.b16 %v573
  %v641 = vunpack.c.h.b16 %v573
  %v642 = vunpack.c.l.b16 %v574
  %v643 = vunpack.c.h.b16 %v574
  %v644 = vunpack.c.l.b16 %v575
  %v645 = vunpack.c.h.b16 %v575
  %v646 = vunpack.c.l.b16 %v576
  %v647 = vunpack.c.h.b16 %v576
  %v648 = vunpack.c.l.b16 %v577
  %v649 = vunpack.c.h.b16 %v577
  %v650 = vunpack.c.l.b16 %v578
  %v651 = vunpack.c.h.b16 %v578
  %v652 = vunpack.c.l.b16 %v579
  %v653 = vunpack.c.h.b16 %v579
  %v654 = vunpack.c.l.b16 %v580
  %v655 = vunpack.c.h.b16 %v580
  %v656 = vunpack.c.l.b16 %v581
  %v657 = vunpack.c.h.b16 %v581
  %v658 = vunpack.c.l.b16 %v582
  %v659 = vunpack.c.h.b16 %v582
  %v660 = vunpack.c.l.b16 %v583
  %v661 = vunpack.c.h.b16 %v583
  %v662 = vunpack.c.l.b16 %v584
  %v663 = vunpack.c.h.b16 %v584
  %v664 = vunpack.c.l.b16 %v585
  %v665 = vunpack.c.h.b16 %v585
  %v666 = vunpack.c.l.b16 %v586
  %v667 = vunpack.c.h.b16 %v586
  %v668 = vunpack.c.l.b16 %v587
  %v669 = vunpack.c.h.b16 %v587
  %v670 = vunpack.c.l.b16 %v588
  %v671 = vunpack.c.h.b16 %v588
  %v672 = vunpack.c.l.b16 %v589
  %v673 = vunpack.c.h.b16 %v589
  %v674 = vunpack.c.l.b16 %v590
  %v675 = vunpack.c.h.b16 %v590
  %v676 = vunpack.c.l.b16 %v591
  %v677 = vunpack.c.h.b16 %v591
  %v678 = vunpack.c.l.b16 %v592
  %v679 = vunpack.c.h.b16 %v592
  %v680 = vunpack.c.l.b16 %v593
  %v681 = vunpack.c.h.b16 %v593
  %v682 = vunpack.c.l.b16 %v594
  %v683 = vunpack.c.h.b16 %v594
  %v684 = vunpack.c.l.b16 %v595
  %v685 = vunpack.c.h.b16 %v595
  %v686 = vunpack.c.l.b16 %v596
  %v687 = vunpack.c.h.b16 %v596
  %v688 = vunpack.c.l.b16 %v597
  %v689 = vunpack.c.h.b16 %v597
  %v690 = vunpack.c.l.b16 %v598
  %v691 = vunpack.c.h.b16 %v598
  %v692 = vunpack.c.l.b16 %v599
  %v693 = vunpack.c.h.b16 %v599
  %v694 = vunpack.c.l.b16 %v600
  %v695 = vunpack.c.h.b16 %v600
  %v696 = vunpack.c.l.b16 %v601
  %v697 = vunpack.c.h.b16 %v601
  %v698 = vpack.c.b16 %v638, %v634
  %v699 = vpack.c.b16 %v639, %v635
  %v700 = vpack.c.b16 %v640, %v636
  %v701 = vpack.c.b16 %v641, %v637
  %v702 = vpack.c.b16 %v646, %v642
  %v703 = vpack.c.b16 %v647, %v643
  %v704 = vpack.c.b16 %v648, %v644
  %v705 = vpack.c.b16 %v649, %v645
  %v706 = vpack.c.b16 %v654, %v650
  %v707 = vpack.c.b16 %v655, %v651
  %v708 = vpack.c.b16 %v656, %v652
  %v709 = vpack.c.b16 %v657, %v653
  %v710 = vpack.c.b16 %v662, %v658
  %v711 = vpack.c.b16 %v663, %v659
  %v712 = vpack.c.b16 %v664, %v660
  %v713 = vpack.c.b16 %v665, %v661
  %v714 = vpack.c.b16 %v670, %v666
  %v715 = vpack.c.b16 %v671, %v667
  %v716 = vpack.c.b16 %v672, %v668
  %v717 = vpack.c.b16 %v673, %v669
  %v718 = vpack.c.b16 %v678, %v674
  %v719 = vpack.c.b16 %v679, %v675
  %v720 = vpack.c.b16 %v680, %v676
  %v721 = vpack.c.b16 %v681, %v677
  %v722 = vpack.c.b16 %v686, %v682
  %v723 = vpack.c.b16 %v687, %v683
  %v724 = vpack.c.b16 %v688, %v684
  %v725 = vpack.c.b16 %v689, %v685
  %v726 = vpack.c.b16 %v694, %v690
  %v727 = vpack.c.b16 %v695, %v691
  %v728 = vpack.c.b16 %v696, %v692
  %v729 = vpack.c.b16 %v697, %v693
  %762 = vmatprep.subr.bf16.mxu0 %v727
  %763 = vmatpush1.bf16.msra.mxu0 %v726
  %764 = vmatprep.subr.bf16.mxu0 %v723
  %765 = vmatpush1.bf16.msra.mxu0 %v722
  %766 = vmatprep.subr.bf16.mxu0 %v719
  %767 = vmatpush1.bf16.msra.mxu0 %v718
  %768 = vmatprep.subr.bf16.mxu0 %v715
  %769 = vmatpush1.bf16.msra.mxu0 %v714
  %770 = vmatprep.subr.bf16.mxu0 %v711
  %771 = vmatpush1.bf16.msra.mxu0 %v710
  %772 = vmatprep.subr.bf16.mxu0 %v707
  %773 = vmatpush1.bf16.msra.mxu0 %v706
  %774 = vmatprep.subr.bf16.mxu0 %v703
  %775 = vmatpush1.bf16.msra.mxu0 %v702
  %776 = vmatprep.subr.bf16.mxu0 %v699
  %777 = vmatpush1.bf16.msra.mxu0 %v698
  %778 = vmatprep.subr.bf16.mxu0 0
  %779 = vmatpush2.bf16.msra.mxu0 0
  %780 = vmatprep.subr.bf16.mxu0 0
  %781 = vmatpush2.bf16.msra.mxu0 0
  %782 = vmatprep.subr.bf16.mxu0 0
  %783 = vmatpush2.bf16.msra.mxu0 0
  %784 = vmatprep.subr.bf16.mxu0 0
  %785 = vmatpush2.bf16.msra.mxu0 0
  %786 = vmatprep.subr.bf16.mxu0 0
  %787 = vmatpush2.bf16.msra.mxu0 0
  %788 = vmatprep.subr.bf16.mxu0 0
  %789 = vmatpush2.bf16.msra.mxu0 0
  %790 = vmatprep.subr.bf16.mxu0 0
  %791 = vmatpush2.bf16.msra.mxu0 0
  %792 = vmatprep.subr.bf16.mxu0 0
  %793 = vmatpush2.bf16.msra.mxu0 0
  %794 = vmatprep.mubr.bf16.mxu0 0
  %795 = vmatmul.mubr.bf16.gmra.mxu0 %v15
  %v796 = vpop.f32.mrf.mxu0
  %v797 = vadd.f32 0.0, %v796
  %v798 = vpop.f32.mrf.mxu0
  %v799 = vadd.f32 0.0, %v798
  %v800 = vpop.f32.mrf.mxu0
  %v801 = vpop.f32.mrf.mxu0
  %802 = vdwg.mxu0
  %803 = vmatprep.subr.bf16.mxu0 %v729
  %804 = vmatpush1.bf16.msra.mxu0 %v728
  %805 = vmatprep.subr.bf16.mxu0 %v725
  %806 = vmatpush1.bf16.msra.mxu0 %v724
  %807 = vmatprep.subr.bf16.mxu0 %v721
  %808 = vmatpush1.bf16.msra.mxu0 %v720
  %809 = vmatprep.subr.bf16.mxu0 %v717
  %810 = vmatpush1.bf16.msra.mxu0 %v716
  %811 = vmatprep.subr.bf16.mxu0 %v713
  %812 = vmatpush1.bf16.msra.mxu0 %v712
  %813 = vmatprep.subr.bf16.mxu0 %v709
  %814 = vmatpush1.bf16.msra.mxu0 %v708
  %815 = vmatprep.subr.bf16.mxu0 %v705
  %816 = vmatpush1.bf16.msra.mxu0 %v704
  %817 = vmatprep.subr.bf16.mxu0 %v701
  %818 = vmatpush1.bf16.msra.mxu0 %v700
  %819 = vmatprep.subr.bf16.mxu0 0
  %820 = vmatpush2.bf16.msra.mxu0 0
  %821 = vmatprep.subr.bf16.mxu0 0
  %822 = vmatpush2.bf16.msra.mxu0 0
  %823 = vmatprep.subr.bf16.mxu0 0
  %824 = vmatpush2.bf16.msra.mxu0 0
  %825 = vmatprep.subr.bf16.mxu0 0
  %826 = vmatpush2.bf16.msra.mxu0 0
  %827 = vmatprep.subr.bf16.mxu0 0
  %828 = vmatpush2.bf16.msra.mxu0 0
  %829 = vmatprep.subr.bf16.mxu0 0
  %830 = vmatpush2.bf16.msra.mxu0 0
  %831 = vmatprep.subr.bf16.mxu0 0
  %832 = vmatpush2.bf16.msra.mxu0 0
  %833 = vmatprep.subr.bf16.mxu0 0
  %834 = vmatpush2.bf16.msra.mxu0 0
  %835 = vmatprep.mubr.bf16.mxu0 0
  %836 = vmatmul.mubr.bf16.gmra.mxu0 %v15
  %v837 = vpop.f32.mrf.mxu0
  %v838 = vadd.f32 0.0, %v837
  %v839 = vpop.f32.mrf.mxu0
  %v840 = vadd.f32 0.0, %v839
  %v841 = vpop.f32.mrf.mxu0
  %v842 = vpop.f32.mrf.mxu0
  %843 = vdwg.mxu0
  %v844 = vmax.f32 %v565, %v797
  %v845 = vmax.f32 %v566, %v799
  %v846 = vmax.f32 %v567, %v838
  %v847 = vmax.f32 %v568, %v840
  %s848 = scalar_lea.vmem %s0, 768
  %v849 = vld [vmem:[%s848] sm:$0xff]
  %v850 = vld [vmem:[%s848 + $0x8] sm:$0xff]
  %v851 = vld [vmem:[%s848 + $0x10] sm:$0xff]
  %v852 = vld [vmem:[%s848 + $0x18] sm:$0xff]
  %v853 = vld [vmem:[%s848 + $0x20] sm:$0xff]
  %v854 = vld [vmem:[%s848 + $0x28] sm:$0xff]
  %v855 = vld [vmem:[%s848 + $0x30] sm:$0xff]
  %v856 = vld [vmem:[%s848 + $0x38] sm:$0xff]
  %v857 = vld [vmem:[%s848 + $0x40] sm:$0xff]
  %v858 = vld [vmem:[%s848 + $0x48] sm:$0xff]
  %v859 = vld [vmem:[%s848 + $0x50] sm:$0xff]
  %v860 = vld [vmem:[%s848 + $0x58] sm:$0xff]
  %v861 = vld [vmem:[%s848 + $0x60] sm:$0xff]
  %v862 = vld [vmem:[%s848 + $0x68] sm:$0xff]
  %v863 = vld [vmem:[%s848 + $0x70] sm:$0xff]
  %v864 = vld [vmem:[%s848 + $0x78] sm:$0xff]
  %v865 = vld [vmem:[%s848 + $0x80] sm:$0xff]
  %v866 = vld [vmem:[%s848 + $0x88] sm:$0xff]
  %v867 = vld [vmem:[%s848 + $0x90] sm:$0xff]
  %v868 = vld [vmem:[%s848 + $0x98] sm:$0xff]
  %v869 = vld [vmem:[%s848 + $0xa0] sm:$0xff]
  %v870 = vld [vmem:[%s848 + $0xa8] sm:$0xff]
  %v871 = vld [vmem:[%s848 + $0xb0] sm:$0xff]
  %v872 = vld [vmem:[%s848 + $0xb8] sm:$0xff]
  %v873 = vld [vmem:[%s848 + $0xc0] sm:$0xff]
  %v874 = vld [vmem:[%s848 + $0xc8] sm:$0xff]
  %v875 = vld [vmem:[%s848 + $0xd0] sm:$0xff]
  %v876 = vld [vmem:[%s848 + $0xd8] sm:$0xff]
  %v877 = vld [vmem:[%s848 + $0xe0] sm:$0xff]
  %v878 = vld [vmem:[%s848 + $0xe8] sm:$0xff]
  %v879 = vld [vmem:[%s848 + $0xf0] sm:$0xff]
  %v880 = vld [vmem:[%s848 + $0xf8] sm:$0xff]
  %v913 = vunpack.c.l.b16 %v849
  %v914 = vunpack.c.h.b16 %v849
  %v915 = vunpack.c.l.b16 %v850
  %v916 = vunpack.c.h.b16 %v850
  %v917 = vunpack.c.l.b16 %v851
  %v918 = vunpack.c.h.b16 %v851
  %v919 = vunpack.c.l.b16 %v852
  %v920 = vunpack.c.h.b16 %v852
  %v921 = vunpack.c.l.b16 %v853
  %v922 = vunpack.c.h.b16 %v853
  %v923 = vunpack.c.l.b16 %v854
  %v924 = vunpack.c.h.b16 %v854
  %v925 = vunpack.c.l.b16 %v855
  %v926 = vunpack.c.h.b16 %v855
  %v927 = vunpack.c.l.b16 %v856
  %v928 = vunpack.c.h.b16 %v856
  %v929 = vunpack.c.l.b16 %v857
  %v930 = vunpack.c.h.b16 %v857
  %v931 = vunpack.c.l.b16 %v858
  %v932 = vunpack.c.h.b16 %v858
  %v933 = vunpack.c.l.b16 %v859
  %v934 = vunpack.c.h.b16 %v859
  %v935 = vunpack.c.l.b16 %v860
  %v936 = vunpack.c.h.b16 %v860
  %v937 = vunpack.c.l.b16 %v861
  %v938 = vunpack.c.h.b16 %v861
  %v939 = vunpack.c.l.b16 %v862
  %v940 = vunpack.c.h.b16 %v862
  %v941 = vunpack.c.l.b16 %v863
  %v942 = vunpack.c.h.b16 %v863
  %v943 = vunpack.c.l.b16 %v864
  %v944 = vunpack.c.h.b16 %v864
  %v945 = vunpack.c.l.b16 %v865
  %v946 = vunpack.c.h.b16 %v865
  %v947 = vunpack.c.l.b16 %v866
  %v948 = vunpack.c.h.b16 %v866
  %v949 = vunpack.c.l.b16 %v867
  %v950 = vunpack.c.h.b16 %v867
  %v951 = vunpack.c.l.b16 %v868
  %v952 = vunpack.c.h.b16 %v868
  %v953 = vunpack.c.l.b16 %v869
  %v954 = vunpack.c.h.b16 %v869
  %v955 = vunpack.c.l.b16 %v870
  %v956 = vunpack.c.h.b16 %v870
  %v957 = vunpack.c.l.b16 %v871
  %v958 = vunpack.c.h.b16 %v871
  %v959 = vunpack.c.l.b16 %v872
  %v960 = vunpack.c.h.b16 %v872
  %v961 = vunpack.c.l.b16 %v873
  %v962 = vunpack.c.h.b16 %v873
  %v963 = vunpack.c.l.b16 %v874
  %v964 = vunpack.c.h.b16 %v874
  %v965 = vunpack.c.l.b16 %v875
  %v966 = vunpack.c.h.b16 %v875
  %v967 = vunpack.c.l.b16 %v876
  %v968 = vunpack.c.h.b16 %v876
  %v969 = vunpack.c.l.b16 %v877
  %v970 = vunpack.c.h.b16 %v877
  %v971 = vunpack.c.l.b16 %v878
  %v972 = vunpack.c.h.b16 %v878
  %v973 = vunpack.c.l.b16 %v879
  %v974 = vunpack.c.h.b16 %v879
  %v975 = vunpack.c.l.b16 %v880
  %v976 = vunpack.c.h.b16 %v880
  %v977 = vpack.c.b16 %v917, %v913
  %v978 = vpack.c.b16 %v918, %v914
  %v979 = vpack.c.b16 %v919, %v915
  %v980 = vpack.c.b16 %v920, %v916
  %v981 = vpack.c.b16 %v925, %v921
  %v982 = vpack.c.b16 %v926, %v922
  %v983 = vpack.c.b16 %v927, %v923
  %v984 = vpack.c.b16 %v928, %v924
  %v985 = vpack.c.b16 %v933, %v929
  %v986 = vpack.c.b16 %v934, %v930
  %v987 = vpack.c.b16 %v935, %v931
  %v988 = vpack.c.b16 %v936, %v932
  %v989 = vpack.c.b16 %v941, %v937
  %v990 = vpack.c.b16 %v942, %v938
  %v991 = vpack.c.b16 %v943, %v939
  %v992 = vpack.c.b16 %v944, %v940
  %v993 = vpack.c.b16 %v949, %v945
  %v994 = vpack.c.b16 %v950, %v946
  %v995 = vpack.c.b16 %v951, %v947
  %v996 = vpack.c.b16 %v952, %v948
  %v997 = vpack.c.b16 %v957, %v953
  %v998 = vpack.c.b16 %v958, %v954
  %v999 = vpack.c.b16 %v959, %v955
  %v1000 = vpack.c.b16 %v960, %v956
  %v1001 = vpack.c.b16 %v965, %v961
  %v1002 = vpack.c.b16 %v966, %v962
  %v1003 = vpack.c.b16 %v967, %v963
  %v1004 = vpack.c.b16 %v968, %v964
  %v1005 = vpack.c.b16 %v973, %v969
  %v1006 = vpack.c.b16 %v974, %v970
  %v1007 = vpack.c.b16 %v975, %v971
  %v1008 = vpack.c.b16 %v976, %v972
  %1041 = vmatprep.subr.bf16.mxu0 %v1006
  %1042 = vmatpush1.bf16.msra.mxu0 %v1005
  %1043 = vmatprep.subr.bf16.mxu0 %v1002
  %1044 = vmatpush1.bf16.msra.mxu0 %v1001
  %1045 = vmatprep.subr.bf16.mxu0 %v998
  %1046 = vmatpush1.bf16.msra.mxu0 %v997
  %1047 = vmatprep.subr.bf16.mxu0 %v994
  %1048 = vmatpush1.bf16.msra.mxu0 %v993
  %1049 = vmatprep.subr.bf16.mxu0 %v990
  %1050 = vmatpush1.bf16.msra.mxu0 %v989
  %1051 = vmatprep.subr.bf16.mxu0 %v986
  %1052 = vmatpush1.bf16.msra.mxu0 %v985
  %1053 = vmatprep.subr.bf16.mxu0 %v982
  %1054 = vmatpush1.bf16.msra.mxu0 %v981
  %1055 = vmatprep.subr.bf16.mxu0 %v978
  %1056 = vmatpush1.bf16.msra.mxu0 %v977
  %1057 = vmatprep.subr.bf16.mxu0 0
  %1058 = vmatpush2.bf16.msra.mxu0 0
  %1059 = vmatprep.subr.bf16.mxu0 0
  %1060 = vmatpush2.bf16.msra.mxu0 0
  %1061 = vmatprep.subr.bf16.mxu0 0
  %1062 = vmatpush2.bf16.msra.mxu0 0
  %1063 = vmatprep.subr.bf16.mxu0 0
  %1064 = vmatpush2.bf16.msra.mxu0 0
  %1065 = vmatprep.subr.bf16.mxu0 0
  %1066 = vmatpush2.bf16.msra.mxu0 0
  %1067 = vmatprep.subr.bf16.mxu0 0
  %1068 = vmatpush2.bf16.msra.mxu0 0
  %1069 = vmatprep.subr.bf16.mxu0 0
  %1070 = vmatpush2.bf16.msra.mxu0 0
  %1071 = vmatprep.subr.bf16.mxu0 0
  %1072 = vmatpush2.bf16.msra.mxu0 0
  %1073 = vmatprep.mubr.bf16.mxu0 0
  %1074 = vmatmul.mubr.bf16.gmra.mxu0 %v15
  %v1075 = vpop.f32.mrf.mxu0
  %v1076 = vadd.f32 0.0, %v1075
  %v1077 = vpop.f32.mrf.mxu0
  %v1078 = vadd.f32 0.0, %v1077
  %v1079 = vpop.f32.mrf.mxu0
  %v1080 = vpop.f32.mrf.mxu0
  %1081 = vdwg.mxu0
  %1082 = vmatprep.subr.bf16.mxu0 %v1008
  %1083 = vmatpush1.bf16.msra.mxu0 %v1007
  %1084 = vmatprep.subr.bf16.mxu0 %v1004
  %1085 = vmatpush1.bf16.msra.mxu0 %v1003
  %1086 = vmatprep.subr.bf16.mxu0 %v1000
  %1087 = vmatpush1.bf16.msra.mxu0 %v999
  %1088 = vmatprep.subr.bf16.mxu0 %v996
  %1089 = vmatpush1.bf16.msra.mxu0 %v995
  %1090 = vmatprep.subr.bf16.mxu0 %v992
  %1091 = vmatpush1.bf16.msra.mxu0 %v991
  %1092 = vmatprep.subr.bf16.mxu0 %v988
  %1093 = vmatpush1.bf16.msra.mxu0 %v987
  %1094 = vmatprep.subr.bf16.mxu0 %v984
  %1095 = vmatpush1.bf16.msra.mxu0 %v983
  %1096 = vmatprep.subr.bf16.mxu0 %v980
  %1097 = vmatpush1.bf16.msra.mxu0 %v979
  %1098 = vmatprep.subr.bf16.mxu0 0
  %1099 = vmatpush2.bf16.msra.mxu0 0
  %1100 = vmatprep.subr.bf16.mxu0 0
  %1101 = vmatpush2.bf16.msra.mxu0 0
  %1102 = vmatprep.subr.bf16.mxu0 0
  %1103 = vmatpush2.bf16.msra.mxu0 0
  %1104 = vmatprep.subr.bf16.mxu0 0
  %1105 = vmatpush2.bf16.msra.mxu0 0
  %1106 = vmatprep.subr.bf16.mxu0 0
  %1107 = vmatpush2.bf16.msra.mxu0 0
  %1108 = vmatprep.subr.bf16.mxu0 0
  %1109 = vmatpush2.bf16.msra.mxu0 0
  %1110 = vmatprep.subr.bf16.mxu0 0
  %1111 = vmatpush2.bf16.msra.mxu0 0
  %1112 = vmatprep.subr.bf16.mxu0 0
  %1113 = vmatpush2.bf16.msra.mxu0 0
  %1114 = vmatprep.mubr.bf16.mxu0 0
  %1115 = vmatmul.mubr.bf16.gmra.mxu0 %v15
  %v1116 = vpop.f32.mrf.mxu0
  %v1117 = vadd.f32 0.0, %v1116
  %v1118 = vpop.f32.mrf.mxu0
  %v1119 = vadd.f32 0.0, %v1118
  %v1120 = vpop.f32.mrf.mxu0
  %v1121 = vpop.f32.mrf.mxu0
  %1122 = vdwg.mxu0
  %v1123 = vmax.f32 %v844, %v1076
  %v1124 = vmax.f32 %v845, %v1078
  %v1125 = vmax.f32 %v846, %v1117
  %v1126 = vmax.f32 %v847, %v1119
  %v1127 = vld [vmem:[%s2] sm:$0x3f]
  %1129 = vset.pattern.permute.xlu0 0
  %1130 = vperm.xlu0 %1129, %v1127
  %v1131 = vpop.permute.xlu0 %1130
  %v1133 = vadd.f32 %v1123, %v1131
  %v1134 = vadd.f32 %v1124, %v1131
  %v1135 = vadd.f32 %v1125, %v1131
  %v1136 = vadd.f32 %v1126, %v1131
  %v1137 = vmax.f32 %v1133, 0.0
  %v1138 = vmax.f32 %v1134, 0.0
  %v1139 = vmax.f32 %v1135, 0.0
  %v1140 = vmax.f32 %v1136, 0.0
  %1141 = vst [vmem:[%s3] sm:$0x3f] %v1137
  %1142 = vst [vmem:[%s3 + $0x8] sm:$0x3f] %v1138
  %1143 = vst [vmem:[%s3 + $0x10] sm:$0x3f] %v1139
  %vm1144 = vcmask 62464
  %1145 = vst.msk [vmem:[%s3 + $0x18] sm:$0x3f] %vm1144, %v1140
  // Predicated region
  $region14: #{net_forward.2} parent=0 // pred_check
    _
  $region15: #{net_forward.2} parent=0 // pred_check_branch
    %1147 = sbr.rel (0) target = $region17
  $region16: #{net_forward.2} parent=0 // pred_region
    _
  $region17: #{net_forward.2} parent=0 // pred_fallthru
    _
  // Predicated region
  $region18: #{net_forward.2} parent=0 // pred_check
    _
  $region19: #{net_forward.2} parent=0 // pred_check_branch
    %1149 = sbr.rel (0) target = $region21
  $region20: #{net_forward.2} parent=0 // pred_region
    _
  $region21: #{net_forward.2} parent=0 // pred_fallthru
    _

// kernel: net_forward.3
$region0: #{net_forward.3}
  #allocation0 [shape = 'u32[]', space=smem, size = 0x4, offset = 0x4, fixed_abs, tag = 'smem constant byte address 0x4 - core index']
  #allocation1 [shape = 'u32[144,128]{1,0:T(1,128)}', space=vmem, size = 0x12000, scoped, tag = 'internal scratch']
  %s0 = inlined_call_operand.vmem [shape: bf16[4,50,256], index: 0, kind: input, shape index: {}]
  %s1 = inlined_call_operand.vmem [shape: bf16[256,16], index: 1, kind: input, shape index: {}]
  %s2 = inlined_call_operand.vmem [shape: f32[1,16], index: 2, kind: input, shape index: {}]
  %s3 = inlined_call_operand.vmem [shape: bf16[25,16,120], index: 3, kind: input, shape index: {}]
  %s4 = inlined_call_operand.vmem [shape: f32[1,120], index: 4, kind: input, shape index: {}]
  %s5 = inlined_call_operand.vmem [shape: bf16[120,84], index: 5, kind: input, shape index: {}]
  %s6 = inlined_call_operand.vmem [shape: f32[1,84], index: 6, kind: input, shape index: {}]
  %s7 = inlined_call_operand.vmem [shape: bf16[84,10], index: 7, kind: input, shape index: {}]
  %s8 = inlined_call_operand.vmem [shape: f32[1,10], index: 8, kind: input, shape index: {}]
  %s9 = inlined_call_operand.hbm [shape: f32[2,10], index: 9, kind: output, shape index: {}]
  %s10 = sld [smem:[#allocation0]]
  $region46: #{net_forward.3} parent=0
    _
  %s12 = ssub.s32 1, %s10
  %s13 = scalar_select 0, %s12, %s10
  $region1: #{net_forward.3} parent=0
    #allocation2 [shape = 'u8[1024]{0}', space=vmem, size = 0x400, scoped, tag = 'output window, operand 0, single buffered']
    #allocation3 [shape = 's32[1]{0}', space=sflag, size = 0x4, scoped, tag = 'scoped memory for net_forward.3']
    %14 = vsyncpa [#allocation3], 0
    // Predicated region
    $region2: #{net_forward.3} parent=1 // pred_check
      _
    $region3: #{net_forward.3} parent=1 // pred_check_branch
      %16 = sbr.rel (0) target = $region5
    $region4: #{net_forward.3} parent=1 // pred_region
      _
    $region5: #{net_forward.3} parent=1 // pred_fallthru
      _
    // Predicated region
    $region6: #{net_forward.3} parent=1 // pred_check
      _
    $region7: #{net_forward.3} parent=1 // pred_check_branch
      %18 = sbr.rel (0) target = $region9
    $region8: #{net_forward.3} parent=1 // pred_region
      _
    $region9: #{net_forward.3} parent=1 // pred_fallthru
      _
    // Predicated region
    $region10: #{net_forward.3} parent=1 // pred_check
      _
    $region11: #{net_forward.3} parent=1 // pred_check_branch
      %20 = sbr.rel (0) target = $region13
    $region12: #{net_forward.3} parent=1 // pred_region
      _
    $region13: #{net_forward.3} parent=1 // pred_fallthru
      _
    // Predicated region
    $region14: #{net_forward.3} parent=1 // pred_check
      _
    $region15: #{net_forward.3} parent=1 // pred_check_branch
      %22 = sbr.rel (0) target = $region17
    $region16: #{net_forward.3} parent=1 // pred_region
      _
    $region17: #{net_forward.3} parent=1 // pred_fallthru
      _
    // Predicated region
    $region18: #{net_forward.3} parent=1 // pred_check
      _
    $region19: #{net_forward.3} parent=1 // pred_check_branch
      %24 = sbr.rel (0) target = $region21
    $region20: #{net_forward.3} parent=1 // pred_region
      _
    $region21: #{net_forward.3} parent=1 // pred_fallthru
      _
    // Predicated region
    $region22: #{net_forward.3} parent=1 // pred_check
      _
    $region23: #{net_forward.3} parent=1 // pred_check_branch
      %26 = sbr.rel (0) target = $region25
    $region24: #{net_forward.3} parent=1 // pred_region
      _
    $region25: #{net_forward.3} parent=1 // pred_fallthru
      _
    // Predicated region
    $region26: #{net_forward.3} parent=1 // pred_check
      _
    $region27: #{net_forward.3} parent=1 // pred_check_branch
      %28 = sbr.rel (0) target = $region29
    $region28: #{net_forward.3} parent=1 // pred_region
      _
    $region29: #{net_forward.3} parent=1 // pred_fallthru
      _
    // Predicated region
    $region30: #{net_forward.3} parent=1 // pred_check
      _
    $region31: #{net_forward.3} parent=1 // pred_check_branch
      %30 = sbr.rel (0) target = $region33
    $region32: #{net_forward.3} parent=1 // pred_region
      _
    $region33: #{net_forward.3} parent=1 // pred_fallthru
      _
    // Predicated region
    $region34: #{net_forward.3} parent=1 // pred_check
      _
    $region35: #{net_forward.3} parent=1 // pred_check_branch
      %32 = sbr.rel (0) target = $region37
    $region36: #{net_forward.3} parent=1 // pred_region
      _
    $region37: #{net_forward.3} parent=1 // pred_fallthru
      _
    %v34 = vld [vmem:[%s0] sm:$0xff]
    %v35 = vld [vmem:[%s0 + $0x8] sm:$0xff]
    %v36 = vld [vmem:[%s0 + $0x10] sm:$0xff]
    %v37 = vld [vmem:[%s0 + $0x18] sm:$0xff]
    %v38 = vld [vmem:[%s0 + $0x20] sm:$0xff]
    %v39 = vld [vmem:[%s0 + $0x28] sm:$0xff]
    %v40 = vld [vmem:[%s0 + $0x30] sm:$0x11]
    %v41 = vld [vmem:[%s1] sm:$0xf]
    %v42 = vld [vmem:[%s1 + $0x4] sm:$0xf]
    %v43 = vld [vmem:[%s1 + $0x8] sm:$0xf]
    %v44 = vld [vmem:[%s1 + $0xc] sm:$0xf]
    %v45 = vld [vmem:[%s1 + $0x10] sm:$0xf]
    %v46 = vld [vmem:[%s1 + $0x14] sm:$0xf]
    %v47 = vld [vmem:[%s1 + $0x18] sm:$0xf]
    %v48 = vld [vmem:[%s1 + $0x1c] sm:$0xf]
    %v49 = vld [vmem:[%s1 + $0x20] sm:$0xf]
    %v50 = vld [vmem:[%s1 + $0x24] sm:$0xf]
    %v51 = vld [vmem:[%s1 + $0x28] sm:$0xf]
    %v52 = vld [vmem:[%s1 + $0x2c] sm:$0xf]
    %v53 = vld [vmem:[%s1 + $0x30] sm:$0xf]
    %v54 = vld [vmem:[%s1 + $0x34] sm:$0xf]
    %v55 = vld [vmem:[%s1 + $0x38] sm:$0xf]
    %v56 = vld [vmem:[%s1 + $0x3c] sm:$0xf]
    %v57 = vld [vmem:[%s1 + $0x40] sm:$0xf]
    %v58 = vld [vmem:[%s1 + $0x44] sm:$0xf]
    %v59 = vld [vmem:[%s1 + $0x48] sm:$0xf]
    %v60 = vld [vmem:[%s1 + $0x4c] sm:$0xf]
    %v61 = vld [vmem:[%s1 + $0x50] sm:$0xf]
    %v62 = vld [vmem:[%s1 + $0x54] sm:$0xf]
    %v63 = vld [vmem:[%s1 + $0x58] sm:$0xf]
    %v64 = vld [vmem:[%s1 + $0x5c] sm:$0xf]
    %v65 = vld [vmem:[%s1 + $0x60] sm:$0xf]
    %v66 = vld [vmem:[%s1 + $0x64] sm:$0xf]
    %v67 = vld [vmem:[%s1 + $0x68] sm:$0xf]
    %v68 = vld [vmem:[%s1 + $0x6c] sm:$0xf]
    %v69 = vld [vmem:[%s1 + $0x70] sm:$0xf]
    %v70 = vld [vmem:[%s1 + $0x74] sm:$0xf]
    %v71 = vld [vmem:[%s1 + $0x78] sm:$0xf]
    %v72 = vld [vmem:[%s1 + $0x7c] sm:$0xf]
    %v80 = vunpack.c.l.b16 %v34
    %v81 = vunpack.c.h.b16 %v34
    %v82 = vunpack.c.l.b16 %v35
    %v83 = vunpack.c.h.b16 %v35
    %v84 = vunpack.c.l.b16 %v36
    %v85 = vunpack.c.h.b16 %v36
    %v86 = vunpack.c.l.b16 %v37
    %v87 = vunpack.c.h.b16 %v37
    %v88 = vunpack.c.l.b16 %v38
    %v89 = vunpack.c.h.b16 %v38
    %v90 = vunpack.c.l.b16 %v39
    %v91 = vunpack.c.h.b16 %v39
    %v92 = vunpack.c.l.b16 %v40
    %v93 = vunpack.c.h.b16 %v40
    %v94 = vpack.c.b16 %v82, %v80
    %v95 = vpack.c.b16 %v83, %v81
    %v96 = vpack.c.b16 %v86, %v84
    %v97 = vpack.c.b16 %v87, %v85
    %v98 = vpack.c.b16 %v90, %v88
    %v99 = vpack.c.b16 %v91, %v89
    %v100 = vpack.c.b16 %v92, %v92
    %v101 = vpack.c.b16 %v93, %v93
    %v142 = vunpack.c.l.b16 %v41
    %v143 = vunpack.c.l.b16 %v42
    %v144 = vunpack.c.l.b16 %v43
    %v145 = vunpack.c.l.b16 %v44
    %v146 = vunpack.c.l.b16 %v45
    %v147 = vunpack.c.l.b16 %v46
    %v148 = vunpack.c.l.b16 %v47
    %v149 = vunpack.c.l.b16 %v48
    %v150 = vunpack.c.l.b16 %v49
    %v151 = vunpack.c.l.b16 %v50
    %v152 = vunpack.c.l.b16 %v51
    %v153 = vunpack.c.l.b16 %v52
    %v154 = vunpack.c.l.b16 %v53
    %v155 = vunpack.c.l.b16 %v54
    %v156 = vunpack.c.l.b16 %v55
    %v157 = vunpack.c.l.b16 %v56
    %v158 = vunpack.c.l.b16 %v57
    %v159 = vunpack.c.l.b16 %v58
    %v160 = vunpack.c.l.b16 %v59
    %v161 = vunpack.c.l.b16 %v60
    %v162 = vunpack.c.l.b16 %v61
    %v163 = vunpack.c.l.b16 %v62
    %v164 = vunpack.c.l.b16 %v63
    %v165 = vunpack.c.l.b16 %v64
    %v166 = vunpack.c.l.b16 %v65
    %v167 = vunpack.c.l.b16 %v66
    %v168 = vunpack.c.l.b16 %v67
    %v169 = vunpack.c.l.b16 %v68
    %v170 = vunpack.c.l.b16 %v69
    %v171 = vunpack.c.l.b16 %v70
    %v172 = vunpack.c.l.b16 %v71
    %v173 = vunpack.c.l.b16 %v72
    %v174 = vpack.c.b16 %v143, %v142
    %v175 = vpack.c.b16 %v145, %v144
    %v176 = vpack.c.b16 %v147, %v146
    %v177 = vpack.c.b16 %v149, %v148
    %v178 = vpack.c.b16 %v151, %v150
    %v179 = vpack.c.b16 %v153, %v152
    %v180 = vpack.c.b16 %v155, %v154
    %v181 = vpack.c.b16 %v157, %v156
    %v182 = vpack.c.b16 %v159, %v158
    %v183 = vpack.c.b16 %v161, %v160
    %v184 = vpack.c.b16 %v163, %v162
    %v185 = vpack.c.b16 %v165, %v164
    %v186 = vpack.c.b16 %v167, %v166
    %v187 = vpack.c.b16 %v169, %v168
    %v188 = vpack.c.b16 %v171, %v170
    %v189 = vpack.c.b16 %v173, %v172
    %206 = vmatprep.subr.bf16.mxu0 0
    %207 = vmatpush1.bf16.msra.mxu0 %v181
    %208 = vmatprep.subr.bf16.mxu0 0
    %209 = vmatpush1.bf16.msra.mxu0 %v180
    %210 = vmatprep.subr.bf16.mxu0 0
    %211 = vmatpush1.bf16.msra.mxu0 %v179
    %212 = vmatprep.subr.bf16.mxu0 0
    %213 = vmatpush1.bf16.msra.mxu0 %v178
    %214 = vmatprep.subr.bf16.mxu0 0
    %215 = vmatpush1.bf16.msra.mxu0 %v177
    %216 = vmatprep.subr.bf16.mxu0 0
    %217 = vmatpush1.bf16.msra.mxu0 %v176
    %218 = vmatprep.subr.bf16.mxu0 0
    %219 = vmatpush1.bf16.msra.mxu0 %v175
    %220 = vmatprep.subr.bf16.mxu0 0
    %221 = vmatpush1.bf16.msra.mxu0 %v174
    %222 = vmatprep.subr.bf16.mxu0 0
    %223 = vmatpush2.bf16.msra.mxu0 %v189
    %224 = vmatprep.subr.bf16.mxu0 0
    %225 = vmatpush2.bf16.msra.mxu0 %v188
    %226 = vmatprep.subr.bf16.mxu0 0
    %227 = vmatpush2.bf16.msra.mxu0 %v187
    %228 = vmatprep.subr.bf16.mxu0 0
    %229 = vmatpush2.bf16.msra.mxu0 %v186
    %230 = vmatprep.subr.bf16.mxu0 0
    %231 = vmatpush2.bf16.msra.mxu0 %v185
    %232 = vmatprep.subr.bf16.mxu0 0
    %233 = vmatpush2.bf16.msra.mxu0 %v184
    %234 = vmatprep.subr.bf16.mxu0 0
    %235 = vmatpush2.bf16.msra.mxu0 %v183
    %236 = vmatprep.subr.bf16.mxu0 0
    %237 = vmatpush2.bf16.msra.mxu0 %v182
    %238 = vmatprep.mubr.bf16.mxu0 %v95
    %239 = vmatmul.mubr.bf16.gmra.mxu0 %v94
    %v240 = vpop.f32.mrf.mxu0
    %v241 = vadd.f32 0.0, %v240
    %v242 = vpop.f32.mrf.mxu0
    %v243 = vpop.f32.mrf.mxu0
    %v244 = vadd.f32 0.0, %v243
    %v245 = vpop.f32.mrf.mxu0
    %246 = vmatprep.mubr.bf16.mxu0 %v97
    %247 = vmatmul.mubr.bf16.gmra.mxu0 %v96
    %v248 = vpop.f32.mrf.mxu0
    %v249 = vadd.f32 0.0, %v248
    %v250 = vpop.f32.mrf.mxu0
    %v251 = vpop.f32.mrf.mxu0
    %v252 = vadd.f32 0.0, %v251
    %v253 = vpop.f32.mrf.mxu0
    %254 = vmatprep.mubr.bf16.mxu0 %v99
    %255 = vmatmul.mubr.bf16.gmra.mxu0 %v98
    %v256 = vpop.f32.mrf.mxu0
    %v257 = vadd.f32 0.0, %v256
    %v258 = vpop.f32.mrf.mxu0
    %v259 = vpop.f32.mrf.mxu0
    %v260 = vadd.f32 0.0, %v259
    %v261 = vpop.f32.mrf.mxu0
    %262 = vmatprep.mubr.bf16.mxu0 %v101
    %263 = vmatmul.mubr.bf16.gmra.mxu0 %v100
    %v264 = vpop.f32.mrf.mxu0
    %v265 = vadd.f32 0.0, %v264
    %v266 = vpop.f32.mrf.mxu0
    %v267 = vpop.f32.mrf.mxu0
    %v268 = vpop.f32.mrf.mxu0
    %269 = vdwg.mxu0
    %s270 = scalar_lea.vmem %s0, 56
    %v271 = vld [vmem:[%s270] sm:$0xff]
    %v272 = vld [vmem:[%s270 + $0x8] sm:$0xff]
    %v273 = vld [vmem:[%s270 + $0x10] sm:$0xff]
    %v274 = vld [vmem:[%s270 + $0x18] sm:$0xff]
    %v275 = vld [vmem:[%s270 + $0x20] sm:$0xff]
    %v276 = vld [vmem:[%s270 + $0x28] sm:$0xff]
    %v277 = vld [vmem:[%s270 + $0x30] sm:$0x11]
    %v285 = vunpack.c.l.b16 %v271
    %v286 = vunpack.c.h.b16 %v271
    %v287 = vunpack.c.l.b16 %v272
    %v288 = vunpack.c.h.b16 %v272
    %v289 = vunpack.c.l.b16 %v273
    %v290 = vunpack.c.h.b16 %v273
    %v291 = vunpack.c.l.b16 %v274
    %v292 = vunpack.c.h.b16 %v274
    %v293 = vunpack.c.l.b16 %v275
    %v294 = vunpack.c.h.b16 %v275
    %v295 = vunpack.c.l.b16 %v276
    %v296 = vunpack.c.h.b16 %v276
    %v297 = vunpack.c.l.b16 %v277
    %v298 = vunpack.c.h.b16 %v277
    %v299 = vpack.c.b16 %v287, %v285
    %v300 = vpack.c.b16 %v288, %v286
    %v301 = vpack.c.b16 %v291, %v289
    %v302 = vpack.c.b16 %v292, %v290
    %v303 = vpack.c.b16 %v295, %v293
    %v304 = vpack.c.b16 %v296, %v294
    %v305 = vpack.c.b16 %v297, %v297
    %v306 = vpack.c.b16 %v298, %v298
    %315 = vmatprep.subr.bf16.mxu0 0
    %316 = vmatpush1.bf16.msra.mxu0 %v181
    %317 = vmatprep.subr.bf16.mxu0 0
    %318 = vmatpush1.bf16.msra.mxu0 %v180
    %319 = vmatprep.subr.bf16.mxu0 0
    %320 = vmatpush1.bf16.msra.mxu0 %v179
    %321 = vmatprep.subr.bf16.mxu0 0
    %322 = vmatpush1.bf16.msra.mxu0 %v178
    %323 = vmatprep.subr.bf16.mxu0 0
    %324 = vmatpush1.bf16.msra.mxu0 %v177
    %325 = vmatprep.subr.bf16.mxu0 0
    %326 = vmatpush1.bf16.msra.mxu0 %v176
    %327 = vmatprep.subr.bf16.mxu0 0
    %328 = vmatpush1.bf16.msra.mxu0 %v175
    %329 = vmatprep.subr.bf16.mxu0 0
    %330 = vmatpush1.bf16.msra.mxu0 %v174
    %331 = vmatprep.subr.bf16.mxu0 0
    %332 = vmatpush2.bf16.msra.mxu0 %v189
    %333 = vmatprep.subr.bf16.mxu0 0
    %334 = vmatpush2.bf16.msra.mxu0 %v188
    %335 = vmatprep.subr.bf16.mxu0 0
    %336 = vmatpush2.bf16.msra.mxu0 %v187
    %337 = vmatprep.subr.bf16.mxu0 0
    %338 = vmatpush2.bf16.msra.mxu0 %v186
    %339 = vmatprep.subr.bf16.mxu0 0
    %340 = vmatpush2.bf16.msra.mxu0 %v185
    %341 = vmatprep.subr.bf16.mxu0 0
    %342 = vmatpush2.bf16.msra.mxu0 %v184
    %343 = vmatprep.subr.bf16.mxu0 0
    %344 = vmatpush2.bf16.msra.mxu0 %v183
    %345 = vmatprep.subr.bf16.mxu0 0
    %346 = vmatpush2.bf16.msra.mxu0 %v182
    %347 = vmatprep.mubr.bf16.mxu0 %v300
    %348 = vmatmul.mubr.bf16.gmra.mxu0 %v299
    %v349 = vpop.f32.mrf.mxu0
    %v350 = vadd.f32 0.0, %v349
    %v351 = vpop.f32.mrf.mxu0
    %v352 = vpop.f32.mrf.mxu0
    %v353 = vadd.f32 0.0, %v352
    %v354 = vpop.f32.mrf.mxu0
    %355 = vmatprep.mubr.bf16.mxu0 %v302
    %356 = vmatmul.mubr.bf16.gmra.mxu0 %v301
    %v357 = vpop.f32.mrf.mxu0
    %v358 = vadd.f32 0.0, %v357
    %v359 = vpop.f32.mrf.mxu0
    %v360 = vpop.f32.mrf.mxu0
    %v361 = vadd.f32 0.0, %v360
    %v362 = vpop.f32.mrf.mxu0
    %363 = vmatprep.mubr.bf16.mxu0 %v304
    %364 = vmatmul.mubr.bf16.gmra.mxu0 %v303
    %v365 = vpop.f32.mrf.mxu0
    %v366 = vadd.f32 0.0, %v365
    %v367 = vpop.f32.mrf.mxu0
    %v368 = vpop.f32.mrf.mxu0
    %v369 = vadd.f32 0.0, %v368
    %v370 = vpop.f32.mrf.mxu0
    %371 = vmatprep.mubr.bf16.mxu0 %v306
    %372 = vmatmul.mubr.bf16.gmra.mxu0 %v305
    %v373 = vpop.f32.mrf.mxu0
    %v374 = vadd.f32 0.0, %v373
    %v375 = vpop.f32.mrf.mxu0
    %v376 = vpop.f32.mrf.mxu0
    %v377 = vpop.f32.mrf.mxu0
    %378 = vdwg.mxu0
    %v379 = vmax.f32 %v241, %v350
    %v380 = vmax.f32 %v244, %v353
    %v381 = vmax.f32 %v249, %v358
    %v382 = vmax.f32 %v252, %v361
    %v383 = vmax.f32 %v257, %v366
    %v384 = vmax.f32 %v260, %v369
    %v385 = vmax.f32 %v265, %v374
    %s386 = scalar_lea.vmem %s0, 112
    %v387 = vld [vmem:[%s386] sm:$0xff]
    %v388 = vld [vmem:[%s386 + $0x8] sm:$0xff]
    %v389 = vld [vmem:[%s386 + $0x10] sm:$0xff]
    %v390 = vld [vmem:[%s386 + $0x18] sm:$0xff]
    %v391 = vld [vmem:[%s386 + $0x20] sm:$0xff]
    %v392 = vld [vmem:[%s386 + $0x28] sm:$0xff]
    %v393 = vld [vmem:[%s386 + $0x30] sm:$0x11]
    %v401 = vunpack.c.l.b16 %v387
    %v402 = vunpack.c.h.b16 %v387
    %v403 = vunpack.c.l.b16 %v388
    %v404 = vunpack.c.h.b16 %v388
    %v405 = vunpack.c.l.b16 %v389
    %v406 = vunpack.c.h.b16 %v389
    %v407 = vunpack.c.l.b16 %v390
    %v408 = vunpack.c.h.b16 %v390
    %v409 = vunpack.c.l.b16 %v391
    %v410 = vunpack.c.h.b16 %v391
    %v411 = vunpack.c.l.b16 %v392
    %v412 = vunpack.c.h.b16 %v392
    %v413 = vunpack.c.l.b16 %v393
    %v414 = vunpack.c.h.b16 %v393
    %v415 = vpack.c.b16 %v403, %v401
    %v416 = vpack.c.b16 %v404, %v402
    %v417 = vpack.c.b16 %v407, %v405
    %v418 = vpack.c.b16 %v408, %v406
    %v419 = vpack.c.b16 %v411, %v409
    %v420 = vpack.c.b16 %v412, %v410
    %v421 = vpack.c.b16 %v413, %v413
    %v422 = vpack.c.b16 %v414, %v414
    %431 = vmatprep.subr.bf16.mxu0 0
    %432 = vmatpush1.bf16.msra.mxu0 %v181
    %433 = vmatprep.subr.bf16.mxu0 0
    %434 = vmatpush1.bf16.msra.mxu0 %v180
    %435 = vmatprep.subr.bf16.mxu0 0
    %436 = vmatpush1.bf16.msra.mxu0 %v179
    %437 = vmatprep.subr.bf16.mxu0 0
    %438 = vmatpush1.bf16.msra.mxu0 %v178
    %439 = vmatprep.subr.bf16.mxu0 0
    %440 = vmatpush1.bf16.msra.mxu0 %v177
    %441 = vmatprep.subr.bf16.mxu0 0
    %442 = vmatpush1.bf16.msra.mxu0 %v176
    %443 = vmatprep.subr.bf16.mxu0 0
    %444 = vmatpush1.bf16.msra.mxu0 %v175
    %445 = vmatprep.subr.bf16.mxu0 0
    %446 = vmatpush1.bf16.msra.mxu0 %v174
    %447 = vmatprep.subr.bf16.mxu0 0
    %448 = vmatpush2.bf16.msra.mxu0 %v189
    %449 = vmatprep.subr.bf16.mxu0 0
    %450 = vmatpush2.bf16.msra.mxu0 %v188
    %451 = vmatprep.subr.bf16.mxu0 0
    %452 = vmatpush2.bf16.msra.mxu0 %v187
    %453 = vmatprep.subr.bf16.mxu0 0
    %454 = vmatpush2.bf16.msra.mxu0 %v186
    %455 = vmatprep.subr.bf16.mxu0 0
    %456 = vmatpush2.bf16.msra.mxu0 %v185
    %457 = vmatprep.subr.bf16.mxu0 0
    %458 = vmatpush2.bf16.msra.mxu0 %v184
    %459 = vmatprep.subr.bf16.mxu0 0
    %460 = vmatpush2.bf16.msra.mxu0 %v183
    %461 = vmatprep.subr.bf16.mxu0 0
    %462 = vmatpush2.bf16.msra.mxu0 %v182
    %463 = vmatprep.mubr.bf16.mxu0 %v416
    %464 = vmatmul.mubr.bf16.gmra.mxu0 %v415
    %v465 = vpop.f32.mrf.mxu0
    %v466 = vadd.f32 0.0, %v465
    %v467 = vpop.f32.mrf.mxu0
    %v468 = vpop.f32.mrf.mxu0
    %v469 = vadd.f32 0.0, %v468
    %v470 = vpop.f32.mrf.mxu0
    %471 = vmatprep.mubr.bf16.mxu0 %v418
    %472 = vmatmul.mubr.bf16.gmra.mxu0 %v417
    %v473 = vpop.f32.mrf.mxu0
    %v474 = vadd.f32 0.0, %v473
    %v475 = vpop.f32.mrf.mxu0
    %v476 = vpop.f32.mrf.mxu0
    %v477 = vadd.f32 0.0, %v476
    %v478 = vpop.f32.mrf.mxu0
    %479 = vmatprep.mubr.bf16.mxu0 %v420
    %480 = vmatmul.mubr.bf16.gmra.mxu0 %v419
    %v481 = vpop.f32.mrf.mxu0
    %v482 = vadd.f32 0.0, %v481
    %v483 = vpop.f32.mrf.mxu0
    %v484 = vpop.f32.mrf.mxu0
    %v485 = vadd.f32 0.0, %v484
    %v486 = vpop.f32.mrf.mxu0
    %487 = vmatprep.mubr.bf16.mxu0 %v422
    %488 = vmatmul.mubr.bf16.gmra.mxu0 %v421
    %v489 = vpop.f32.mrf.mxu0
    %v490 = vadd.f32 0.0, %v489
    %v491 = vpop.f32.mrf.mxu0
    %v492 = vpop.f32.mrf.mxu0
    %v493 = vpop.f32.mrf.mxu0
    %494 = vdwg.mxu0
    %v495 = vmax.f32 %v379, %v466
    %v496 = vmax.f32 %v380, %v469
    %v497 = vmax.f32 %v381, %v474
    %v498 = vmax.f32 %v382, %v477
    %v499 = vmax.f32 %v383, %v482
    %v500 = vmax.f32 %v384, %v485
    %v501 = vmax.f32 %v385, %v490
    %s502 = scalar_lea.vmem %s0, 168
    %v503 = vld [vmem:[%s502] sm:$0xff]
    %v504 = vld [vmem:[%s502 + $0x8] sm:$0xff]
    %v505 = vld [vmem:[%s502 + $0x10] sm:$0xff]
    %v506 = vld [vmem:[%s502 + $0x18] sm:$0xff]
    %v507 = vld [vmem:[%s502 + $0x20] sm:$0xff]
    %v508 = vld [vmem:[%s502 + $0x28] sm:$0xff]
    %v509 = vld [vmem:[%s502 + $0x30] sm:$0x11]
    %v517 = vunpack.c.l.b16 %v503
    %v518 = vunpack.c.h.b16 %v503
    %v519 = vunpack.c.l.b16 %v504
    %v520 = vunpack.c.h.b16 %v504
    %v521 = vunpack.c.l.b16 %v505
    %v522 = vunpack.c.h.b16 %v505
    %v523 = vunpack.c.l.b16 %v506
    %v524 = vunpack.c.h.b16 %v506
    %v525 = vunpack.c.l.b16 %v507
    %v526 = vunpack.c.h.b16 %v507
    %v527 = vunpack.c.l.b16 %v508
    %v528 = vunpack.c.h.b16 %v508
    %v529 = vunpack.c.l.b16 %v509
    %v530 = vunpack.c.h.b16 %v509
    %v531 = vpack.c.b16 %v519, %v517
    %v532 = vpack.c.b16 %v520, %v518
    %v533 = vpack.c.b16 %v523, %v521
    %v534 = vpack.c.b16 %v524, %v522
    %v535 = vpack.c.b16 %v527, %v525
    %v536 = vpack.c.b16 %v528, %v526
    %v537 = vpack.c.b16 %v529, %v529
    %v538 = vpack.c.b16 %v530, %v530
    %547 = vmatprep.subr.bf16.mxu0 0
    %548 = vmatpush1.bf16.msra.mxu0 %v181
    %549 = vmatprep.subr.bf16.mxu0 0
    %550 = vmatpush1.bf16.msra.mxu0 %v180
    %551 = vmatprep.subr.bf16.mxu0 0
    %552 = vmatpush1.bf16.msra.mxu0 %v179
    %553 = vmatprep.subr.bf16.mxu0 0
    %554 = vmatpush1.bf16.msra.mxu0 %v178
    %555 = vmatprep.subr.bf16.mxu0 0
    %556 = vmatpush1.bf16.msra.mxu0 %v177
    %557 = vmatprep.subr.bf16.mxu0 0
    %558 = vmatpush1.bf16.msra.mxu0 %v176
    %559 = vmatprep.subr.bf16.mxu0 0
    %560 = vmatpush1.bf16.msra.mxu0 %v175
    %561 = vmatprep.subr.bf16.mxu0 0
    %562 = vmatpush1.bf16.msra.mxu0 %v174
    %563 = vmatprep.subr.bf16.mxu0 0
    %564 = vmatpush2.bf16.msra.mxu0 %v189
    %565 = vmatprep.subr.bf16.mxu0 0
    %566 = vmatpush2.bf16.msra.mxu0 %v188
    %567 = vmatprep.subr.bf16.mxu0 0
    %568 = vmatpush2.bf16.msra.mxu0 %v187
    %569 = vmatprep.subr.bf16.mxu0 0
    %570 = vmatpush2.bf16.msra.mxu0 %v186
    %571 = vmatprep.subr.bf16.mxu0 0
    %572 = vmatpush2.bf16.msra.mxu0 %v185
    %573 = vmatprep.subr.bf16.mxu0 0
    %574 = vmatpush2.bf16.msra.mxu0 %v184
    %575 = vmatprep.subr.bf16.mxu0 0
    %576 = vmatpush2.bf16.msra.mxu0 %v183
    %577 = vmatprep.subr.bf16.mxu0 0
    %578 = vmatpush2.bf16.msra.mxu0 %v182
    %579 = vmatprep.mubr.bf16.mxu0 %v532
    %580 = vmatmul.mubr.bf16.gmra.mxu0 %v531
    %v581 = vpop.f32.mrf.mxu0
    %v582 = vadd.f32 0.0, %v581
    %v583 = vpop.f32.mrf.mxu0
    %v584 = vpop.f32.mrf.mxu0
    %v585 = vadd.f32 0.0, %v584
    %v586 = vpop.f32.mrf.mxu0
    %587 = vmatprep.mubr.bf16.mxu0 %v534
    %588 = vmatmul.mubr.bf16.gmra.mxu0 %v533
    %v589 = vpop.f32.mrf.mxu0
    %v590 = vadd.f32 0.0, %v589
    %v591 = vpop.f32.mrf.mxu0
    %v592 = vpop.f32.mrf.mxu0
    %v593 = vadd.f32 0.0, %v592
    %v594 = vpop.f32.mrf.mxu0
    %595 = vmatprep.mubr.bf16.mxu0 %v536
    %596 = vmatmul.mubr.bf16.gmra.mxu0 %v535
    %v597 = vpop.f32.mrf.mxu0
    %v598 = vadd.f32 0.0, %v597
    %v599 = vpop.f32.mrf.mxu0
    %v600 = vpop.f32.mrf.mxu0
    %v601 = vadd.f32 0.0, %v600
    %v602 = vpop.f32.mrf.mxu0
    %603 = vmatprep.mubr.bf16.mxu0 %v538
    %604 = vmatmul.mubr.bf16.gmra.mxu0 %v537
    %v605 = vpop.f32.mrf.mxu0
    %v606 = vadd.f32 0.0, %v605
    %v607 = vpop.f32.mrf.mxu0
    %v608 = vpop.f32.mrf.mxu0
    %v609 = vpop.f32.mrf.mxu0
    %610 = vdwg.mxu0
    %v611 = vmax.f32 %v495, %v582
    %v612 = vmax.f32 %v496, %v585
    %v613 = vmax.f32 %v497, %v590
    %v614 = vmax.f32 %v498, %v593
    %v615 = vmax.f32 %v499, %v598
    %v616 = vmax.f32 %v500, %v601
    %v617 = vmax.f32 %v501, %v606
    %v618 = vld [vmem:[%s2] sm:$0x1]
    %v620 = vlaneseq
    %v621 = vshrl.u32 %v620, 7
    %v622 = vsub.s32 0, %v621
    %v623 = vrot.slane %v618, %v622
    %v625 = vadd.f32 %v611, %v623
    %v626 = vadd.f32 %v612, %v623
    %v627 = vadd.f32 %v613, %v623
    %v628 = vadd.f32 %v614, %v623
    %v629 = vadd.f32 %v615, %v623
    %v630 = vadd.f32 %v616, %v623
    %v631 = vadd.f32 %v617, %v623
    %v632 = vmax.f32 %v625, 0.0
    %v633 = vmax.f32 %v626, 0.0
    %v634 = vmax.f32 %v627, 0.0
    %v635 = vmax.f32 %v628, 0.0
    %v636 = vmax.f32 %v629, 0.0
    %v637 = vmax.f32 %v630, 0.0
    %v638 = vmax.f32 %v631, 0.0
    %v639 = vpack.c.bf16 %v633, %v632
    %v640 = vpack.c.bf16 %v635, %v634
    %v641 = vpack.c.bf16 %v637, %v636
    %v642 = vpack.c.bf16 %v638, %v638
    %v643 = vld [vmem:[%s3] sm:$0xf]
    %v644 = vld [vmem:[%s3 + $0x4] sm:$0xf]
    %s645 = scalar_lea.vmem %s3, 8
    %v646 = vld [vmem:[%s645] sm:$0xf]
    %v647 = vld [vmem:[%s645 + $0x4] sm:$0xf]
    %v649 = vrot.slane %v639, 1
    %v652 = vunpack.c.l.b16 %v646
    %v653 = vunpack.c.l.b16 %v647
    %v654 = vpack.c.b16 %v653, %v652
    %vm656 = vcmask 130048
    %v658 = vsel %vm656, %v649, 0
    %660 = vmatprep.subr.bf16.mxu0 0
    %661 = vmatpush1.bf16.msra.mxu0 0
    %662 = vmatprep.subr.bf16.mxu0 0
    %663 = vmatpush1.bf16.msra.mxu0 0
    %664 = vmatprep.subr.bf16.mxu0 0
    %665 = vmatpush1.bf16.msra.mxu0 0
    %666 = vmatprep.subr.bf16.mxu0 0
    %667 = vmatpush1.bf16.msra.mxu0 0
    %668 = vmatprep.subr.bf16.mxu0 0
    %669 = vmatpush1.bf16.msra.mxu0 0
    %670 = vmatprep.subr.bf16.mxu0 0
    %671 = vmatpush1.bf16.msra.mxu0 0
    %672 = vmatprep.subr.bf16.mxu0 0
    %673 = vmatpush1.bf16.msra.mxu0 0
    %674 = vmatprep.subr.bf16.mxu0 0
    %675 = vmatpush1.bf16.msra.mxu0 %v654
    %676 = vmatprep.subr.bf16.mxu0 0
    %677 = vmatpush2.bf16.msra.mxu0 0
    %678 = vmatprep.subr.bf16.mxu0 0
    %679 = vmatpush2.bf16.msra.mxu0 0
    %680 = vmatprep.subr.bf16.mxu0 0
    %681 = vmatpush2.bf16.msra.mxu0 0
    %682 = vmatprep.subr.bf16.mxu0 0
    %683 = vmatpush2.bf16.msra.mxu0 0
    %684 = vmatprep.subr.bf16.mxu0 0
    %685 = vmatpush2.bf16.msra.mxu0 0
    %686 = vmatprep.subr.bf16.mxu0 0
    %687 = vmatpush2.bf16.msra.mxu0 0
    %688 = vmatprep.subr.bf16.mxu0 0
    %689 = vmatpush2.bf16.msra.mxu0 0
    %690 = vmatprep.subr.bf16.mxu0 0
    %691 = vmatpush2.bf16.msra.mxu0 0
    %692 = vmatprep.mubr.bf16.mxu0 0
    %693 = vmatmul.mubr.bf16.gmra.mxu0 %v658
    %v694 = vpop.f32.mrf.mxu0
    %v695 = vadd.f32 0.0, %v694
    %v696 = vpop.f32.mrf.mxu0
    %v697 = vpop.f32.mrf.mxu0
    %v698 = vpop.f32.mrf.mxu0
    %699 = vdwg.mxu0
    %v702 = vunpack.c.l.b16 %v643
    %v703 = vunpack.c.l.b16 %v644
    %v704 = vpack.c.b16 %v703, %v702
    %v707 = vsel %vm656, %v639, 0
    %709 = vmatprep.subr.bf16.mxu0 0
    %710 = vmatpush1.bf16.msra.mxu0 0
    %711 = vmatprep.subr.bf16.mxu0 0
    %712 = vmatpush1.bf16.msra.mxu0 0
    %713 = vmatprep.subr.bf16.mxu0 0
    %714 = vmatpush1.bf16.msra.mxu0 0
    %715 = vmatprep.subr.bf16.mxu0 0
    %716 = vmatpush1.bf16.msra.mxu0 0
    %717 = vmatprep.subr.bf16.mxu0 0
    %718 = vmatpush1.bf16.msra.mxu0 0
    %719 = vmatprep.subr.bf16.mxu0 0
    %720 = vmatpush1.bf16.msra.mxu0 0
    %721 = vmatprep.subr.bf16.mxu0 0
    %722 = vmatpush1.bf16.msra.mxu0 0
    %723 = vmatprep.subr.bf16.mxu0 0
    %724 = vmatpush1.bf16.msra.mxu0 %v704
    %725 = vmatprep.subr.bf16.mxu0 0
    %726 = vmatpush2.bf16.msra.mxu0 0
    %727 = vmatprep.subr.bf16.mxu0 0
    %728 = vmatpush2.bf16.msra.mxu0 0
    %729 = vmatprep.subr.bf16.mxu0 0
    %730 = vmatpush2.bf16.msra.mxu0 0
    %731 = vmatprep.subr.bf16.mxu0 0
    %732 = vmatpush2.bf16.msra.mxu0 0
    %733 = vmatprep.subr.bf16.mxu0 0
    %734 = vmatpush2.bf16.msra.mxu0 0
    %735 = vmatprep.subr.bf16.mxu0 0
    %736 = vmatpush2.bf16.msra.mxu0 0
    %737 = vmatprep.subr.bf16.mxu0 0
    %738 = vmatpush2.bf16.msra.mxu0 0
    %739 = vmatprep.subr.bf16.mxu0 0
    %740 = vmatpush2.bf16.msra.mxu0 0
    %741 = vmatprep.mubr.bf16.mxu0 0
    %742 = vmatmul.mubr.bf16.gmra.mxu0 %v707
    %v743 = vpop.f32.mrf.mxu0
    %v744 = vadd.f32 %v695, %v743
    %v745 = vpop.f32.mrf.mxu0
    %v746 = vpop.f32.mrf.mxu0
    %v747 = vpop.f32.mrf.mxu0
    %748 = vdwg.mxu0
    %s749 = scalar_lea.vmem %s3, 16
    %v750 = vld [vmem:[%s749] sm:$0xf]
    %v751 = vld [vmem:[%s749 + $0x4] sm:$0xf]
    %v752 = vrot.slane %v639, 2
    %v755 = vunpack.c.l.b16 %v750
    %v756 = vunpack.c.l.b16 %v751
    %v757 = vpack.c.b16 %v756, %v755
    %v760 = vsel %vm656, %v752, 0
    %762 = vmatprep.subr.bf16.mxu0 0
    %763 = vmatpush1.bf16.msra.mxu0 0
    %764 = vmatprep.subr.bf16.mxu0 0
    %765 = vmatpush1.bf16.msra.mxu0 0
    %766 = vmatprep.subr.bf16.mxu0 0
    %767 = vmatpush1.bf16.msra.mxu0 0
    %768 = vmatprep.subr.bf16.mxu0 0
    %769 = vmatpush1.bf16.msra.mxu0 0
    %770 = vmatprep.subr.bf16.mxu0 0
    %771 = vmatpush1.bf16.msra.mxu0 0
    %772 = vmatprep.subr.bf16.mxu0 0
    %773 = vmatpush1.bf16.msra.mxu0 0
    %774 = vmatprep.subr.bf16.mxu0 0
    %775 = vmatpush1.bf16.msra.mxu0 0
    %776 = vmatprep.subr.bf16.mxu0 0
    %777 = vmatpush1.bf16.msra.mxu0 %v757
    %778 = vmatprep.subr.bf16.mxu0 0
    %779 = vmatpush2.bf16.msra.mxu0 0
    %780 = vmatprep.subr.bf16.mxu0 0
    %781 = vmatpush2.bf16.msra.mxu0 0
    %782 = vmatprep.subr.bf16.mxu0 0
    %783 = vmatpush2.bf16.msra.mxu0 0
    %784 = vmatprep.subr.bf16.mxu0 0
    %785 = vmatpush2.bf16.msra.mxu0 0
    %786 = vmatprep.subr.bf16.mxu0 0
    %787 = vmatpush2.bf16.msra.mxu0 0
    %788 = vmatprep.subr.bf16.mxu0 0
    %789 = vmatpush2.bf16.msra.mxu0 0
    %790 = vmatprep.subr.bf16.mxu0 0
    %791 = vmatpush2.bf16.msra.mxu0 0
    %792 = vmatprep.subr.bf16.mxu0 0
    %793 = vmatpush2.bf16.msra.mxu0 0
    %794 = vmatprep.mubr.bf16.mxu0 0
    %795 = vmatmul.mubr.bf16.gmra.mxu0 %v760
    %v796 = vpop.f32.mrf.mxu0
    %v797 = vadd.f32 0.0, %v796
    %v798 = vpop.f32.mrf.mxu0
    %v799 = vpop.f32.mrf.mxu0
    %v800 = vpop.f32.mrf.mxu0
    %801 = vdwg.mxu0
    %v802 = vadd.f32 %v744, %v797
    %s803 = scalar_lea.vmem %s3, 24
    %v804 = vld [vmem:[%s803] sm:$0xf]
    %v805 = vld [vmem:[%s803 + $0x4] sm:$0xf]
    %v806 = vrot.slane %v639, 3
    %v809 = vunpack.c.l.b16 %v804
    %v810 = vunpack.c.l.b16 %v805
    %v811 = vpack.c.b16 %v810, %v809
    %v814 = vsel %vm656, %v806, 0
    %816 = vmatprep.subr.bf16.mxu0 0
    %817 = vmatpush1.bf16.msra.mxu0 0
    %818 = vmatprep.subr.bf16.mxu0 0
    %819 = vmatpush1.bf16.msra.mxu0 0
    %820 = vmatprep.subr.bf16.mxu0 0
    %821 = vmatpush1.bf16.msra.mxu0 0
    %822 = vmatprep.subr.bf16.mxu0 0
    %823 = vmatpush1.bf16.msra.mxu0 0
    %824 = vmatprep.subr.bf16.mxu0 0
    %825 = vmatpush1.bf16.msra.mxu0 0
    %826 = vmatprep.subr.bf16.mxu0 0
    %827 = vmatpush1.bf16.msra.mxu0 0
    %828 = vmatprep.subr.bf16.mxu0 0
    %829 = vmatpush1.bf16.msra.mxu0 0
    %830 = vmatprep.subr.bf16.mxu0 0
    %831 = vmatpush1.bf16.msra.mxu0 %v811
    %832 = vmatprep.subr.bf16.mxu0 0
    %833 = vmatpush2.bf16.msra.mxu0 0
    %834 = vmatprep.subr.bf16.mxu0 0
    %835 = vmatpush2.bf16.msra.mxu0 0
    %836 = vmatprep.subr.bf16.mxu0 0
    %837 = vmatpush2.bf16.msra.mxu0 0
    %838 = vmatprep.subr.bf16.mxu0 0
    %839 = vmatpush2.bf16.msra.mxu0 0
    %840 = vmatprep.subr.bf16.mxu0 0
    %841 = vmatpush2.bf16.msra.mxu0 0
    %842 = vmatprep.subr.bf16.mxu0 0
    %843 = vmatpush2.bf16.msra.mxu0 0
    %844 = vmatprep.subr.bf16.mxu0 0
    %845 = vmatpush2.bf16.msra.mxu0 0
    %846 = vmatprep.subr.bf16.mxu0 0
    %847 = vmatpush2.bf16.msra.mxu0 0
    %848 = vmatprep.mubr.bf16.mxu0 0
    %849 = vmatmul.mubr.bf16.gmra.mxu0 %v814
    %v850 = vpop.f32.mrf.mxu0
    %v851 = vadd.f32 0.0, %v850
    %v852 = vpop.f32.mrf.mxu0
    %v853 = vpop.f32.mrf.mxu0
    %v854 = vpop.f32.mrf.mxu0
    %855 = vdwg.mxu0
    %v856 = vadd.f32 %v802, %v851
    %s857 = scalar_lea.vmem %s3, 32
    %v858 = vld [vmem:[%s857] sm:$0xf]
    %v859 = vld [vmem:[%s857 + $0x4] sm:$0xf]
    %v860 = vrot.slane %v639, 4
    %v863 = vunpack.c.l.b16 %v858
    %v864 = vunpack.c.l.b16 %v859
    %v865 = vpack.c.b16 %v864, %v863
    %v868 = vsel %vm656, %v860, 0
    %870 = vmatprep.subr.bf16.mxu0 0
    %871 = vmatpush1.bf16.msra.mxu0 0
    %872 = vmatprep.subr.bf16.mxu0 0
    %873 = vmatpush1.bf16.msra.mxu0 0
    %874 = vmatprep.subr.bf16.mxu0 0
    %875 = vmatpush1.bf16.msra.mxu0 0
    %876 = vmatprep.subr.bf16.mxu0 0
    %877 = vmatpush1.bf16.msra.mxu0 0
    %878 = vmatprep.subr.bf16.mxu0 0
    %879 = vmatpush1.bf16.msra.mxu0 0
    %880 = vmatprep.subr.bf16.mxu0 0
    %881 = vmatpush1.bf16.msra.mxu0 0
    %882 = vmatprep.subr.bf16.mxu0 0
    %883 = vmatpush1.bf16.msra.mxu0 0
    %884 = vmatprep.subr.bf16.mxu0 0
    %885 = vmatpush1.bf16.msra.mxu0 %v865
    %886 = vmatprep.subr.bf16.mxu0 0
    %887 = vmatpush2.bf16.msra.mxu0 0
    %888 = vmatprep.subr.bf16.mxu0 0
    %889 = vmatpush2.bf16.msra.mxu0 0
    %890 = vmatprep.subr.bf16.mxu0 0
    %891 = vmatpush2.bf16.msra.mxu0 0
    %892 = vmatprep.subr.bf16.mxu0 0
    %893 = vmatpush2.bf16.msra.mxu0 0
    %894 = vmatprep.subr.bf16.mxu0 0
    %895 = vmatpush2.bf16.msra.mxu0 0
    %896 = vmatprep.subr.bf16.mxu0 0
    %897 = vmatpush2.bf16.msra.mxu0 0
    %898 = vmatprep.subr.bf16.mxu0 0
    %899 = vmatpush2.bf16.msra.mxu0 0
    %900 = vmatprep.subr.bf16.mxu0 0
    %901 = vmatpush2.bf16.msra.mxu0 0
    %902 = vmatprep.mubr.bf16.mxu0 0
    %903 = vmatmul.mubr.bf16.gmra.mxu0 %v868
    %v904 = vpop.f32.mrf.mxu0
    %v905 = vadd.f32 0.0, %v904
    %v906 = vpop.f32.mrf.mxu0
    %v907 = vpop.f32.mrf.mxu0
    %v908 = vpop.f32.mrf.mxu0
    %909 = vdwg.mxu0
    %v910 = vadd.f32 %v856, %v905
    %s911 = scalar_lea.vmem %s3, 40
    %v912 = vld [vmem:[%s911] sm:$0xf]
    %v913 = vld [vmem:[%s911 + $0x4] sm:$0xf]
    %v914 = vrot.slane %v639, 5
    %v917 = vunpack.c.l.b16 %v912
    %v918 = vunpack.c.l.b16 %v913
    %v919 = vpack.c.b16 %v918, %v917
    %v922 = vsel %vm656, %v914, 0
    %924 = vmatprep.subr.bf16.mxu0 0
    %925 = vmatpush1.bf16.msra.mxu0 0
    %926 = vmatprep.subr.bf16.mxu0 0
    %927 = vmatpush1.bf16.msra.mxu0 0
    %928 = vmatprep.subr.bf16.mxu0 0
    %929 = vmatpush1.bf16.msra.mxu0 0
    %930 = vmatprep.subr.bf16.mxu0 0
    %931 = vmatpush1.bf16.msra.mxu0 0
    %932 = vmatprep.subr.bf16.mxu0 0
    %933 = vmatpush1.bf16.msra.mxu0 0
    %934 = vmatprep.subr.bf16.mxu0 0
    %935 = vmatpush1.bf16.msra.mxu0 0
    %936 = vmatprep.subr.bf16.mxu0 0
    %937 = vmatpush1.bf16.msra.mxu0 0
    %938 = vmatprep.subr.bf16.mxu0 0
    %939 = vmatpush1.bf16.msra.mxu0 %v919
    %940 = vmatprep.subr.bf16.mxu0 0
    %941 = vmatpush2.bf16.msra.mxu0 0
    %942 = vmatprep.subr.bf16.mxu0 0
    %943 = vmatpush2.bf16.msra.mxu0 0
    %944 = vmatprep.subr.bf16.mxu0 0
    %945 = vmatpush2.bf16.msra.mxu0 0
    %946 = vmatprep.subr.bf16.mxu0 0
    %947 = vmatpush2.bf16.msra.mxu0 0
    %948 = vmatprep.subr.bf16.mxu0 0
    %949 = vmatpush2.bf16.msra.mxu0 0
    %950 = vmatprep.subr.bf16.mxu0 0
    %951 = vmatpush2.bf16.msra.mxu0 0
    %952 = vmatprep.subr.bf16.mxu0 0
    %953 = vmatpush2.bf16.msra.mxu0 0
    %954 = vmatprep.subr.bf16.mxu0 0
    %955 = vmatpush2.bf16.msra.mxu0 0
    %956 = vmatprep.mubr.bf16.mxu0 0
    %957 = vmatmul.mubr.bf16.gmra.mxu0 %v922
    %v958 = vpop.f32.mrf.mxu0
    %v959 = vadd.f32 0.0, %v958
    %v960 = vpop.f32.mrf.mxu0
    %v961 = vpop.f32.mrf.mxu0
    %v962 = vpop.f32.mrf.mxu0
    %963 = vdwg.mxu0
    %v964 = vadd.f32 %v910, %v959
    %s965 = scalar_lea.vmem %s3, 48
    %v966 = vld [vmem:[%s965] sm:$0xf]
    %v967 = vld [vmem:[%s965 + $0x4] sm:$0xf]
    %v968 = vrot.slane %v639, 6
    %v971 = vunpack.c.l.b16 %v966
    %v972 = vunpack.c.l.b16 %v967
    %v973 = vpack.c.b16 %v972, %v971
    %v976 = vsel %vm656, %v968, 0
    %978 = vmatprep.subr.bf16.mxu0 0
    %979 = vmatpush1.bf16.msra.mxu0 0
    %980 = vmatprep.subr.bf16.mxu0 0
    %981 = vmatpush1.bf16.msra.mxu0 0
    %982 = vmatprep.subr.bf16.mxu0 0
    %983 = vmatpush1.bf16.msra.mxu0 0
    %984 = vmatprep.subr.bf16.mxu0 0
    %985 = vmatpush1.bf16.msra.mxu0 0
    %986 = vmatprep.subr.bf16.mxu0 0
    %987 = vmatpush1.bf16.msra.mxu0 0
    %988 = vmatprep.subr.bf16.mxu0 0
    %989 = vmatpush1.bf16.msra.mxu0 0
    %990 = vmatprep.subr.bf16.mxu0 0
    %991 = vmatpush1.bf16.msra.mxu0 0
    %992 = vmatprep.subr.bf16.mxu0 0
    %993 = vmatpush1.bf16.msra.mxu0 %v973
    %994 = vmatprep.subr.bf16.mxu0 0
    %995 = vmatpush2.bf16.msra.mxu0 0
    %996 = vmatprep.subr.bf16.mxu0 0
    %997 = vmatpush2.bf16.msra.mxu0 0
    %998 = vmatprep.subr.bf16.mxu0 0
    %999 = vmatpush2.bf16.msra.mxu0 0
    %1000 = vmatprep.subr.bf16.mxu0 0
    %1001 = vmatpush2.bf16.msra.mxu0 0
    %1002 = vmatprep.subr.bf16.mxu0 0
    %1003 = vmatpush2.bf16.msra.mxu0 0
    %1004 = vmatprep.subr.bf16.mxu0 0
    %1005 = vmatpush2.bf16.msra.mxu0 0
    %1006 = vmatprep.subr.bf16.mxu0 0
    %1007 = vmatpush2.bf16.msra.mxu0 0
    %1008 = vmatprep.subr.bf16.mxu0 0
    %1009 = vmatpush2.bf16.msra.mxu0 0
    %1010 = vmatprep.mubr.bf16.mxu0 0
    %1011 = vmatmul.mubr.bf16.gmra.mxu0 %v976
    %v1012 = vpop.f32.mrf.mxu0
    %v1013 = vadd.f32 0.0, %v1012
    %v1014 = vpop.f32.mrf.mxu0
    %v1015 = vpop.f32.mrf.mxu0
    %v1016 = vpop.f32.mrf.mxu0
    %1017 = vdwg.mxu0
    %v1018 = vadd.f32 %v964, %v1013
    %s1019 = scalar_lea.vmem %s3, 56
    %v1020 = vld [vmem:[%s1019] sm:$0xf]
    %v1021 = vld [vmem:[%s1019 + $0x4] sm:$0xf]
    %v1022 = vrot.slane %v639, 7
    %v1025 = vunpack.c.l.b16 %v1020
    %v1026 = vunpack.c.l.b16 %v1021
    %v1027 = vpack.c.b16 %v1026, %v1025
    %v1030 = vsel %vm656, %v1022, 0
    %1032 = vmatprep.subr.bf16.mxu0 0
    %1033 = vmatpush1.bf16.msra.mxu0 0
    %1034 = vmatprep.subr.bf16.mxu0 0
    %1035 = vmatpush1.bf16.msra.mxu0 0
    %1036 = vmatprep.subr.bf16.mxu0 0
    %1037 = vmatpush1.bf16.msra.mxu0 0
    %1038 = vmatprep.subr.bf16.mxu0 0
    %1039 = vmatpush1.bf16.msra.mxu0 0
    %1040 = vmatprep.subr.bf16.mxu0 0
    %1041 = vmatpush1.bf16.msra.mxu0 0
    %1042 = vmatprep.subr.bf16.mxu0 0
    %1043 = vmatpush1.bf16.msra.mxu0 0
    %1044 = vmatprep.subr.bf16.mxu0 0
    %1045 = vmatpush1.bf16.msra.mxu0 0
    %1046 = vmatprep.subr.bf16.mxu0 0
    %1047 = vmatpush1.bf16.msra.mxu0 %v1027
    %1048 = vmatprep.subr.bf16.mxu0 0
    %1049 = vmatpush2.bf16.msra.mxu0 0
    %1050 = vmatprep.subr.bf16.mxu0 0
    %1051 = vmatpush2.bf16.msra.mxu0 0
    %1052 = vmatprep.subr.bf16.mxu0 0
    %1053 = vmatpush2.bf16.msra.mxu0 0
    %1054 = vmatprep.subr.bf16.mxu0 0
    %1055 = vmatpush2.bf16.msra.mxu0 0
    %1056 = vmatprep.subr.bf16.mxu0 0
    %1057 = vmatpush2.bf16.msra.mxu0 0
    %1058 = vmatprep.subr.bf16.mxu0 0
    %1059 = vmatpush2.bf16.msra.mxu0 0
    %1060 = vmatprep.subr.bf16.mxu0 0
    %1061 = vmatpush2.bf16.msra.mxu0 0
    %1062 = vmatprep.subr.bf16.mxu0 0
    %1063 = vmatpush2.bf16.msra.mxu0 0
    %1064 = vmatprep.mubr.bf16.mxu0 0
    %1065 = vmatmul.mubr.bf16.gmra.mxu0 %v1030
    %v1066 = vpop.f32.mrf.mxu0
    %v1067 = vadd.f32 0.0, %v1066
    %v1068 = vpop.f32.mrf.mxu0
    %v1069 = vpop.f32.mrf.mxu0
    %v1070 = vpop.f32.mrf.mxu0
    %1071 = vdwg.mxu0
    %v1072 = vadd.f32 %v1018, %v1067
    %s1073 = scalar_lea.vmem %s3, 64
    %v1074 = vld [vmem:[%s1073] sm:$0xf]
    %v1075 = vld [vmem:[%s1073 + $0x4] sm:$0xf]
    %v1078 = vunpack.c.l.b16 %v1074
    %v1079 = vunpack.c.l.b16 %v1075
    %v1080 = vpack.c.b16 %v1079, %v1078
    %v1083 = vsel %vm656, %v640, 0
    %1085 = vmatprep.subr.bf16.mxu0 0
    %1086 = vmatpush1.bf16.msra.mxu0 0
    %1087 = vmatprep.subr.bf16.mxu0 0
    %1088 = vmatpush1.bf16.msra.mxu0 0
    %1089 = vmatprep.subr.bf16.mxu0 0
    %1090 = vmatpush1.bf16.msra.mxu0 0
    %1091 = vmatprep.subr.bf16.mxu0 0
    %1092 = vmatpush1.bf16.msra.mxu0 0
    %1093 = vmatprep.subr.bf16.mxu0 0
    %1094 = vmatpush1.bf16.msra.mxu0 0
    %1095 = vmatprep.subr.bf16.mxu0 0
    %1096 = vmatpush1.bf16.msra.mxu0 0
    %1097 = vmatprep.subr.bf16.mxu0 0
    %1098 = vmatpush1.bf16.msra.mxu0 0
    %1099 = vmatprep.subr.bf16.mxu0 0
    %1100 = vmatpush1.bf16.msra.mxu0 %v1080
    %1101 = vmatprep.subr.bf16.mxu0 0
    %1102 = vmatpush2.bf16.msra.mxu0 0
    %1103 = vmatprep.subr.bf16.mxu0 0
    %1104 = vmatpush2.bf16.msra.mxu0 0
    %1105 = vmatprep.subr.bf16.mxu0 0
    %1106 = vmatpush2.bf16.msra.mxu0 0
    %1107 = vmatprep.subr.bf16.mxu0 0
    %1108 = vmatpush2.bf16.msra.mxu0 0
    %1109 = vmatprep.subr.bf16.mxu0 0
    %1110 = vmatpush2.bf16.msra.mxu0 0
    %1111 = vmatprep.subr.bf16.mxu0 0
    %1112 = vmatpush2.bf16.msra.mxu0 0
    %1113 = vmatprep.subr.bf16.mxu0 0
    %1114 = vmatpush2.bf16.msra.mxu0 0
    %1115 = vmatprep.subr.bf16.mxu0 0
    %1116 = vmatpush2.bf16.msra.mxu0 0
    %1117 = vmatprep.mubr.bf16.mxu0 0
    %1118 = vmatmul.mubr.bf16.gmra.mxu0 %v1083
    %v1119 = vpop.f32.mrf.mxu0
    %v1120 = vadd.f32 0.0, %v1119
    %v1121 = vpop.f32.mrf.mxu0
    %v1122 = vpop.f32.mrf.mxu0
    %v1123 = vpop.f32.mrf.mxu0
    %1124 = vdwg.mxu0
    %v1125 = vadd.f32 %v1072, %v1120
    %s1126 = scalar_lea.vmem %s3, 72
    %v1127 = vld [vmem:[%s1126] sm:$0xf]
    %v1128 = vld [vmem:[%s1126 + $0x4] sm:$0xf]
    %v1130 = vrot.slane %v640, 1
    %v1133 = vunpack.c.l.b16 %v1127
    %v1134 = vunpack.c.l.b16 %v1128
    %v1135 = vpack.c.b16 %v1134, %v1133
    %v1138 = vsel %vm656, %v1130, 0
    %1140 = vmatprep.subr.bf16.mxu0 0
    %1141 = vmatpush1.bf16.msra.mxu0 0
    %1142 = vmatprep.subr.bf16.mxu0 0
    %1143 = vmatpush1.bf16.msra.mxu0 0
    %1144 = vmatprep.subr.bf16.mxu0 0
    %1145 = vmatpush1.bf16.msra.mxu0 0
    %1146 = vmatprep.subr.bf16.mxu0 0
    %1147 = vmatpush1.bf16.msra.mxu0 0
    %1148 = vmatprep.subr.bf16.mxu0 0
    %1149 = vmatpush1.bf16.msra.mxu0 0
    %1150 = vmatprep.subr.bf16.mxu0 0
    %1151 = vmatpush1.bf16.msra.mxu0 0
    %1152 = vmatprep.subr.bf16.mxu0 0
    %1153 = vmatpush1.bf16.msra.mxu0 0
    %1154 = vmatprep.subr.bf16.mxu0 0
    %1155 = vmatpush1.bf16.msra.mxu0 %v1135
    %1156 = vmatprep.subr.bf16.mxu0 0
    %1157 = vmatpush2.bf16.msra.mxu0 0
    %1158 = vmatprep.subr.bf16.mxu0 0
    %1159 = vmatpush2.bf16.msra.mxu0 0
    %1160 = vmatprep.subr.bf16.mxu0 0
    %1161 = vmatpush2.bf16.msra.mxu0 0
    %1162 = vmatprep.subr.bf16.mxu0 0
    %1163 = vmatpush2.bf16.msra.mxu0 0
    %1164 = vmatprep.subr.bf16.mxu0 0
    %1165 = vmatpush2.bf16.msra.mxu0 0
    %1166 = vmatprep.subr.bf16.mxu0 0
    %1167 = vmatpush2.bf16.msra.mxu0 0
    %1168 = vmatprep.subr.bf16.mxu0 0
    %1169 = vmatpush2.bf16.msra.mxu0 0
    %1170 = vmatprep.subr.bf16.mxu0 0
    %1171 = vmatpush2.bf16.msra.mxu0 0
    %1172 = vmatprep.mubr.bf16.mxu0 0
    %1173 = vmatmul.mubr.bf16.gmra.mxu0 %v1138
    %v1174 = vpop.f32.mrf.mxu0
    %v1175 = vadd.f32 0.0, %v1174
    %v1176 = vpop.f32.mrf.mxu0
    %v1177 = vpop.f32.mrf.mxu0
    %v1178 = vpop.f32.mrf.mxu0
    %1179 = vdwg.mxu0
    %v1180 = vadd.f32 %v1125, %v1175
    %s1181 = scalar_lea.vmem %s3, 80
    %v1182 = vld [vmem:[%s1181] sm:$0xf]
    %v1183 = vld [vmem:[%s1181 + $0x4] sm:$0xf]
    %v1184 = vrot.slane %v640, 2
    %v1187 = vunpack.c.l.b16 %v1182
    %v1188 = vunpack.c.l.b16 %v1183
    %v1189 = vpack.c.b16 %v1188, %v1187
    %v1192 = vsel %vm656, %v1184, 0
    %1194 = vmatprep.subr.bf16.mxu0 0
    %1195 = vmatpush1.bf16.msra.mxu0 0
    %1196 = vmatprep.subr.bf16.mxu0 0
    %1197 = vmatpush1.bf16.msra.mxu0 0
    %1198 = vmatprep.subr.bf16.mxu0 0
    %1199 = vmatpush1.bf16.msra.mxu0 0
    %1200 = vmatprep.subr.bf16.mxu0 0
    %1201 = vmatpush1.bf16.msra.mxu0 0
    %1202 = vmatprep.subr.bf16.mxu0 0
    %1203 = vmatpush1.bf16.msra.mxu0 0
    %1204 = vmatprep.subr.bf16.mxu0 0
    %1205 = vmatpush1.bf16.msra.mxu0 0
    %1206 = vmatprep.subr.bf16.mxu0 0
    %1207 = vmatpush1.bf16.msra.mxu0 0
    %1208 = vmatprep.subr.bf16.mxu0 0
    %1209 = vmatpush1.bf16.msra.mxu0 %v1189
    %1210 = vmatprep.subr.bf16.mxu0 0
    %1211 = vmatpush2.bf16.msra.mxu0 0
    %1212 = vmatprep.subr.bf16.mxu0 0
    %1213 = vmatpush2.bf16.msra.mxu0 0
    %1214 = vmatprep.subr.bf16.mxu0 0
    %1215 = vmatpush2.bf16.msra.mxu0 0
    %1216 = vmatprep.subr.bf16.mxu0 0
    %1217 = vmatpush2.bf16.msra.mxu0 0
    %1218 = vmatprep.subr.bf16.mxu0 0
    %1219 = vmatpush2.bf16.msra.mxu0 0
    %1220 = vmatprep.subr.bf16.mxu0 0
    %1221 = vmatpush2.bf16.msra.mxu0 0
    %1222 = vmatprep.subr.bf16.mxu0 0
    %1223 = vmatpush2.bf16.msra.mxu0 0
    %1224 = vmatprep.subr.bf16.mxu0 0
    %1225 = vmatpush2.bf16.msra.mxu0 0
    %1226 = vmatprep.mubr.bf16.mxu0 0
    %1227 = vmatmul.mubr.bf16.gmra.mxu0 %v1192
    %v1228 = vpop.f32.mrf.mxu0
    %v1229 = vadd.f32 0.0, %v1228
    %v1230 = vpop.f32.mrf.mxu0
    %v1231 = vpop.f32.mrf.mxu0
    %v1232 = vpop.f32.mrf.mxu0
    %1233 = vdwg.mxu0
    %v1234 = vadd.f32 %v1180, %v1229
    %s1235 = scalar_lea.vmem %s3, 88
    %v1236 = vld [vmem:[%s1235] sm:$0xf]
    %v1237 = vld [vmem:[%s1235 + $0x4] sm:$0xf]
    %v1238 = vrot.slane %v640, 3
    %v1241 = vunpack.c.l.b16 %v1236
    %v1242 = vunpack.c.l.b16 %v1237
    %v1243 = vpack.c.b16 %v1242, %v1241
    %v1246 = vsel %vm656, %v1238, 0
    %1248 = vmatprep.subr.bf16.mxu0 0
    %1249 = vmatpush1.bf16.msra.mxu0 0
    %1250 = vmatprep.subr.bf16.mxu0 0
    %1251 = vmatpush1.bf16.msra.mxu0 0
    %1252 = vmatprep.subr.bf16.mxu0 0
    %1253 = vmatpush1.bf16.msra.mxu0 0
    %1254 = vmatprep.subr.bf16.mxu0 0
    %1255 = vmatpush1.bf16.msra.mxu0 0
    %1256 = vmatprep.subr.bf16.mxu0 0
    %1257 = vmatpush1.bf16.msra.mxu0 0
    %1258 = vmatprep.subr.bf16.mxu0 0
    %1259 = vmatpush1.bf16.msra.mxu0 0
    %1260 = vmatprep.subr.bf16.mxu0 0
    %1261 = vmatpush1.bf16.msra.mxu0 0
    %1262 = vmatprep.subr.bf16.mxu0 0
    %1263 = vmatpush1.bf16.msra.mxu0 %v1243
    %1264 = vmatprep.subr.bf16.mxu0 0
    %1265 = vmatpush2.bf16.msra.mxu0 0
    %1266 = vmatprep.subr.bf16.mxu0 0
    %1267 = vmatpush2.bf16.msra.mxu0 0
    %1268 = vmatprep.subr.bf16.mxu0 0
    %1269 = vmatpush2.bf16.msra.mxu0 0
    %1270 = vmatprep.subr.bf16.mxu0 0
    %1271 = vmatpush2.bf16.msra.mxu0 0
    %1272 = vmatprep.subr.bf16.mxu0 0
    %1273 = vmatpush2.bf16.msra.mxu0 0
    %1274 = vmatprep.subr.bf16.mxu0 0
    %1275 = vmatpush2.bf16.msra.mxu0 0
    %1276 = vmatprep.subr.bf16.mxu0 0
    %1277 = vmatpush2.bf16.msra.mxu0 0
    %1278 = vmatprep.subr.bf16.mxu0 0
    %1279 = vmatpush2.bf16.msra.mxu0 0
    %1280 = vmatprep.mubr.bf16.mxu0 0
    %1281 = vmatmul.mubr.bf16.gmra.mxu0 %v1246
    %v1282 = vpop.f32.mrf.mxu0
    %v1283 = vadd.f32 0.0, %v1282
    %v1284 = vpop.f32.mrf.mxu0
    %v1285 = vpop.f32.mrf.mxu0
    %v1286 = vpop.f32.mrf.mxu0
    %1287 = vdwg.mxu0
    %v1288 = vadd.f32 %v1234, %v1283
    %s1289 = scalar_lea.vmem %s3, 96
    %v1290 = vld [vmem:[%s1289] sm:$0xf]
    %v1291 = vld [vmem:[%s1289 + $0x4] sm:$0xf]
    %v1292 = vrot.slane %v640, 4
    %v1295 = vunpack.c.l.b16 %v1290
    %v1296 = vunpack.c.l.b16 %v1291
    %v1297 = vpack.c.b16 %v1296, %v1295
    %v1300 = vsel %vm656, %v1292, 0
    %1302 = vmatprep.subr.bf16.mxu0 0
    %1303 = vmatpush1.bf16.msra.mxu0 0
    %1304 = vmatprep.subr.bf16.mxu0 0
    %1305 = vmatpush1.bf16.msra.mxu0 0
    %1306 = vmatprep.subr.bf16.mxu0 0
    %1307 = vmatpush1.bf16.msra.mxu0 0
    %1308 = vmatprep.subr.bf16.mxu0 0
    %1309 = vmatpush1.bf16.msra.mxu0 0
    %1310 = vmatprep.subr.bf16.mxu0 0
    %1311 = vmatpush1.bf16.msra.mxu0 0
    %1312 = vmatprep.subr.bf16.mxu0 0
    %1313 = vmatpush1.bf16.msra.mxu0 0
    %1314 = vmatprep.subr.bf16.mxu0 0
    %1315 = vmatpush1.bf16.msra.mxu0 0
    %1316 = vmatprep.subr.bf16.mxu0 0
    %1317 = vmatpush1.bf16.msra.mxu0 %v1297
    %1318 = vmatprep.subr.bf16.mxu0 0
    %1319 = vmatpush2.bf16.msra.mxu0 0
    %1320 = vmatprep.subr.bf16.mxu0 0
    %1321 = vmatpush2.bf16.msra.mxu0 0
    %1322 = vmatprep.subr.bf16.mxu0 0
    %1323 = vmatpush2.bf16.msra.mxu0 0
    %1324 = vmatprep.subr.bf16.mxu0 0
    %1325 = vmatpush2.bf16.msra.mxu0 0
    %1326 = vmatprep.subr.bf16.mxu0 0
    %1327 = vmatpush2.bf16.msra.mxu0 0
    %1328 = vmatprep.subr.bf16.mxu0 0
    %1329 = vmatpush2.bf16.msra.mxu0 0
    %1330 = vmatprep.subr.bf16.mxu0 0
    %1331 = vmatpush2.bf16.msra.mxu0 0
    %1332 = vmatprep.subr.bf16.mxu0 0
    %1333 = vmatpush2.bf16.msra.mxu0 0
    %1334 = vmatprep.mubr.bf16.mxu0 0
    %1335 = vmatmul.mubr.bf16.gmra.mxu0 %v1300
    %v1336 = vpop.f32.mrf.mxu0
    %v1337 = vadd.f32 0.0, %v1336
    %v1338 = vpop.f32.mrf.mxu0
    %v1339 = vpop.f32.mrf.mxu0
    %v1340 = vpop.f32.mrf.mxu0
    %1341 = vdwg.mxu0
    %v1342 = vadd.f32 %v1288, %v1337
    %s1343 = scalar_lea.vmem %s3, 104
    %v1344 = vld [vmem:[%s1343] sm:$0xf]
    %v1345 = vld [vmem:[%s1343 + $0x4] sm:$0xf]
    %v1346 = vrot.slane %v640, 5
    %v1349 = vunpack.c.l.b16 %v1344
    %v1350 = vunpack.c.l.b16 %v1345
    %v1351 = vpack.c.b16 %v1350, %v1349
    %v1354 = vsel %vm656, %v1346, 0
    %1356 = vmatprep.subr.bf16.mxu0 0
    %1357 = vmatpush1.bf16.msra.mxu0 0
    %1358 = vmatprep.subr.bf16.mxu0 0
    %1359 = vmatpush1.bf16.msra.mxu0 0
    %1360 = vmatprep.subr.bf16.mxu0 0
    %1361 = vmatpush1.bf16.msra.mxu0 0
    %1362 = vmatprep.subr.bf16.mxu0 0
    %1363 = vmatpush1.bf16.msra.mxu0 0
    %1364 = vmatprep.subr.bf16.mxu0 0
    %1365 = vmatpush1.bf16.msra.mxu0 0
    %1366 = vmatprep.subr.bf16.mxu0 0
    %1367 = vmatpush1.bf16.msra.mxu0 0
    %1368 = vmatprep.subr.bf16.mxu0 0
    %1369 = vmatpush1.bf16.msra.mxu0 0
    %1370 = vmatprep.subr.bf16.mxu0 0
    %1371 = vmatpush1.bf16.msra.mxu0 %v1351
    %1372 = vmatprep.subr.bf16.mxu0 0
    %1373 = vmatpush2.bf16.msra.mxu0 0
    %1374 = vmatprep.subr.bf16.mxu0 0
    %1375 = vmatpush2.bf16.msra.mxu0 0
    %1376 = vmatprep.subr.bf16.mxu0 0
    %1377 = vmatpush2.bf16.msra.mxu0 0
    %1378 = vmatprep.subr.bf16.mxu0 0
    %1379 = vmatpush2.bf16.msra.mxu0 0
    %1380 = vmatprep.subr.bf16.mxu0 0
    %1381 = vmatpush2.bf16.msra.mxu0 0
    %1382 = vmatprep.subr.bf16.mxu0 0
    %1383 = vmatpush2.bf16.msra.mxu0 0
    %1384 = vmatprep.subr.bf16.mxu0 0
    %1385 = vmatpush2.bf16.msra.mxu0 0
    %1386 = vmatprep.subr.bf16.mxu0 0
    %1387 = vmatpush2.bf16.msra.mxu0 0
    %1388 = vmatprep.mubr.bf16.mxu0 0
    %1389 = vmatmul.mubr.bf16.gmra.mxu0 %v1354
    %v1390 = vpop.f32.mrf.mxu0
    %v1391 = vadd.f32 0.0, %v1390
    %v1392 = vpop.f32.mrf.mxu0
    %v1393 = vpop.f32.mrf.mxu0
    %v1394 = vpop.f32.mrf.mxu0
    %1395 = vdwg.mxu0
    %v1396 = vadd.f32 %v1342, %v1391
    %s1397 = scalar_lea.vmem %s3, 112
    %v1398 = vld [vmem:[%s1397] sm:$0xf]
    %v1399 = vld [vmem:[%s1397 + $0x4] sm:$0xf]
    %v1400 = vrot.slane %v640, 6
    %v1403 = vunpack.c.l.b16 %v1398
    %v1404 = vunpack.c.l.b16 %v1399
    %v1405 = vpack.c.b16 %v1404, %v1403
    %v1408 = vsel %vm656, %v1400, 0
    %1410 = vmatprep.subr.bf16.mxu0 0
    %1411 = vmatpush1.bf16.msra.mxu0 0
    %1412 = vmatprep.subr.bf16.mxu0 0
    %1413 = vmatpush1.bf16.msra.mxu0 0
    %1414 = vmatprep.subr.bf16.mxu0 0
    %1415 = vmatpush1.bf16.msra.mxu0 0
    %1416 = vmatprep.subr.bf16.mxu0 0
    %1417 = vmatpush1.bf16.msra.mxu0 0
    %1418 = vmatprep.subr.bf16.mxu0 0
    %1419 = vmatpush1.bf16.msra.mxu0 0
    %1420 = vmatprep.subr.bf16.mxu0 0
    %1421 = vmatpush1.bf16.msra.mxu0 0
    %1422 = vmatprep.subr.bf16.mxu0 0
    %1423 = vmatpush1.bf16.msra.mxu0 0
    %1424 = vmatprep.subr.bf16.mxu0 0
    %1425 = vmatpush1.bf16.msra.mxu0 %v1405
    %1426 = vmatprep.subr.bf16.mxu0 0
    %1427 = vmatpush2.bf16.msra.mxu0 0
    %1428 = vmatprep.subr.bf16.mxu0 0
    %1429 = vmatpush2.bf16.msra.mxu0 0
    %1430 = vmatprep.subr.bf16.mxu0 0
    %1431 = vmatpush2.bf16.msra.mxu0 0
    %1432 = vmatprep.subr.bf16.mxu0 0
    %1433 = vmatpush2.bf16.msra.mxu0 0
    %1434 = vmatprep.subr.bf16.mxu0 0
    %1435 = vmatpush2.bf16.msra.mxu0 0
    %1436 = vmatprep.subr.bf16.mxu0 0
    %1437 = vmatpush2.bf16.msra.mxu0 0
    %1438 = vmatprep.subr.bf16.mxu0 0
    %1439 = vmatpush2.bf16.msra.mxu0 0
    %1440 = vmatprep.subr.bf16.mxu0 0
    %1441 = vmatpush2.bf16.msra.mxu0 0
    %1442 = vmatprep.mubr.bf16.mxu0 0
    %1443 = vmatmul.mubr.bf16.gmra.mxu0 %v1408
    %v1444 = vpop.f32.mrf.mxu0
    %v1445 = vadd.f32 0.0, %v1444
    %v1446 = vpop.f32.mrf.mxu0
    %v1447 = vpop.f32.mrf.mxu0
    %v1448 = vpop.f32.mrf.mxu0
    %1449 = vdwg.mxu0
    %v1450 = vadd.f32 %v1396, %v1445
    %s1451 = scalar_lea.vmem %s3, 120
    %v1452 = vld [vmem:[%s1451] sm:$0xf]
    %v1453 = vld [vmem:[%s1451 + $0x4] sm:$0xf]
    %v1454 = vrot.slane %v640, 7
    %v1457 = vunpack.c.l.b16 %v1452
    %v1458 = vunpack.c.l.b16 %v1453
    %v1459 = vpack.c.b16 %v1458, %v1457
    %v1462 = vsel %vm656, %v1454, 0
    %1464 = vmatprep.subr.bf16.mxu0 0
    %1465 = vmatpush1.bf16.msra.mxu0 0
    %1466 = vmatprep.subr.bf16.mxu0 0
    %1467 = vmatpush1.bf16.msra.mxu0 0
    %1468 = vmatprep.subr.bf16.mxu0 0
    %1469 = vmatpush1.bf16.msra.mxu0 0
    %1470 = vmatprep.subr.bf16.mxu0 0
    %1471 = vmatpush1.bf16.msra.mxu0 0
    %1472 = vmatprep.subr.bf16.mxu0 0
    %1473 = vmatpush1.bf16.msra.mxu0 0
    %1474 = vmatprep.subr.bf16.mxu0 0
    %1475 = vmatpush1.bf16.msra.mxu0 0
    %1476 = vmatprep.subr.bf16.mxu0 0
    %1477 = vmatpush1.bf16.msra.mxu0 0
    %1478 = vmatprep.subr.bf16.mxu0 0
    %1479 = vmatpush1.bf16.msra.mxu0 %v1459
    %1480 = vmatprep.subr.bf16.mxu0 0
    %1481 = vmatpush2.bf16.msra.mxu0 0
    %1482 = vmatprep.subr.bf16.mxu0 0
    %1483 = vmatpush2.bf16.msra.mxu0 0
    %1484 = vmatprep.subr.bf16.mxu0 0
    %1485 = vmatpush2.bf16.msra.mxu0 0
    %1486 = vmatprep.subr.bf16.mxu0 0
    %1487 = vmatpush2.bf16.msra.mxu0 0
    %1488 = vmatprep.subr.bf16.mxu0 0
    %1489 = vmatpush2.bf16.msra.mxu0 0
    %1490 = vmatprep.subr.bf16.mxu0 0
    %1491 = vmatpush2.bf16.msra.mxu0 0
    %1492 = vmatprep.subr.bf16.mxu0 0
    %1493 = vmatpush2.bf16.msra.mxu0 0
    %1494 = vmatprep.subr.bf16.mxu0 0
    %1495 = vmatpush2.bf16.msra.mxu0 0
    %1496 = vmatprep.mubr.bf16.mxu0 0
    %1497 = vmatmul.mubr.bf16.gmra.mxu0 %v1462
    %v1498 = vpop.f32.mrf.mxu0
    %v1499 = vadd.f32 0.0, %v1498
    %v1500 = vpop.f32.mrf.mxu0
    %v1501 = vpop.f32.mrf.mxu0
    %v1502 = vpop.f32.mrf.mxu0
    %1503 = vdwg.mxu0
    %v1504 = vadd.f32 %v1450, %v1499
    %s1505 = scalar_lea.vmem %s3, 128
    %v1506 = vld [vmem:[%s1505] sm:$0xf]
    %v1507 = vld [vmem:[%s1505 + $0x4] sm:$0xf]
    %v1510 = vunpack.c.l.b16 %v1506
    %v1511 = vunpack.c.l.b16 %v1507
    %v1512 = vpack.c.b16 %v1511, %v1510
    %v1515 = vsel %vm656, %v641, 0
    %1517 = vmatprep.subr.bf16.mxu0 0
    %1518 = vmatpush1.bf16.msra.mxu0 0
    %1519 = vmatprep.subr.bf16.mxu0 0
    %1520 = vmatpush1.bf16.msra.mxu0 0
    %1521 = vmatprep.subr.bf16.mxu0 0
    %1522 = vmatpush1.bf16.msra.mxu0 0
    %1523 = vmatprep.subr.bf16.mxu0 0
    %1524 = vmatpush1.bf16.msra.mxu0 0
    %1525 = vmatprep.subr.bf16.mxu0 0
    %1526 = vmatpush1.bf16.msra.mxu0 0
    %1527 = vmatprep.subr.bf16.mxu0 0
    %1528 = vmatpush1.bf16.msra.mxu0 0
    %1529 = vmatprep.subr.bf16.mxu0 0
    %1530 = vmatpush1.bf16.msra.mxu0 0
    %1531 = vmatprep.subr.bf16.mxu0 0
    %1532 = vmatpush1.bf16.msra.mxu0 %v1512
    %1533 = vmatprep.subr.bf16.mxu0 0
    %1534 = vmatpush2.bf16.msra.mxu0 0
    %1535 = vmatprep.subr.bf16.mxu0 0
    %1536 = vmatpush2.bf16.msra.mxu0 0
    %1537 = vmatprep.subr.bf16.mxu0 0
    %1538 = vmatpush2.bf16.msra.mxu0 0
    %1539 = vmatprep.subr.bf16.mxu0 0
    %1540 = vmatpush2.bf16.msra.mxu0 0
    %1541 = vmatprep.subr.bf16.mxu0 0
    %1542 = vmatpush2.bf16.msra.mxu0 0
    %1543 = vmatprep.subr.bf16.mxu0 0
    %1544 = vmatpush2.bf16.msra.mxu0 0
    %1545 = vmatprep.subr.bf16.mxu0 0
    %1546 = vmatpush2.bf16.msra.mxu0 0
    %1547 = vmatprep.subr.bf16.mxu0 0
    %1548 = vmatpush2.bf16.msra.mxu0 0
    %1549 = vmatprep.mubr.bf16.mxu0 0
    %1550 = vmatmul.mubr.bf16.gmra.mxu0 %v1515
    %v1551 = vpop.f32.mrf.mxu0
    %v1552 = vadd.f32 0.0, %v1551
    %v1553 = vpop.f32.mrf.mxu0
    %v1554 = vpop.f32.mrf.mxu0
    %v1555 = vpop.f32.mrf.mxu0
    %1556 = vdwg.mxu0
    %v1557 = vadd.f32 %v1504, %v1552
    %s1558 = scalar_lea.vmem %s3, 136
    %v1559 = vld [vmem:[%s1558] sm:$0xf]
    %v1560 = vld [vmem:[%s1558 + $0x4] sm:$0xf]
    %v1562 = vrot.slane %v641, 1
    %v1565 = vunpack.c.l.b16 %v1559
    %v1566 = vunpack.c.l.b16 %v1560
    %v1567 = vpack.c.b16 %v1566, %v1565
    %v1570 = vsel %vm656, %v1562, 0
    %1572 = vmatprep.subr.bf16.mxu0 0
    %1573 = vmatpush1.bf16.msra.mxu0 0
    %1574 = vmatprep.subr.bf16.mxu0 0
    %1575 = vmatpush1.bf16.msra.mxu0 0
    %1576 = vmatprep.subr.bf16.mxu0 0
    %1577 = vmatpush1.bf16.msra.mxu0 0
    %1578 = vmatprep.subr.bf16.mxu0 0
    %1579 = vmatpush1.bf16.msra.mxu0 0
    %1580 = vmatprep.subr.bf16.mxu0 0
    %1581 = vmatpush1.bf16.msra.mxu0 0
    %1582 = vmatprep.subr.bf16.mxu0 0
    %1583 = vmatpush1.bf16.msra.mxu0 0
    %1584 = vmatprep.subr.bf16.mxu0 0
    %1585 = vmatpush1.bf16.msra.mxu0 0
    %1586 = vmatprep.subr.bf16.mxu0 0
    %1587 = vmatpush1.bf16.msra.mxu0 %v1567
    %1588 = vmatprep.subr.bf16.mxu0 0
    %1589 = vmatpush2.bf16.msra.mxu0 0
    %1590 = vmatprep.subr.bf16.mxu0 0
    %1591 = vmatpush2.bf16.msra.mxu0 0
    %1592 = vmatprep.subr.bf16.mxu0 0
    %1593 = vmatpush2.bf16.msra.mxu0 0
    %1594 = vmatprep.subr.bf16.mxu0 0
    %1595 = vmatpush2.bf16.msra.mxu0 0
    %1596 = vmatprep.subr.bf16.mxu0 0
    %1597 = vmatpush2.bf16.msra.mxu0 0
    %1598 = vmatprep.subr.bf16.mxu0 0
    %1599 = vmatpush2.bf16.msra.mxu0 0
    %1600 = vmatprep.subr.bf16.mxu0 0
    %1601 = vmatpush2.bf16.msra.mxu0 0
    %1602 = vmatprep.subr.bf16.mxu0 0
    %1603 = vmatpush2.bf16.msra.mxu0 0
    %1604 = vmatprep.mubr.bf16.mxu0 0
    %1605 = vmatmul.mubr.bf16.gmra.mxu0 %v1570
    %v1606 = vpop.f32.mrf.mxu0
    %v1607 = vadd.f32 0.0, %v1606
    %v1608 = vpop.f32.mrf.mxu0
    %v1609 = vpop.f32.mrf.mxu0
    %v1610 = vpop.f32.mrf.mxu0
    %1611 = vdwg.mxu0
    %v1612 = vadd.f32 %v1557, %v1607
    %s1613 = scalar_lea.vmem %s3, 144
    %v1614 = vld [vmem:[%s1613] sm:$0xf]
    %v1615 = vld [vmem:[%s1613 + $0x4] sm:$0xf]
    %v1616 = vrot.slane %v641, 2
    %v1619 = vunpack.c.l.b16 %v1614
    %v1620 = vunpack.c.l.b16 %v1615
    %v1621 = vpack.c.b16 %v1620, %v1619
    %v1624 = vsel %vm656, %v1616, 0
    %1626 = vmatprep.subr.bf16.mxu0 0
    %1627 = vmatpush1.bf16.msra.mxu0 0
    %1628 = vmatprep.subr.bf16.mxu0 0
    %1629 = vmatpush1.bf16.msra.mxu0 0
    %1630 = vmatprep.subr.bf16.mxu0 0
    %1631 = vmatpush1.bf16.msra.mxu0 0
    %1632 = vmatprep.subr.bf16.mxu0 0
    %1633 = vmatpush1.bf16.msra.mxu0 0
    %1634 = vmatprep.subr.bf16.mxu0 0
    %1635 = vmatpush1.bf16.msra.mxu0 0
    %1636 = vmatprep.subr.bf16.mxu0 0
    %1637 = vmatpush1.bf16.msra.mxu0 0
    %1638 = vmatprep.subr.bf16.mxu0 0
    %1639 = vmatpush1.bf16.msra.mxu0 0
    %1640 = vmatprep.subr.bf16.mxu0 0
    %1641 = vmatpush1.bf16.msra.mxu0 %v1621
    %1642 = vmatprep.subr.bf16.mxu0 0
    %1643 = vmatpush2.bf16.msra.mxu0 0
    %1644 = vmatprep.subr.bf16.mxu0 0
    %1645 = vmatpush2.bf16.msra.mxu0 0
    %1646 = vmatprep.subr.bf16.mxu0 0
    %1647 = vmatpush2.bf16.msra.mxu0 0
    %1648 = vmatprep.subr.bf16.mxu0 0
    %1649 = vmatpush2.bf16.msra.mxu0 0
    %1650 = vmatprep.subr.bf16.mxu0 0
    %1651 = vmatpush2.bf16.msra.mxu0 0
    %1652 = vmatprep.subr.bf16.mxu0 0
    %1653 = vmatpush2.bf16.msra.mxu0 0
    %1654 = vmatprep.subr.bf16.mxu0 0
    %1655 = vmatpush2.bf16.msra.mxu0 0
    %1656 = vmatprep.subr.bf16.mxu0 0
    %1657 = vmatpush2.bf16.msra.mxu0 0
    %1658 = vmatprep.mubr.bf16.mxu0 0
    %1659 = vmatmul.mubr.bf16.gmra.mxu0 %v1624
    %v1660 = vpop.f32.mrf.mxu0
    %v1661 = vadd.f32 0.0, %v1660
    %v1662 = vpop.f32.mrf.mxu0
    %v1663 = vpop.f32.mrf.mxu0
    %v1664 = vpop.f32.mrf.mxu0
    %1665 = vdwg.mxu0
    %v1666 = vadd.f32 %v1612, %v1661
    %s1667 = scalar_lea.vmem %s3, 152
    %v1668 = vld [vmem:[%s1667] sm:$0xf]
    %v1669 = vld [vmem:[%s1667 + $0x4] sm:$0xf]
    %v1670 = vrot.slane %v641, 3
    %v1673 = vunpack.c.l.b16 %v1668
    %v1674 = vunpack.c.l.b16 %v1669
    %v1675 = vpack.c.b16 %v1674, %v1673
    %v1678 = vsel %vm656, %v1670, 0
    %1680 = vmatprep.subr.bf16.mxu0 0
    %1681 = vmatpush1.bf16.msra.mxu0 0
    %1682 = vmatprep.subr.bf16.mxu0 0
    %1683 = vmatpush1.bf16.msra.mxu0 0
    %1684 = vmatprep.subr.bf16.mxu0 0
    %1685 = vmatpush1.bf16.msra.mxu0 0
    %1686 = vmatprep.subr.bf16.mxu0 0
    %1687 = vmatpush1.bf16.msra.mxu0 0
    %1688 = vmatprep.subr.bf16.mxu0 0
    %1689 = vmatpush1.bf16.msra.mxu0 0
    %1690 = vmatprep.subr.bf16.mxu0 0
    %1691 = vmatpush1.bf16.msra.mxu0 0
    %1692 = vmatprep.subr.bf16.mxu0 0
    %1693 = vmatpush1.bf16.msra.mxu0 0
    %1694 = vmatprep.subr.bf16.mxu0 0
    %1695 = vmatpush1.bf16.msra.mxu0 %v1675
    %1696 = vmatprep.subr.bf16.mxu0 0
    %1697 = vmatpush2.bf16.msra.mxu0 0
    %1698 = vmatprep.subr.bf16.mxu0 0
    %1699 = vmatpush2.bf16.msra.mxu0 0
    %1700 = vmatprep.subr.bf16.mxu0 0
    %1701 = vmatpush2.bf16.msra.mxu0 0
    %1702 = vmatprep.subr.bf16.mxu0 0
    %1703 = vmatpush2.bf16.msra.mxu0 0
    %1704 = vmatprep.subr.bf16.mxu0 0
    %1705 = vmatpush2.bf16.msra.mxu0 0
    %1706 = vmatprep.subr.bf16.mxu0 0
    %1707 = vmatpush2.bf16.msra.mxu0 0
    %1708 = vmatprep.subr.bf16.mxu0 0
    %1709 = vmatpush2.bf16.msra.mxu0 0
    %1710 = vmatprep.subr.bf16.mxu0 0
    %1711 = vmatpush2.bf16.msra.mxu0 0
    %1712 = vmatprep.mubr.bf16.mxu0 0
    %1713 = vmatmul.mubr.bf16.gmra.mxu0 %v1678
    %v1714 = vpop.f32.mrf.mxu0
    %v1715 = vadd.f32 0.0, %v1714
    %v1716 = vpop.f32.mrf.mxu0
    %v1717 = vpop.f32.mrf.mxu0
    %v1718 = vpop.f32.mrf.mxu0
    %1719 = vdwg.mxu0
    %v1720 = vadd.f32 %v1666, %v1715
    %s1721 = scalar_lea.vmem %s3, 160
    %v1722 = vld [vmem:[%s1721] sm:$0xf]
    %v1723 = vld [vmem:[%s1721 + $0x4] sm:$0xf]
    %v1724 = vrot.slane %v641, 4
    %v1727 = vunpack.c.l.b16 %v1722
    %v1728 = vunpack.c.l.b16 %v1723
    %v1729 = vpack.c.b16 %v1728, %v1727
    %v1732 = vsel %vm656, %v1724, 0
    %1734 = vmatprep.subr.bf16.mxu0 0
    %1735 = vmatpush1.bf16.msra.mxu0 0
    %1736 = vmatprep.subr.bf16.mxu0 0
    %1737 = vmatpush1.bf16.msra.mxu0 0
    %1738 = vmatprep.subr.bf16.mxu0 0
    %1739 = vmatpush1.bf16.msra.mxu0 0
    %1740 = vmatprep.subr.bf16.mxu0 0
    %1741 = vmatpush1.bf16.msra.mxu0 0
    %1742 = vmatprep.subr.bf16.mxu0 0
    %1743 = vmatpush1.bf16.msra.mxu0 0
    %1744 = vmatprep.subr.bf16.mxu0 0
    %1745 = vmatpush1.bf16.msra.mxu0 0
    %1746 = vmatprep.subr.bf16.mxu0 0
    %1747 = vmatpush1.bf16.msra.mxu0 0
    %1748 = vmatprep.subr.bf16.mxu0 0
    %1749 = vmatpush1.bf16.msra.mxu0 %v1729
    %1750 = vmatprep.subr.bf16.mxu0 0
    %1751 = vmatpush2.bf16.msra.mxu0 0
    %1752 = vmatprep.subr.bf16.mxu0 0
    %1753 = vmatpush2.bf16.msra.mxu0 0
    %1754 = vmatprep.subr.bf16.mxu0 0
    %1755 = vmatpush2.bf16.msra.mxu0 0
    %1756 = vmatprep.subr.bf16.mxu0 0
    %1757 = vmatpush2.bf16.msra.mxu0 0
    %1758 = vmatprep.subr.bf16.mxu0 0
    %1759 = vmatpush2.bf16.msra.mxu0 0
    %1760 = vmatprep.subr.bf16.mxu0 0
    %1761 = vmatpush2.bf16.msra.mxu0 0
    %1762 = vmatprep.subr.bf16.mxu0 0
    %1763 = vmatpush2.bf16.msra.mxu0 0
    %1764 = vmatprep.subr.bf16.mxu0 0
    %1765 = vmatpush2.bf16.msra.mxu0 0
    %1766 = vmatprep.mubr.bf16.mxu0 0
    %1767 = vmatmul.mubr.bf16.gmra.mxu0 %v1732
    %v1768 = vpop.f32.mrf.mxu0
    %v1769 = vadd.f32 0.0, %v1768
    %v1770 = vpop.f32.mrf.mxu0
    %v1771 = vpop.f32.mrf.mxu0
    %v1772 = vpop.f32.mrf.mxu0
    %1773 = vdwg.mxu0
    %v1774 = vadd.f32 %v1720, %v1769
    %s1775 = scalar_lea.vmem %s3, 168
    %v1776 = vld [vmem:[%s1775] sm:$0xf]
    %v1777 = vld [vmem:[%s1775 + $0x4] sm:$0xf]
    %v1778 = vrot.slane %v641, 5
    %v1781 = vunpack.c.l.b16 %v1776
    %v1782 = vunpack.c.l.b16 %v1777
    %v1783 = vpack.c.b16 %v1782, %v1781
    %v1786 = vsel %vm656, %v1778, 0
    %1788 = vmatprep.subr.bf16.mxu0 0
    %1789 = vmatpush1.bf16.msra.mxu0 0
    %1790 = vmatprep.subr.bf16.mxu0 0
    %1791 = vmatpush1.bf16.msra.mxu0 0
    %1792 = vmatprep.subr.bf16.mxu0 0
    %1793 = vmatpush1.bf16.msra.mxu0 0
    %1794 = vmatprep.subr.bf16.mxu0 0
    %1795 = vmatpush1.bf16.msra.mxu0 0
    %1796 = vmatprep.subr.bf16.mxu0 0
    %1797 = vmatpush1.bf16.msra.mxu0 0
    %1798 = vmatprep.subr.bf16.mxu0 0
    %1799 = vmatpush1.bf16.msra.mxu0 0
    %1800 = vmatprep.subr.bf16.mxu0 0
    %1801 = vmatpush1.bf16.msra.mxu0 0
    %1802 = vmatprep.subr.bf16.mxu0 0
    %1803 = vmatpush1.bf16.msra.mxu0 %v1783
    %1804 = vmatprep.subr.bf16.mxu0 0
    %1805 = vmatpush2.bf16.msra.mxu0 0
    %1806 = vmatprep.subr.bf16.mxu0 0
    %1807 = vmatpush2.bf16.msra.mxu0 0
    %1808 = vmatprep.subr.bf16.mxu0 0
    %1809 = vmatpush2.bf16.msra.mxu0 0
    %1810 = vmatprep.subr.bf16.mxu0 0
    %1811 = vmatpush2.bf16.msra.mxu0 0
    %1812 = vmatprep.subr.bf16.mxu0 0
    %1813 = vmatpush2.bf16.msra.mxu0 0
    %1814 = vmatprep.subr.bf16.mxu0 0
    %1815 = vmatpush2.bf16.msra.mxu0 0
    %1816 = vmatprep.subr.bf16.mxu0 0
    %1817 = vmatpush2.bf16.msra.mxu0 0
    %1818 = vmatprep.subr.bf16.mxu0 0
    %1819 = vmatpush2.bf16.msra.mxu0 0
    %1820 = vmatprep.mubr.bf16.mxu0 0
    %1821 = vmatmul.mubr.bf16.gmra.mxu0 %v1786
    %v1822 = vpop.f32.mrf.mxu0
    %v1823 = vadd.f32 0.0, %v1822
    %v1824 = vpop.f32.mrf.mxu0
    %v1825 = vpop.f32.mrf.mxu0
    %v1826 = vpop.f32.mrf.mxu0
    %1827 = vdwg.mxu0
    %v1828 = vadd.f32 %v1774, %v1823
    %s1829 = scalar_lea.vmem %s3, 176
    %v1830 = vld [vmem:[%s1829] sm:$0xf]
    %v1831 = vld [vmem:[%s1829 + $0x4] sm:$0xf]
    %v1832 = vrot.slane %v641, 6
    %v1835 = vunpack.c.l.b16 %v1830
    %v1836 = vunpack.c.l.b16 %v1831
    %v1837 = vpack.c.b16 %v1836, %v1835
    %v1840 = vsel %vm656, %v1832, 0
    %1842 = vmatprep.subr.bf16.mxu0 0
    %1843 = vmatpush1.bf16.msra.mxu0 0
    %1844 = vmatprep.subr.bf16.mxu0 0
    %1845 = vmatpush1.bf16.msra.mxu0 0
    %1846 = vmatprep.subr.bf16.mxu0 0
    %1847 = vmatpush1.bf16.msra.mxu0 0
    %1848 = vmatprep.subr.bf16.mxu0 0
    %1849 = vmatpush1.bf16.msra.mxu0 0
    %1850 = vmatprep.subr.bf16.mxu0 0
    %1851 = vmatpush1.bf16.msra.mxu0 0
    %1852 = vmatprep.subr.bf16.mxu0 0
    %1853 = vmatpush1.bf16.msra.mxu0 0
    %1854 = vmatprep.subr.bf16.mxu0 0
    %1855 = vmatpush1.bf16.msra.mxu0 0
    %1856 = vmatprep.subr.bf16.mxu0 0
    %1857 = vmatpush1.bf16.msra.mxu0 %v1837
    %1858 = vmatprep.subr.bf16.mxu0 0
    %1859 = vmatpush2.bf16.msra.mxu0 0
    %1860 = vmatprep.subr.bf16.mxu0 0
    %1861 = vmatpush2.bf16.msra.mxu0 0
    %1862 = vmatprep.subr.bf16.mxu0 0
    %1863 = vmatpush2.bf16.msra.mxu0 0
    %1864 = vmatprep.subr.bf16.mxu0 0
    %1865 = vmatpush2.bf16.msra.mxu0 0
    %1866 = vmatprep.subr.bf16.mxu0 0
    %1867 = vmatpush2.bf16.msra.mxu0 0
    %1868 = vmatprep.subr.bf16.mxu0 0
    %1869 = vmatpush2.bf16.msra.mxu0 0
    %1870 = vmatprep.subr.bf16.mxu0 0
    %1871 = vmatpush2.bf16.msra.mxu0 0
    %1872 = vmatprep.subr.bf16.mxu0 0
    %1873 = vmatpush2.bf16.msra.mxu0 0
    %1874 = vmatprep.mubr.bf16.mxu0 0
    %1875 = vmatmul.mubr.bf16.gmra.mxu0 %v1840
    %v1876 = vpop.f32.mrf.mxu0
    %v1877 = vadd.f32 0.0, %v1876
    %v1878 = vpop.f32.mrf.mxu0
    %v1879 = vpop.f32.mrf.mxu0
    %v1880 = vpop.f32.mrf.mxu0
    %1881 = vdwg.mxu0
    %v1882 = vadd.f32 %v1828, %v1877
    %s1883 = scalar_lea.vmem %s3, 184
    %v1884 = vld [vmem:[%s1883] sm:$0xf]
    %v1885 = vld [vmem:[%s1883 + $0x4] sm:$0xf]
    %v1886 = vrot.slane %v641, 7
    %v1889 = vunpack.c.l.b16 %v1884
    %v1890 = vunpack.c.l.b16 %v1885
    %v1891 = vpack.c.b16 %v1890, %v1889
    %v1894 = vsel %vm656, %v1886, 0
    %1896 = vmatprep.subr.bf16.mxu0 0
    %1897 = vmatpush1.bf16.msra.mxu0 0
    %1898 = vmatprep.subr.bf16.mxu0 0
    %1899 = vmatpush1.bf16.msra.mxu0 0
    %1900 = vmatprep.subr.bf16.mxu0 0
    %1901 = vmatpush1.bf16.msra.mxu0 0
    %1902 = vmatprep.subr.bf16.mxu0 0
    %1903 = vmatpush1.bf16.msra.mxu0 0
    %1904 = vmatprep.subr.bf16.mxu0 0
    %1905 = vmatpush1.bf16.msra.mxu0 0
    %1906 = vmatprep.subr.bf16.mxu0 0
    %1907 = vmatpush1.bf16.msra.mxu0 0
    %1908 = vmatprep.subr.bf16.mxu0 0
    %1909 = vmatpush1.bf16.msra.mxu0 0
    %1910 = vmatprep.subr.bf16.mxu0 0
    %1911 = vmatpush1.bf16.msra.mxu0 %v1891
    %1912 = vmatprep.subr.bf16.mxu0 0
    %1913 = vmatpush2.bf16.msra.mxu0 0
    %1914 = vmatprep.subr.bf16.mxu0 0
    %1915 = vmatpush2.bf16.msra.mxu0 0
    %1916 = vmatprep.subr.bf16.mxu0 0
    %1917 = vmatpush2.bf16.msra.mxu0 0
    %1918 = vmatprep.subr.bf16.mxu0 0
    %1919 = vmatpush2.bf16.msra.mxu0 0
    %1920 = vmatprep.subr.bf16.mxu0 0
    %1921 = vmatpush2.bf16.msra.mxu0 0
    %1922 = vmatprep.subr.bf16.mxu0 0
    %1923 = vmatpush2.bf16.msra.mxu0 0
    %1924 = vmatprep.subr.bf16.mxu0 0
    %1925 = vmatpush2.bf16.msra.mxu0 0
    %1926 = vmatprep.subr.bf16.mxu0 0
    %1927 = vmatpush2.bf16.msra.mxu0 0
    %1928 = vmatprep.mubr.bf16.mxu0 0
    %1929 = vmatmul.mubr.bf16.gmra.mxu0 %v1894
    %v1930 = vpop.f32.mrf.mxu0
    %v1931 = vadd.f32 0.0, %v1930
    %v1932 = vpop.f32.mrf.mxu0
    %v1933 = vpop.f32.mrf.mxu0
    %v1934 = vpop.f32.mrf.mxu0
    %1935 = vdwg.mxu0
    %v1936 = vadd.f32 %v1882, %v1931
    %s1937 = scalar_lea.vmem %s3, 192
    %v1938 = vld [vmem:[%s1937] sm:$0xf]
    %v1939 = vld [vmem:[%s1937 + $0x4] sm:$0xf]
    %v1942 = vunpack.c.l.b16 %v1938
    %v1943 = vunpack.c.l.b16 %v1939
    %v1944 = vpack.c.b16 %v1943, %v1942
    %v1947 = vsel %vm656, %v642, 0
    %1949 = vmatprep.subr.bf16.mxu0 0
    %1950 = vmatpush1.bf16.msra.mxu0 0
    %1951 = vmatprep.subr.bf16.mxu0 0
    %1952 = vmatpush1.bf16.msra.mxu0 0
    %1953 = vmatprep.subr.bf16.mxu0 0
    %1954 = vmatpush1.bf16.msra.mxu0 0
    %1955 = vmatprep.subr.bf16.mxu0 0
    %1956 = vmatpush1.bf16.msra.mxu0 0
    %1957 = vmatprep.subr.bf16.mxu0 0
    %1958 = vmatpush1.bf16.msra.mxu0 0
    %1959 = vmatprep.subr.bf16.mxu0 0
    %1960 = vmatpush1.bf16.msra.mxu0 0
    %1961 = vmatprep.subr.bf16.mxu0 0
    %1962 = vmatpush1.bf16.msra.mxu0 0
    %1963 = vmatprep.subr.bf16.mxu0 0
    %1964 = vmatpush1.bf16.msra.mxu0 %v1944
    %1965 = vmatprep.subr.bf16.mxu0 0
    %1966 = vmatpush2.bf16.msra.mxu0 0
    %1967 = vmatprep.subr.bf16.mxu0 0
    %1968 = vmatpush2.bf16.msra.mxu0 0
    %1969 = vmatprep.subr.bf16.mxu0 0
    %1970 = vmatpush2.bf16.msra.mxu0 0
    %1971 = vmatprep.subr.bf16.mxu0 0
    %1972 = vmatpush2.bf16.msra.mxu0 0
    %1973 = vmatprep.subr.bf16.mxu0 0
    %1974 = vmatpush2.bf16.msra.mxu0 0
    %1975 = vmatprep.subr.bf16.mxu0 0
    %1976 = vmatpush2.bf16.msra.mxu0 0
    %1977 = vmatprep.subr.bf16.mxu0 0
    %1978 = vmatpush2.bf16.msra.mxu0 0
    %1979 = vmatprep.subr.bf16.mxu0 0
    %1980 = vmatpush2.bf16.msra.mxu0 0
    %1981 = vmatprep.mubr.bf16.mxu0 0
    %1982 = vmatmul.mubr.bf16.gmra.mxu0 %v1947
    %v1983 = vpop.f32.mrf.mxu0
    %v1984 = vadd.f32 0.0, %v1983
    %v1985 = vpop.f32.mrf.mxu0
    %v1986 = vpop.f32.mrf.mxu0
    %v1987 = vpop.f32.mrf.mxu0
    %1988 = vdwg.mxu0
    %v1989 = vadd.f32 %v1936, %v1984
    %v1990 = vld [vmem:[%s4] sm:$0x1]
    %v1992 = vlaneseq
    %v1993 = vshrl.u32 %v1992, 7
    %v1994 = vsub.s32 0, %v1993
    %v1995 = vrot.slane %v1990, %v1994
    %v1997 = vadd.f32 %v1989, %v1995
    %v1998 = vmax.f32 %v1997, 0.0
    %v1999 = vpack.c.bf16 %v1998, %v1998
    %v2000 = vld [vmem:[%s5] sm:$0xf]
    %v2001 = vld [vmem:[%s5 + $0x4] sm:$0xf]
    %v2002 = vld [vmem:[%s5 + $0x8] sm:$0xf]
    %v2003 = vld [vmem:[%s5 + $0xc] sm:$0xf]
    %v2004 = vld [vmem:[%s5 + $0x10] sm:$0xf]
    %v2005 = vld [vmem:[%s5 + $0x14] sm:$0xf]
    %v2006 = vld [vmem:[%s5 + $0x18] sm:$0xf]
    %v2007 = vld [vmem:[%s5 + $0x1c] sm:$0xf]
    %v2008 = vld [vmem:[%s5 + $0x20] sm:$0xf]
    %v2009 = vld [vmem:[%s5 + $0x24] sm:$0xf]
    %v2010 = vld [vmem:[%s5 + $0x28] sm:$0xf]
    %v2011 = vld [vmem:[%s5 + $0x2c] sm:$0xf]
    %v2012 = vld [vmem:[%s5 + $0x30] sm:$0xf]
    %v2013 = vld [vmem:[%s5 + $0x34] sm:$0xf]
    %v2014 = vld [vmem:[%s5 + $0x38] sm:$0xf]
    %v2015 = vld [vmem:[%s6] sm:$0x1]
    %v2017 = vlaneseq
    %v2018 = vshrl.u32 %v2017, 7
    %v2019 = vsub.s32 0, %v2018
    %v2020 = vrot.slane %v2015, %v2019
    %v2037 = vunpack.c.l.b16 %v2000
    %v2038 = vunpack.c.l.b16 %v2001
    %v2039 = vunpack.c.l.b16 %v2002
    %v2040 = vunpack.c.l.b16 %v2003
    %v2041 = vunpack.c.l.b16 %v2004
    %v2042 = vunpack.c.l.b16 %v2005
    %v2043 = vunpack.c.l.b16 %v2006
    %v2044 = vunpack.c.l.b16 %v2007
    %v2045 = vunpack.c.l.b16 %v2008
    %v2046 = vunpack.c.l.b16 %v2009
    %v2047 = vunpack.c.l.b16 %v2010
    %v2048 = vunpack.c.l.b16 %v2011
    %v2049 = vunpack.c.l.b16 %v2012
    %v2050 = vunpack.c.l.b16 %v2013
    %v2051 = vunpack.c.l.b16 %v2014
    %v2052 = vpack.c.b16 %v2038, %v2037
    %v2053 = vpack.c.b16 %v2040, %v2039
    %v2054 = vpack.c.b16 %v2042, %v2041
    %v2055 = vpack.c.b16 %v2044, %v2043
    %v2056 = vpack.c.b16 %v2046, %v2045
    %v2057 = vpack.c.b16 %v2048, %v2047
    %v2058 = vpack.c.b16 %v2050, %v2049
    %v2059 = vpack.c.b16 %v2051, %v2051
    %vm2067 = vcmask 982016
    %v2069 = vsel %vm2067, %v1999, 0
    %vm2071 = vcmask 1043456
    %v2073 = vsel %vm2071, %v2059, 0
    %2075 = vmatprep.subr.bf16.mxu0 0
    %2076 = vmatpush1.bf16.msra.mxu0 %v2073
    %2077 = vmatprep.subr.bf16.mxu0 0
    %2078 = vmatpush1.bf16.msra.mxu0 %v2058
    %2079 = vmatprep.subr.bf16.mxu0 0
    %2080 = vmatpush1.bf16.msra.mxu0 %v2057
    %2081 = vmatprep.subr.bf16.mxu0 0
    %2082 = vmatpush1.bf16.msra.mxu0 %v2056
    %2083 = vmatprep.subr.bf16.mxu0 0
    %2084 = vmatpush1.bf16.msra.mxu0 %v2055
    %2085 = vmatprep.subr.bf16.mxu0 0
    %2086 = vmatpush1.bf16.msra.mxu0 %v2054
    %2087 = vmatprep.subr.bf16.mxu0 0
    %2088 = vmatpush1.bf16.msra.mxu0 %v2053
    %2089 = vmatprep.subr.bf16.mxu0 0
    %2090 = vmatpush1.bf16.msra.mxu0 %v2052
    %2091 = vmatprep.subr.bf16.mxu0 0
    %2092 = vmatpush2.bf16.msra.mxu0 0
    %2093 = vmatprep.subr.bf16.mxu0 0
    %2094 = vmatpush2.bf16.msra.mxu0 0
    %2095 = vmatprep.subr.bf16.mxu0 0
    %2096 = vmatpush2.bf16.msra.mxu0 0
    %2097 = vmatprep.subr.bf16.mxu0 0
    %2098 = vmatpush2.bf16.msra.mxu0 0
    %2099 = vmatprep.subr.bf16.mxu0 0
    %2100 = vmatpush2.bf16.msra.mxu0 0
    %2101 = vmatprep.subr.bf16.mxu0 0
    %2102 = vmatpush2.bf16.msra.mxu0 0
    %2103 = vmatprep.subr.bf16.mxu0 0
    %2104 = vmatpush2.bf16.msra.mxu0 0
    %2105 = vmatprep.subr.bf16.mxu0 0
    %2106 = vmatpush2.bf16.msra.mxu0 0
    %2107 = vmatprep.mubr.bf16.mxu0 0
    %2108 = vmatmul.mubr.bf16.gmra.mxu0 %v2069
    %v2109 = vpop.f32.mrf.mxu0
    %v2110 = vadd.f32 %v2020, %v2109
    %v2111 = vpop.f32.mrf.mxu0
    %v2112 = vpop.f32.mrf.mxu0
    %v2113 = vpop.f32.mrf.mxu0
    %2114 = vdwg.mxu0
    %v2115 = vmax.f32 %v2110, 0.0
    %v2116 = vpack.c.bf16 %v2115, %v2115
    %v2117 = vld [vmem:[%s7] sm:$0xf]
    %v2118 = vld [vmem:[%s7 + $0x4] sm:$0xf]
    %v2119 = vld [vmem:[%s7 + $0x8] sm:$0xf]
    %v2120 = vld [vmem:[%s7 + $0xc] sm:$0xf]
    %v2121 = vld [vmem:[%s7 + $0x10] sm:$0xf]
    %v2122 = vld [vmem:[%s7 + $0x14] sm:$0xf]
    %v2123 = vld [vmem:[%s7 + $0x18] sm:$0xf]
    %v2124 = vld [vmem:[%s7 + $0x1c] sm:$0xf]
    %v2125 = vld [vmem:[%s7 + $0x20] sm:$0xf]
    %v2126 = vld [vmem:[%s7 + $0x24] sm:$0xf]
    %v2127 = vld [vmem:[%s7 + $0x28] sm:$0x3]
    %v2128 = vld [vmem:[%s8] sm:$0x1]
    %v2130 = vlaneseq
    %v2131 = vshrl.u32 %v2130, 7
    %v2132 = vsub.s32 0, %v2131
    %v2133 = vrot.slane %v2128, %v2132
    %v2146 = vunpack.c.l.b16 %v2117
    %v2147 = vunpack.c.l.b16 %v2118
    %v2148 = vunpack.c.l.b16 %v2119
    %v2149 = vunpack.c.l.b16 %v2120
    %v2150 = vunpack.c.l.b16 %v2121
    %v2151 = vunpack.c.l.b16 %v2122
    %v2152 = vunpack.c.l.b16 %v2123
    %v2153 = vunpack.c.l.b16 %v2124
    %v2154 = vunpack.c.l.b16 %v2125
    %v2155 = vunpack.c.l.b16 %v2126
    %v2156 = vunpack.c.l.b16 %v2127
    %v2157 = vpack.c.b16 %v2147, %v2146
    %v2158 = vpack.c.b16 %v2149, %v2148
    %v2159 = vpack.c.b16 %v2151, %v2150
    %v2160 = vpack.c.b16 %v2153, %v2152
    %v2161 = vpack.c.b16 %v2155, %v2154
    %v2162 = vpack.c.b16 %v2156, %v2156
    %vm2168 = vcmask 687104
    %v2170 = vsel %vm2168, %v2116, 0
    %vm2172 = vcmask 1041408
    %v2174 = vsel %vm2172, %v2162, 0
    %2176 = vmatprep.subr.bf16.mxu0 0
    %2177 = vmatpush1.bf16.msra.mxu0 0
    %2178 = vmatprep.subr.bf16.mxu0 0
    %2179 = vmatpush1.bf16.msra.mxu0 0
    %2180 = vmatprep.subr.bf16.mxu0 0
    %2181 = vmatpush1.bf16.msra.mxu0 %v2174
    %2182 = vmatprep.subr.bf16.mxu0 0
    %2183 = vmatpush1.bf16.msra.mxu0 %v2161
    %2184 = vmatprep.subr.bf16.mxu0 0
    %2185 = vmatpush1.bf16.msra.mxu0 %v2160
    %2186 = vmatprep.subr.bf16.mxu0 0
    %2187 = vmatpush1.bf16.msra.mxu0 %v2159
    %2188 = vmatprep.subr.bf16.mxu0 0
    %2189 = vmatpush1.bf16.msra.mxu0 %v2158
    %2190 = vmatprep.subr.bf16.mxu0 0
    %2191 = vmatpush1.bf16.msra.mxu0 %v2157
    %2192 = vmatprep.subr.bf16.mxu0 0
    %2193 = vmatpush2.bf16.msra.mxu0 0
    %2194 = vmatprep.subr.bf16.mxu0 0
    %2195 = vmatpush2.bf16.msra.mxu0 0
    %2196 = vmatprep.subr.bf16.mxu0 0
    %2197 = vmatpush2.bf16.msra.mxu0 0
    %2198 = vmatprep.subr.bf16.mxu0 0
    %2199 = vmatpush2.bf16.msra.mxu0 0
    %2200 = vmatprep.subr.bf16.mxu0 0
    %2201 = vmatpush2.bf16.msra.mxu0 0
    %2202 = vmatprep.subr.bf16.mxu0 0
    %2203 = vmatpush2.bf16.msra.mxu0 0
    %2204 = vmatprep.subr.bf16.mxu0 0
    %2205 = vmatpush2.bf16.msra.mxu0 0
    %2206 = vmatprep.subr.bf16.mxu0 0
    %2207 = vmatpush2.bf16.msra.mxu0 0
    %2208 = vmatprep.mubr.bf16.mxu0 0
    %2209 = vmatmul.mubr.bf16.gmra.mxu0 %v2170
    %v2210 = vpop.f32.mrf.mxu0
    %v2211 = vadd.f32 %v2133, %v2210
    %v2212 = vpop.f32.mrf.mxu0
    %v2213 = vpop.f32.mrf.mxu0
    %v2214 = vpop.f32.mrf.mxu0
    %2215 = vdwg.mxu0
    %vm2216 = vcmask 74752
    %2217 = vst.msk [vmem:[#allocation2] sm:$0x3] %vm2216, %v2211
    // Predicated region
    $region38: #{net_forward.3} parent=1 // pred_check
      _
    $region39: #{net_forward.3} parent=1 // pred_check_branch
      %2219 = sbr.rel (0) target = $region41
    $region40: #{net_forward.3} parent=1 // pred_region
      %s2221 = ssub.s32 32, 32
      %2222 = vsyncadd [#allocation3], %s2221
      %s2224 = sshll.u32 [#allocation2], 4
      %s2225 = int_to_ptr.vmem [resolvable:$true] %s2224
      %2227 = dma.vmem_to_hbm [thread:$0]  %s2225, 32, %s9, [#allocation3]
    $region41: #{net_forward.3} parent=1 // pred_fallthru
      _
    // Predicated region
    $region42: #{net_forward.3} parent=1 // pred_check
      _
    $region43: #{net_forward.3} parent=1 // pred_check_branch
      %2229 = sbr.rel (0) target = $region45
    $region44: #{net_forward.3} parent=1 // pred_region
      %2230 = dma.done [#allocation3], 32
    $region45: #{net_forward.3} parent=1 // pred_fallthru
      _
    %2231 = vsyncpa [#allocation3], 1

</llo_original>
